<compile_context>
chip_gen: v7x
topology: tpu7x:2x2x1
jax: 0.10.0
libtpu: 0.0.40
codegen_flags: <defaults>
</compile_context>

<pallas_src>
import numpy as np

import jax
import jax.numpy as jnp
from jax.experimental import pallas as pl
from jax.experimental.pallas import tpu as pltpu


BT = 8          # batch tile per grid step (multiple of 8 keeps in-kernel reshapes tile-aligned)
LANES = 128     # lane padding for the dense tail / HBM output


# ---------------------------------------------------------------------------
# Weight packing (done once, outside the forward pass)
# ---------------------------------------------------------------------------

def _band_matrices(wt, w_in):
    """wt: (KH, KW, Cin, Cout) -> (KH, w_in*Cin, OW*Cout) banded conv matrices.

    A[i][w*Cin + ci, x*Cout + co] = wt[i, w - x, ci, co]  (0 <= w - x < KW, else 0)
    so that a valid stride-1 conv becomes   out = sum_i  in[:, i:i+OH, :] @ A[i].
    """
    kh, kw, cin, cout = wt.shape
    ow = w_in - kw + 1
    a = np.zeros((kh, w_in, cin, ow, cout), np.float32)
    for i in range(kh):
        for x in range(ow):
            for j in range(kw):
                a[i, x + j, :, x, :] = wt[i, j]
    return a.reshape(kh, w_in * cin, ow * cout)


def pack_params(params):
    """Pre-pack PyTorch-layout params into kernel-ready (bf16 weights, f32 biases)."""
    f32, bf16 = jnp.float32, jnp.bfloat16

    w1 = np.asarray(params["conv1_w"], np.float32).transpose(2, 3, 1, 0)  # (5,5,1,6)
    w2 = np.asarray(params["conv2_w"], np.float32).transpose(2, 3, 1, 0)  # (5,5,6,16)
    w3 = np.asarray(params["conv3_w"], np.float32).transpose(2, 3, 1, 0)  # (4,4,16,120)

    a1 = _band_matrices(w1, 28)                                   # (5, 28, 144)
    a2 = _band_matrices(w2, 12)                                   # (5, 72, 128)
    a3 = _band_matrices(w3, 4)                                    # (4, 64, 120)
    a3 = np.pad(a3, ((0, 0), (0, 0), (0, LANES - a3.shape[2])))   # (4, 64, 128)

    b1 = np.tile(np.asarray(params["conv1_b"], np.float32), 24)[None]          # (1,144)
    b2 = np.tile(np.asarray(params["conv2_b"], np.float32), 8)[None]           # (1,128)
    b3 = np.pad(np.asarray(params["conv3_b"], np.float32), (0, LANES - 120))[None]

    w4 = np.zeros((LANES, LANES), np.float32)
    w4[:120, :84] = np.asarray(params["fc1_w"], np.float32).T                  # (K,N) layout
    b4 = np.pad(np.asarray(params["fc1_b"], np.float32), (0, LANES - 84))[None]

    w5 = np.zeros((LANES, LANES), np.float32)
    w5[:84, :10] = np.asarray(params["fc2_w"], np.float32).T
    b5 = np.pad(np.asarray(params["fc2_b"], np.float32), (0, LANES - 10))[None]

    return {
        "a1": jnp.asarray(a1, bf16), "b1": jnp.asarray(b1, f32),
        "a2": jnp.asarray(a2, bf16), "b2": jnp.asarray(b2, f32),
        "a3": jnp.asarray(a3, bf16), "b3": jnp.asarray(b3, f32),
        "w4": jnp.asarray(w4, bf16), "b4": jnp.asarray(b4, f32),
        "w5": jnp.asarray(w5, bf16), "b5": jnp.asarray(b5, f32),
    }


# ---------------------------------------------------------------------------
# Fused Pallas kernel: whole LeNet forward for one batch tile
# ---------------------------------------------------------------------------

def _lenet_kernel(x_ref, a1_ref, b1_ref, a2_ref, b2_ref, a3_ref, b3_ref,
                  w4_ref, b4_ref, w5_ref, b5_ref, o_ref):
    f32, bf16 = jnp.float32, jnp.bfloat16
    bt = x_ref.shape[0]

    def conv_band(v, a_ref, b_ref, kh, oh):
        # Banded-matmul "valid" conv + bias + ReLU on fused-lane activations.
        #   v: (bt, H, W*Cin) f32;  a_ref: (kh, W*Cin, OW*Cout) bf16;  b_ref: (1, OW*Cout) f32
        k, n = a_ref.shape[1], a_ref.shape[2]
        acc = jnp.zeros((bt * oh, n), f32)
        for i in range(kh):                                   # unrolled at trace time
            lhs = v[:, i:i + oh, :].reshape(bt * oh, k).astype(bf16)
            acc = acc + jnp.dot(lhs, a_ref[i], preferred_element_type=f32)
        acc = jnp.maximum(acc + b_ref[...], 0.0)              # f32 bias + ReLU epilogue
        return acc.reshape(bt, oh, n)

    def pool2x2(v, c):
        # 2x2 max-pool on (bt, H, W*c) fused-lane activations (H, W even).
        h, wc = v.shape[1], v.shape[2]
        # pair-max along H, keep even rows
        hm = jnp.maximum(v[:, 0:h - 1, :], v[:, 1:h, :])
        v = jnp.concatenate([hm[:, 2 * r:2 * r + 1, :] for r in range(h // 2)], axis=1)
        # pair-max along W (lane groups of size c), keep even groups
        wm = jnp.maximum(v[:, :, 0:wc - c], v[:, :, c:wc])
        v = jnp.concatenate(
            [wm[:, :, 2 * g * c:2 * g * c + c] for g in range(wc // (2 * c))], axis=2)
        return v

    x = x_ref[...].astype(f32)                        # (bt, 28, 28)  Cin=1 fused into lanes
    h1 = conv_band(x, a1_ref, b1_ref, kh=5, oh=24)    # (bt, 24, 24*6)
    # TODO(synk): LaplaceLayer (do1..do5) undefined in the reference; identity at inference.
    p1 = pool2x2(h1, c=6)                             # (bt, 12, 12*6)
    h2 = conv_band(p1, a2_ref, b2_ref, kh=5, oh=8)    # (bt, 8, 8*16)
    p2 = pool2x2(h2, c=16)                            # (bt, 4, 4*16)

    f = conv_band(p2, a3_ref, b3_ref, kh=4, oh=1)     # conv3 == dense; (bt, 1, 128) (120 + pad)
    f = f.reshape(bt, a3_ref.shape[2])                # (bt, 128), pad lanes are exactly 0

    f = jnp.maximum(
        jnp.dot(f.astype(bf16), w4_ref[...], preferred_element_type=f32) + b4_ref[...],
        0.0)                                          # fc1 + ReLU, (bt, 128)
    out = jnp.dot(f.astype(bf16), w5_ref[...], preferred_element_type=f32) + b5_ref[...]
    o_ref[...] = out.astype(o_ref.dtype)              # lane-dense (bt, 128) store


# ---------------------------------------------------------------------------
# Wrapper
# ---------------------------------------------------------------------------

def lenet_laplace_forward(x, packed, ps=None):
    """x: (N, 1, 28, 28) float32 NCHW (as in the PyTorch module) -> (N, 10) logits."""
    del ps  # TODO(synk): LaplaceLayer undefined in the reference; identity at inference.
    n = x.shape[0]
    xf = x.reshape(n, 28, 28).astype(jnp.float32)
    pad_n = ((n + BT - 1) // BT) * BT
    if pad_n != n:
        xf = jnp.pad(xf, ((0, pad_n - n), (0, 0), (0, 0)))

    def full(a):
        return pl.BlockSpec(a.shape, lambda g: (0,) * a.ndim)

    w_args = (packed["a1"], packed["b1"], packed["a2"], packed["b2"],
              packed["a3"], packed["b3"], packed["w4"], packed["b4"],
              packed["w5"], packed["b5"])

    out = pl.pallas_call(
        _lenet_kernel,
        out_shape=jax.ShapeDtypeStruct((pad_n, LANES), jnp.float32),
        grid=(pad_n // BT,),
        in_specs=[pl.BlockSpec((BT, 28, 28), lambda g: (g, 0, 0))]
                 + [full(a) for a in w_args],
        out_specs=pl.BlockSpec((BT, LANES), lambda g: (g, 0)),
        compiler_params=pltpu.CompilerParams(
            dimension_semantics=("parallel",),
            vmem_limit_bytes=32 * 1024 * 1024),
    )(xf, *w_args)
    return out[:n, :10]


# ---------------------------------------------------------------------------
# Parameter init (PyTorch-style uniform(-1/sqrt(fan_in), 1/sqrt(fan_in)))
# ---------------------------------------------------------------------------

def init_params(key):
    def uni(k, shape, fan_in):
        bound = 1.0 / float(np.sqrt(fan_in))
        return jax.random.uniform(k, shape, jnp.float32, -bound, bound)

    keys = jax.random.split(key, 10)
    return {
        "conv1_w": uni(keys[0], (6, 1, 5, 5), 1 * 5 * 5),
        "conv1_b": uni(keys[1], (6,), 1 * 5 * 5),
        "conv2_w": uni(keys[2], (16, 6, 5, 5), 6 * 5 * 5),
        "conv2_b": uni(keys[3], (16,), 6 * 5 * 5),
        "conv3_w": uni(keys[4], (120, 16, 4, 4), 16 * 4 * 4),
        "conv3_b": uni(keys[5], (120,), 16 * 4 * 4),
        "fc1_w": uni(keys[6], (84, 120), 120),   # PyTorch Linear layout: (out, in)
        "fc1_b": uni(keys[7], (84,), 120),
        "fc2_w": uni(keys[8], (10, 84), 84),
        "fc2_b": uni(keys[9], (10,), 84),
    }


if __name__ == "__main__":
    key = jax.random.PRNGKey(0)
    k_param, k_x = jax.random.split(key)
    params = init_params(k_param)
    packed = pack_params(params)        # one-time weight pre-packing
    x = jax.random.normal(k_x, (2, 1, 28, 28), jnp.float32)

    fwd = jax.jit(lenet_laplace_forward)
    out = fwd(x, packed)
    jax.block_until_ready(out)
    assert out.shape == (2, 10) and out.dtype == jnp.float32
    print("KERNEL_OK")
</pallas_src>

<mosaic_0001>
module attributes {stable_mosaic.version = 11 : i64} {
  func.func @_lenet_kernel(%arg0: i32, %arg1: memref<8x28x28xf32, #tpu.memory_space<vmem>>, %arg2: memref<5x28x144xbf16, #tpu.memory_space<vmem>>, %arg3: memref<1x144xf32, #tpu.memory_space<vmem>>, %arg4: memref<5x72x128xbf16, #tpu.memory_space<vmem>>, %arg5: memref<1x128xf32, #tpu.memory_space<vmem>>, %arg6: memref<4x64x128xbf16, #tpu.memory_space<vmem>>, %arg7: memref<1x128xf32, #tpu.memory_space<vmem>>, %arg8: memref<128x128xbf16, #tpu.memory_space<vmem>>, %arg9: memref<1x128xf32, #tpu.memory_space<vmem>>, %arg10: memref<128x128xbf16, #tpu.memory_space<vmem>>, %arg11: memref<1x128xf32, #tpu.memory_space<vmem>>, %arg12: memref<8x128xf32, #tpu.memory_space<vmem>>) attributes {dimension_semantics = [#tpu.dimension_semantics<parallel>], iteration_bounds = array<i64: 1>, scalar_prefetch = 0 : i64, scratch_operands = 0 : i64, tpu.core_type = #tpu.core_type<tc>, window_params = [{transform_indices = @transform_0, window_bounds = array<i64: 8, 28, 28>}, {pipeline_mode = #tpu.pipeline_mode<synchronous>, transform_indices = @transform_1, window_bounds = array<i64: 5, 28, 144>}, {pipeline_mode = #tpu.pipeline_mode<synchronous>, transform_indices = @transform_2, window_bounds = array<i64: 1, 144>}, {pipeline_mode = #tpu.pipeline_mode<synchronous>, transform_indices = @transform_3, window_bounds = array<i64: 5, 72, 128>}, {pipeline_mode = #tpu.pipeline_mode<synchronous>, transform_indices = @transform_4, window_bounds = array<i64: 1, 128>}, {pipeline_mode = #tpu.pipeline_mode<synchronous>, transform_indices = @transform_5, window_bounds = array<i64: 4, 64, 128>}, {pipeline_mode = #tpu.pipeline_mode<synchronous>, transform_indices = @transform_6, window_bounds = array<i64: 1, 128>}, {pipeline_mode = #tpu.pipeline_mode<synchronous>, transform_indices = @transform_7, window_bounds = array<i64: 128, 128>}, {pipeline_mode = #tpu.pipeline_mode<synchronous>, transform_indices = @transform_8, window_bounds = array<i64: 1, 128>}, {pipeline_mode = #tpu.pipeline_mode<synchronous>, transform_indices = @transform_9, window_bounds = array<i64: 128, 128>}, {pipeline_mode = #tpu.pipeline_mode<synchronous>, transform_indices = @transform_10, window_bounds = array<i64: 1, 128>}, {transform_indices = @transform_11, window_bounds = array<i64: 8, 128>}]} {
    %c0 = arith.constant 0 : index
    %c0_0 = arith.constant 0 : index
    %c0_1 = arith.constant 0 : index
    %0 = vector.load %arg1[%c0, %c0_0, %c0_1] : memref<8x28x28xf32, #tpu.memory_space<vmem>>, vector<8x28x28xf32>
    %cst = arith.constant 0.000000e+00 : f32
    %1 = vector.broadcast %cst : f32 to vector<192x144xf32>
    %2 = vector.extract_strided_slice %0 {offsets = [0, 0, 0], sizes = [8, 24, 28], strides = [1, 1, 1]} : vector<8x28x28xf32> to vector<8x24x28xf32>
    %3 = vector.shape_cast %2 : vector<8x24x28xf32> to vector<192x28xf32>
    %4 = arith.truncf %3 : vector<192x28xf32> to vector<192x28xbf16>
    %c0_2 = arith.constant 0 : index
    %c0_3 = arith.constant 0 : index
    %c0_4 = arith.constant 0 : index
    %5 = vector.load %arg2[%c0_2, %c0_3, %c0_4] : memref<5x28x144xbf16, #tpu.memory_space<vmem>>, vector<1x28x144xbf16>
    %6 = vector.shape_cast %5 : vector<1x28x144xbf16> to vector<28x144xbf16>
    %cst_5 = arith.constant dense<0.000000e+00> : vector<192x144xf32>
    %7 = tpu.matmul %4, %6, %cst_5 {dimension_numbers = #tpu.dot_dimension_numbers<[1], [0], [0], [1], [0, 0, 1, 1], [], []>} : vector<192x28xbf16>, vector<28x144xbf16>, vector<192x144xf32> -> vector<192x144xf32>
    %8 = arith.addf %1, %7 : vector<192x144xf32>
    %9 = vector.extract_strided_slice %0 {offsets = [0, 1, 0], sizes = [8, 24, 28], strides = [1, 1, 1]} : vector<8x28x28xf32> to vector<8x24x28xf32>
    %10 = vector.shape_cast %9 : vector<8x24x28xf32> to vector<192x28xf32>
    %11 = arith.truncf %10 : vector<192x28xf32> to vector<192x28xbf16>
    %c1 = arith.constant 1 : index
    %c0_6 = arith.constant 0 : index
    %c0_7 = arith.constant 0 : index
    %12 = vector.load %arg2[%c1, %c0_6, %c0_7] : memref<5x28x144xbf16, #tpu.memory_space<vmem>>, vector<1x28x144xbf16>
    %13 = vector.shape_cast %12 : vector<1x28x144xbf16> to vector<28x144xbf16>
    %cst_8 = arith.constant dense<0.000000e+00> : vector<192x144xf32>
    %14 = tpu.matmul %11, %13, %cst_8 {dimension_numbers = #tpu.dot_dimension_numbers<[1], [0], [0], [1], [0, 0, 1, 1], [], []>} : vector<192x28xbf16>, vector<28x144xbf16>, vector<192x144xf32> -> vector<192x144xf32>
    %15 = arith.addf %8, %14 : vector<192x144xf32>
    %16 = vector.extract_strided_slice %0 {offsets = [0, 2, 0], sizes = [8, 24, 28], strides = [1, 1, 1]} : vector<8x28x28xf32> to vector<8x24x28xf32>
    %17 = vector.shape_cast %16 : vector<8x24x28xf32> to vector<192x28xf32>
    %18 = arith.truncf %17 : vector<192x28xf32> to vector<192x28xbf16>
    %c2 = arith.constant 2 : index
    %c0_9 = arith.constant 0 : index
    %c0_10 = arith.constant 0 : index
    %19 = vector.load %arg2[%c2, %c0_9, %c0_10] : memref<5x28x144xbf16, #tpu.memory_space<vmem>>, vector<1x28x144xbf16>
    %20 = vector.shape_cast %19 : vector<1x28x144xbf16> to vector<28x144xbf16>
    %cst_11 = arith.constant dense<0.000000e+00> : vector<192x144xf32>
    %21 = tpu.matmul %18, %20, %cst_11 {dimension_numbers = #tpu.dot_dimension_numbers<[1], [0], [0], [1], [0, 0, 1, 1], [], []>} : vector<192x28xbf16>, vector<28x144xbf16>, vector<192x144xf32> -> vector<192x144xf32>
    %22 = arith.addf %15, %21 : vector<192x144xf32>
    %23 = vector.extract_strided_slice %0 {offsets = [0, 3, 0], sizes = [8, 24, 28], strides = [1, 1, 1]} : vector<8x28x28xf32> to vector<8x24x28xf32>
    %24 = vector.shape_cast %23 : vector<8x24x28xf32> to vector<192x28xf32>
    %25 = arith.truncf %24 : vector<192x28xf32> to vector<192x28xbf16>
    %c3 = arith.constant 3 : index
    %c0_12 = arith.constant 0 : index
    %c0_13 = arith.constant 0 : index
    %26 = vector.load %arg2[%c3, %c0_12, %c0_13] : memref<5x28x144xbf16, #tpu.memory_space<vmem>>, vector<1x28x144xbf16>
    %27 = vector.shape_cast %26 : vector<1x28x144xbf16> to vector<28x144xbf16>
    %cst_14 = arith.constant dense<0.000000e+00> : vector<192x144xf32>
    %28 = tpu.matmul %25, %27, %cst_14 {dimension_numbers = #tpu.dot_dimension_numbers<[1], [0], [0], [1], [0, 0, 1, 1], [], []>} : vector<192x28xbf16>, vector<28x144xbf16>, vector<192x144xf32> -> vector<192x144xf32>
    %29 = arith.addf %22, %28 : vector<192x144xf32>
    %30 = vector.extract_strided_slice %0 {offsets = [0, 4, 0], sizes = [8, 24, 28], strides = [1, 1, 1]} : vector<8x28x28xf32> to vector<8x24x28xf32>
    %31 = vector.shape_cast %30 : vector<8x24x28xf32> to vector<192x28xf32>
    %32 = arith.truncf %31 : vector<192x28xf32> to vector<192x28xbf16>
    %c4 = arith.constant 4 : index
    %c0_15 = arith.constant 0 : index
    %c0_16 = arith.constant 0 : index
    %33 = vector.load %arg2[%c4, %c0_15, %c0_16] : memref<5x28x144xbf16, #tpu.memory_space<vmem>>, vector<1x28x144xbf16>
    %34 = vector.shape_cast %33 : vector<1x28x144xbf16> to vector<28x144xbf16>
    %cst_17 = arith.constant dense<0.000000e+00> : vector<192x144xf32>
    %35 = tpu.matmul %32, %34, %cst_17 {dimension_numbers = #tpu.dot_dimension_numbers<[1], [0], [0], [1], [0, 0, 1, 1], [], []>} : vector<192x28xbf16>, vector<28x144xbf16>, vector<192x144xf32> -> vector<192x144xf32>
    %36 = arith.addf %29, %35 : vector<192x144xf32>
    %c0_18 = arith.constant 0 : index
    %c0_19 = arith.constant 0 : index
    %37 = vector.load %arg3[%c0_18, %c0_19] : memref<1x144xf32, #tpu.memory_space<vmem>>, vector<1x144xf32>
    %38 = vector.broadcast %37 : vector<1x144xf32> to vector<192x144xf32>
    %39 = arith.addf %36, %38 : vector<192x144xf32>
    %cst_20 = arith.constant 0.000000e+00 : f32
    %40 = vector.broadcast %cst_20 : f32 to vector<192x144xf32>
    %41 = arith.maximumf %39, %40 : vector<192x144xf32>
    %42 = vector.shape_cast %41 : vector<192x144xf32> to vector<8x24x144xf32>
    %43 = vector.extract_strided_slice %42 {offsets = [0, 0, 0], sizes = [8, 23, 144], strides = [1, 1, 1]} : vector<8x24x144xf32> to vector<8x23x144xf32>
    %44 = vector.extract_strided_slice %42 {offsets = [0, 1, 0], sizes = [8, 23, 144], strides = [1, 1, 1]} : vector<8x24x144xf32> to vector<8x23x144xf32>
    %45 = arith.maximumf %43, %44 : vector<8x23x144xf32>
    %46 = vector.extract_strided_slice %45 {offsets = [0, 0, 0], sizes = [8, 1, 144], strides = [1, 1, 1]} : vector<8x23x144xf32> to vector<8x1x144xf32>
    %47 = vector.extract_strided_slice %45 {offsets = [0, 2, 0], sizes = [8, 1, 144], strides = [1, 1, 1]} : vector<8x23x144xf32> to vector<8x1x144xf32>
    %48 = vector.extract_strided_slice %45 {offsets = [0, 4, 0], sizes = [8, 1, 144], strides = [1, 1, 1]} : vector<8x23x144xf32> to vector<8x1x144xf32>
    %49 = vector.extract_strided_slice %45 {offsets = [0, 6, 0], sizes = [8, 1, 144], strides = [1, 1, 1]} : vector<8x23x144xf32> to vector<8x1x144xf32>
    %50 = vector.extract_strided_slice %45 {offsets = [0, 8, 0], sizes = [8, 1, 144], strides = [1, 1, 1]} : vector<8x23x144xf32> to vector<8x1x144xf32>
    %51 = vector.extract_strided_slice %45 {offsets = [0, 10, 0], sizes = [8, 1, 144], strides = [1, 1, 1]} : vector<8x23x144xf32> to vector<8x1x144xf32>
    %52 = vector.extract_strided_slice %45 {offsets = [0, 12, 0], sizes = [8, 1, 144], strides = [1, 1, 1]} : vector<8x23x144xf32> to vector<8x1x144xf32>
    %53 = vector.extract_strided_slice %45 {offsets = [0, 14, 0], sizes = [8, 1, 144], strides = [1, 1, 1]} : vector<8x23x144xf32> to vector<8x1x144xf32>
    %54 = vector.extract_strided_slice %45 {offsets = [0, 16, 0], sizes = [8, 1, 144], strides = [1, 1, 1]} : vector<8x23x144xf32> to vector<8x1x144xf32>
    %55 = vector.extract_strided_slice %45 {offsets = [0, 18, 0], sizes = [8, 1, 144], strides = [1, 1, 1]} : vector<8x23x144xf32> to vector<8x1x144xf32>
    %56 = vector.extract_strided_slice %45 {offsets = [0, 20, 0], sizes = [8, 1, 144], strides = [1, 1, 1]} : vector<8x23x144xf32> to vector<8x1x144xf32>
    %57 = vector.extract_strided_slice %45 {offsets = [0, 22, 0], sizes = [8, 1, 144], strides = [1, 1, 1]} : vector<8x23x144xf32> to vector<8x1x144xf32>
    %58 = tpu.concatenate %46, %47, %48, %49, %50, %51, %52, %53, %54, %55, %56, %57 in 1 : vector<8x1x144xf32>, vector<8x1x144xf32>, vector<8x1x144xf32>, vector<8x1x144xf32>, vector<8x1x144xf32>, vector<8x1x144xf32>, vector<8x1x144xf32>, vector<8x1x144xf32>, vector<8x1x144xf32>, vector<8x1x144xf32>, vector<8x1x144xf32>, vector<8x1x144xf32> -> vector<8x12x144xf32>
    %59 = vector.extract_strided_slice %58 {offsets = [0, 0, 0], sizes = [8, 12, 138], strides = [1, 1, 1]} : vector<8x12x144xf32> to vector<8x12x138xf32>
    %60 = vector.extract_strided_slice %58 {offsets = [0, 0, 6], sizes = [8, 12, 138], strides = [1, 1, 1]} : vector<8x12x144xf32> to vector<8x12x138xf32>
    %61 = arith.maximumf %59, %60 : vector<8x12x138xf32>
    %62 = vector.extract_strided_slice %61 {offsets = [0, 0, 0], sizes = [8, 12, 6], strides = [1, 1, 1]} : vector<8x12x138xf32> to vector<8x12x6xf32>
    %63 = vector.extract_strided_slice %61 {offsets = [0, 0, 12], sizes = [8, 12, 6], strides = [1, 1, 1]} : vector<8x12x138xf32> to vector<8x12x6xf32>
    %64 = vector.extract_strided_slice %61 {offsets = [0, 0, 24], sizes = [8, 12, 6], strides = [1, 1, 1]} : vector<8x12x138xf32> to vector<8x12x6xf32>
    %65 = vector.extract_strided_slice %61 {offsets = [0, 0, 36], sizes = [8, 12, 6], strides = [1, 1, 1]} : vector<8x12x138xf32> to vector<8x12x6xf32>
    %66 = vector.extract_strided_slice %61 {offsets = [0, 0, 48], sizes = [8, 12, 6], strides = [1, 1, 1]} : vector<8x12x138xf32> to vector<8x12x6xf32>
    %67 = vector.extract_strided_slice %61 {offsets = [0, 0, 60], sizes = [8, 12, 6], strides = [1, 1, 1]} : vector<8x12x138xf32> to vector<8x12x6xf32>
    %68 = vector.extract_strided_slice %61 {offsets = [0, 0, 72], sizes = [8, 12, 6], strides = [1, 1, 1]} : vector<8x12x138xf32> to vector<8x12x6xf32>
    %69 = vector.extract_strided_slice %61 {offsets = [0, 0, 84], sizes = [8, 12, 6], strides = [1, 1, 1]} : vector<8x12x138xf32> to vector<8x12x6xf32>
    %70 = vector.extract_strided_slice %61 {offsets = [0, 0, 96], sizes = [8, 12, 6], strides = [1, 1, 1]} : vector<8x12x138xf32> to vector<8x12x6xf32>
    %71 = vector.extract_strided_slice %61 {offsets = [0, 0, 108], sizes = [8, 12, 6], strides = [1, 1, 1]} : vector<8x12x138xf32> to vector<8x12x6xf32>
    %72 = vector.extract_strided_slice %61 {offsets = [0, 0, 120], sizes = [8, 12, 6], strides = [1, 1, 1]} : vector<8x12x138xf32> to vector<8x12x6xf32>
    %73 = vector.extract_strided_slice %61 {offsets = [0, 0, 132], sizes = [8, 12, 6], strides = [1, 1, 1]} : vector<8x12x138xf32> to vector<8x12x6xf32>
    %74 = tpu.concatenate %62, %63, %64, %65, %66, %67, %68, %69, %70, %71, %72, %73 in 2 : vector<8x12x6xf32>, vector<8x12x6xf32>, vector<8x12x6xf32>, vector<8x12x6xf32>, vector<8x12x6xf32>, vector<8x12x6xf32>, vector<8x12x6xf32>, vector<8x12x6xf32>, vector<8x12x6xf32>, vector<8x12x6xf32>, vector<8x12x6xf32>, vector<8x12x6xf32> -> vector<8x12x72xf32>
    %cst_21 = arith.constant 0.000000e+00 : f32
    %75 = vector.broadcast %cst_21 : f32 to vector<64x128xf32>
    %76 = vector.extract_strided_slice %74 {offsets = [0, 0, 0], sizes = [8, 8, 72], strides = [1, 1, 1]} : vector<8x12x72xf32> to vector<8x8x72xf32>
    %77 = vector.shape_cast %76 : vector<8x8x72xf32> to vector<64x72xf32>
    %78 = arith.truncf %77 : vector<64x72xf32> to vector<64x72xbf16>
    %c0_22 = arith.constant 0 : index
    %c0_23 = arith.constant 0 : index
    %c0_24 = arith.constant 0 : index
    %79 = vector.load %arg4[%c0_22, %c0_23, %c0_24] : memref<5x72x128xbf16, #tpu.memory_space<vmem>>, vector<1x72x128xbf16>
    %80 = vector.shape_cast %79 : vector<1x72x128xbf16> to vector<72x128xbf16>
    %cst_25 = arith.constant dense<0.000000e+00> : vector<64x128xf32>
    %81 = tpu.matmul %78, %80, %cst_25 {dimension_numbers = #tpu.dot_dimension_numbers<[1], [0], [0], [1], [0, 0, 1, 1], [], []>} : vector<64x72xbf16>, vector<72x128xbf16>, vector<64x128xf32> -> vector<64x128xf32>
    %82 = arith.addf %75, %81 : vector<64x128xf32>
    %83 = vector.extract_strided_slice %74 {offsets = [0, 1, 0], sizes = [8, 8, 72], strides = [1, 1, 1]} : vector<8x12x72xf32> to vector<8x8x72xf32>
    %84 = vector.shape_cast %83 : vector<8x8x72xf32> to vector<64x72xf32>
    %85 = arith.truncf %84 : vector<64x72xf32> to vector<64x72xbf16>
    %c1_26 = arith.constant 1 : index
    %c0_27 = arith.constant 0 : index
    %c0_28 = arith.constant 0 : index
    %86 = vector.load %arg4[%c1_26, %c0_27, %c0_28] : memref<5x72x128xbf16, #tpu.memory_space<vmem>>, vector<1x72x128xbf16>
    %87 = vector.shape_cast %86 : vector<1x72x128xbf16> to vector<72x128xbf16>
    %cst_29 = arith.constant dense<0.000000e+00> : vector<64x128xf32>
    %88 = tpu.matmul %85, %87, %cst_29 {dimension_numbers = #tpu.dot_dimension_numbers<[1], [0], [0], [1], [0, 0, 1, 1], [], []>} : vector<64x72xbf16>, vector<72x128xbf16>, vector<64x128xf32> -> vector<64x128xf32>
    %89 = arith.addf %82, %88 : vector<64x128xf32>
    %90 = vector.extract_strided_slice %74 {offsets = [0, 2, 0], sizes = [8, 8, 72], strides = [1, 1, 1]} : vector<8x12x72xf32> to vector<8x8x72xf32>
    %91 = vector.shape_cast %90 : vector<8x8x72xf32> to vector<64x72xf32>
    %92 = arith.truncf %91 : vector<64x72xf32> to vector<64x72xbf16>
    %c2_30 = arith.constant 2 : index
    %c0_31 = arith.constant 0 : index
    %c0_32 = arith.constant 0 : index
    %93 = vector.load %arg4[%c2_30, %c0_31, %c0_32] : memref<5x72x128xbf16, #tpu.memory_space<vmem>>, vector<1x72x128xbf16>
    %94 = vector.shape_cast %93 : vector<1x72x128xbf16> to vector<72x128xbf16>
    %cst_33 = arith.constant dense<0.000000e+00> : vector<64x128xf32>
    %95 = tpu.matmul %92, %94, %cst_33 {dimension_numbers = #tpu.dot_dimension_numbers<[1], [0], [0], [1], [0, 0, 1, 1], [], []>} : vector<64x72xbf16>, vector<72x128xbf16>, vector<64x128xf32> -> vector<64x128xf32>
    %96 = arith.addf %89, %95 : vector<64x128xf32>
    %97 = vector.extract_strided_slice %74 {offsets = [0, 3, 0], sizes = [8, 8, 72], strides = [1, 1, 1]} : vector<8x12x72xf32> to vector<8x8x72xf32>
    %98 = vector.shape_cast %97 : vector<8x8x72xf32> to vector<64x72xf32>
    %99 = arith.truncf %98 : vector<64x72xf32> to vector<64x72xbf16>
    %c3_34 = arith.constant 3 : index
    %c0_35 = arith.constant 0 : index
    %c0_36 = arith.constant 0 : index
    %100 = vector.load %arg4[%c3_34, %c0_35, %c0_36] : memref<5x72x128xbf16, #tpu.memory_space<vmem>>, vector<1x72x128xbf16>
    %101 = vector.shape_cast %100 : vector<1x72x128xbf16> to vector<72x128xbf16>
    %cst_37 = arith.constant dense<0.000000e+00> : vector<64x128xf32>
    %102 = tpu.matmul %99, %101, %cst_37 {dimension_numbers = #tpu.dot_dimension_numbers<[1], [0], [0], [1], [0, 0, 1, 1], [], []>} : vector<64x72xbf16>, vector<72x128xbf16>, vector<64x128xf32> -> vector<64x128xf32>
    %103 = arith.addf %96, %102 : vector<64x128xf32>
    %104 = vector.extract_strided_slice %74 {offsets = [0, 4, 0], sizes = [8, 8, 72], strides = [1, 1, 1]} : vector<8x12x72xf32> to vector<8x8x72xf32>
    %105 = vector.shape_cast %104 : vector<8x8x72xf32> to vector<64x72xf32>
    %106 = arith.truncf %105 : vector<64x72xf32> to vector<64x72xbf16>
    %c4_38 = arith.constant 4 : index
    %c0_39 = arith.constant 0 : index
    %c0_40 = arith.constant 0 : index
    %107 = vector.load %arg4[%c4_38, %c0_39, %c0_40] : memref<5x72x128xbf16, #tpu.memory_space<vmem>>, vector<1x72x128xbf16>
    %108 = vector.shape_cast %107 : vector<1x72x128xbf16> to vector<72x128xbf16>
    %cst_41 = arith.constant dense<0.000000e+00> : vector<64x128xf32>
    %109 = tpu.matmul %106, %108, %cst_41 {dimension_numbers = #tpu.dot_dimension_numbers<[1], [0], [0], [1], [0, 0, 1, 1], [], []>} : vector<64x72xbf16>, vector<72x128xbf16>, vector<64x128xf32> -> vector<64x128xf32>
    %110 = arith.addf %103, %109 : vector<64x128xf32>
    %c0_42 = arith.constant 0 : index
    %c0_43 = arith.constant 0 : index
    %111 = vector.load %arg5[%c0_42, %c0_43] : memref<1x128xf32, #tpu.memory_space<vmem>>, vector<1x128xf32>
    %112 = vector.broadcast %111 : vector<1x128xf32> to vector<64x128xf32>
    %113 = arith.addf %110, %112 : vector<64x128xf32>
    %cst_44 = arith.constant 0.000000e+00 : f32
    %114 = vector.broadcast %cst_44 : f32 to vector<64x128xf32>
    %115 = arith.maximumf %113, %114 : vector<64x128xf32>
    %116 = vector.shape_cast %115 : vector<64x128xf32> to vector<8x8x128xf32>
    %117 = vector.extract_strided_slice %116 {offsets = [0, 0, 0], sizes = [8, 7, 128], strides = [1, 1, 1]} : vector<8x8x128xf32> to vector<8x7x128xf32>
    %118 = vector.extract_strided_slice %116 {offsets = [0, 1, 0], sizes = [8, 7, 128], strides = [1, 1, 1]} : vector<8x8x128xf32> to vector<8x7x128xf32>
    %119 = arith.maximumf %117, %118 : vector<8x7x128xf32>
    %120 = vector.extract_strided_slice %119 {offsets = [0, 0, 0], sizes = [8, 1, 128], strides = [1, 1, 1]} : vector<8x7x128xf32> to vector<8x1x128xf32>
    %121 = vector.extract_strided_slice %119 {offsets = [0, 2, 0], sizes = [8, 1, 128], strides = [1, 1, 1]} : vector<8x7x128xf32> to vector<8x1x128xf32>
    %122 = vector.extract_strided_slice %119 {offsets = [0, 4, 0], sizes = [8, 1, 128], strides = [1, 1, 1]} : vector<8x7x128xf32> to vector<8x1x128xf32>
    %123 = vector.extract_strided_slice %119 {offsets = [0, 6, 0], sizes = [8, 1, 128], strides = [1, 1, 1]} : vector<8x7x128xf32> to vector<8x1x128xf32>
    %124 = tpu.concatenate %120, %121, %122, %123 in 1 : vector<8x1x128xf32>, vector<8x1x128xf32>, vector<8x1x128xf32>, vector<8x1x128xf32> -> vector<8x4x128xf32>
    %125 = vector.extract_strided_slice %124 {offsets = [0, 0, 0], sizes = [8, 4, 112], strides = [1, 1, 1]} : vector<8x4x128xf32> to vector<8x4x112xf32>
    %126 = vector.extract_strided_slice %124 {offsets = [0, 0, 16], sizes = [8, 4, 112], strides = [1, 1, 1]} : vector<8x4x128xf32> to vector<8x4x112xf32>
    %127 = arith.maximumf %125, %126 : vector<8x4x112xf32>
    %128 = vector.extract_strided_slice %127 {offsets = [0, 0, 0], sizes = [8, 4, 16], strides = [1, 1, 1]} : vector<8x4x112xf32> to vector<8x4x16xf32>
    %129 = vector.extract_strided_slice %127 {offsets = [0, 0, 32], sizes = [8, 4, 16], strides = [1, 1, 1]} : vector<8x4x112xf32> to vector<8x4x16xf32>
    %130 = vector.extract_strided_slice %127 {offsets = [0, 0, 64], sizes = [8, 4, 16], strides = [1, 1, 1]} : vector<8x4x112xf32> to vector<8x4x16xf32>
    %131 = vector.extract_strided_slice %127 {offsets = [0, 0, 96], sizes = [8, 4, 16], strides = [1, 1, 1]} : vector<8x4x112xf32> to vector<8x4x16xf32>
    %132 = tpu.concatenate %128, %129, %130, %131 in 2 : vector<8x4x16xf32>, vector<8x4x16xf32>, vector<8x4x16xf32>, vector<8x4x16xf32> -> vector<8x4x64xf32>
    %cst_45 = arith.constant 0.000000e+00 : f32
    %133 = vector.broadcast %cst_45 : f32 to vector<8x128xf32>
    %134 = vector.extract_strided_slice %132 {offsets = [0, 0, 0], sizes = [8, 1, 64], strides = [1, 1, 1]} : vector<8x4x64xf32> to vector<8x1x64xf32>
    %135 = vector.shape_cast %134 : vector<8x1x64xf32> to vector<8x64xf32>
    %136 = arith.truncf %135 : vector<8x64xf32> to vector<8x64xbf16>
    %c0_46 = arith.constant 0 : index
    %c0_47 = arith.constant 0 : index
    %c0_48 = arith.constant 0 : index
    %137 = vector.load %arg6[%c0_46, %c0_47, %c0_48] : memref<4x64x128xbf16, #tpu.memory_space<vmem>>, vector<1x64x128xbf16>
    %138 = vector.shape_cast %137 : vector<1x64x128xbf16> to vector<64x128xbf16>
    %cst_49 = arith.constant dense<0.000000e+00> : vector<8x128xf32>
    %139 = tpu.matmul %136, %138, %cst_49 {dimension_numbers = #tpu.dot_dimension_numbers<[1], [0], [0], [1], [0, 0, 1, 1], [], []>} : vector<8x64xbf16>, vector<64x128xbf16>, vector<8x128xf32> -> vector<8x128xf32>
    %140 = arith.addf %133, %139 : vector<8x128xf32>
    %141 = vector.extract_strided_slice %132 {offsets = [0, 1, 0], sizes = [8, 1, 64], strides = [1, 1, 1]} : vector<8x4x64xf32> to vector<8x1x64xf32>
    %142 = vector.shape_cast %141 : vector<8x1x64xf32> to vector<8x64xf32>
    %143 = arith.truncf %142 : vector<8x64xf32> to vector<8x64xbf16>
    %c1_50 = arith.constant 1 : index
    %c0_51 = arith.constant 0 : index
    %c0_52 = arith.constant 0 : index
    %144 = vector.load %arg6[%c1_50, %c0_51, %c0_52] : memref<4x64x128xbf16, #tpu.memory_space<vmem>>, vector<1x64x128xbf16>
    %145 = vector.shape_cast %144 : vector<1x64x128xbf16> to vector<64x128xbf16>
    %cst_53 = arith.constant dense<0.000000e+00> : vector<8x128xf32>
    %146 = tpu.matmul %143, %145, %cst_53 {dimension_numbers = #tpu.dot_dimension_numbers<[1], [0], [0], [1], [0, 0, 1, 1], [], []>} : vector<8x64xbf16>, vector<64x128xbf16>, vector<8x128xf32> -> vector<8x128xf32>
    %147 = arith.addf %140, %146 : vector<8x128xf32>
    %148 = vector.extract_strided_slice %132 {offsets = [0, 2, 0], sizes = [8, 1, 64], strides = [1, 1, 1]} : vector<8x4x64xf32> to vector<8x1x64xf32>
    %149 = vector.shape_cast %148 : vector<8x1x64xf32> to vector<8x64xf32>
    %150 = arith.truncf %149 : vector<8x64xf32> to vector<8x64xbf16>
    %c2_54 = arith.constant 2 : index
    %c0_55 = arith.constant 0 : index
    %c0_56 = arith.constant 0 : index
    %151 = vector.load %arg6[%c2_54, %c0_55, %c0_56] : memref<4x64x128xbf16, #tpu.memory_space<vmem>>, vector<1x64x128xbf16>
    %152 = vector.shape_cast %151 : vector<1x64x128xbf16> to vector<64x128xbf16>
    %cst_57 = arith.constant dense<0.000000e+00> : vector<8x128xf32>
    %153 = tpu.matmul %150, %152, %cst_57 {dimension_numbers = #tpu.dot_dimension_numbers<[1], [0], [0], [1], [0, 0, 1, 1], [], []>} : vector<8x64xbf16>, vector<64x128xbf16>, vector<8x128xf32> -> vector<8x128xf32>
    %154 = arith.addf %147, %153 : vector<8x128xf32>
    %155 = vector.extract_strided_slice %132 {offsets = [0, 3, 0], sizes = [8, 1, 64], strides = [1, 1, 1]} : vector<8x4x64xf32> to vector<8x1x64xf32>
    %156 = vector.shape_cast %155 : vector<8x1x64xf32> to vector<8x64xf32>
    %157 = arith.truncf %156 : vector<8x64xf32> to vector<8x64xbf16>
    %c3_58 = arith.constant 3 : index
    %c0_59 = arith.constant 0 : index
    %c0_60 = arith.constant 0 : index
    %158 = vector.load %arg6[%c3_58, %c0_59, %c0_60] : memref<4x64x128xbf16, #tpu.memory_space<vmem>>, vector<1x64x128xbf16>
    %159 = vector.shape_cast %158 : vector<1x64x128xbf16> to vector<64x128xbf16>
    %cst_61 = arith.constant dense<0.000000e+00> : vector<8x128xf32>
    %160 = tpu.matmul %157, %159, %cst_61 {dimension_numbers = #tpu.dot_dimension_numbers<[1], [0], [0], [1], [0, 0, 1, 1], [], []>} : vector<8x64xbf16>, vector<64x128xbf16>, vector<8x128xf32> -> vector<8x128xf32>
    %161 = arith.addf %154, %160 : vector<8x128xf32>
    %c0_62 = arith.constant 0 : index
    %c0_63 = arith.constant 0 : index
    %162 = vector.load %arg7[%c0_62, %c0_63] : memref<1x128xf32, #tpu.memory_space<vmem>>, vector<1x128xf32>
    %163 = vector.broadcast %162 : vector<1x128xf32> to vector<8x128xf32>
    %164 = arith.addf %161, %163 : vector<8x128xf32>
    %cst_64 = arith.constant 0.000000e+00 : f32
    %165 = vector.broadcast %cst_64 : f32 to vector<8x128xf32>
    %166 = arith.maximumf %164, %165 : vector<8x128xf32>
    %167 = vector.shape_cast %166 : vector<8x128xf32> to vector<8x1x128xf32>
    %168 = vector.shape_cast %167 : vector<8x1x128xf32> to vector<8x128xf32>
    %169 = arith.truncf %168 : vector<8x128xf32> to vector<8x128xbf16>
    %c0_65 = arith.constant 0 : index
    %c0_66 = arith.constant 0 : index
    %170 = vector.load %arg8[%c0_65, %c0_66] : memref<128x128xbf16, #tpu.memory_space<vmem>>, vector<128x128xbf16>
    %cst_67 = arith.constant dense<0.000000e+00> : vector<8x128xf32>
    %171 = tpu.matmul %169, %170, %cst_67 {dimension_numbers = #tpu.dot_dimension_numbers<[1], [0], [0], [1], [0, 0, 1, 1], [], []>} : vector<8x128xbf16>, vector<128x128xbf16>, vector<8x128xf32> -> vector<8x128xf32>
    %c0_68 = arith.constant 0 : index
    %c0_69 = arith.constant 0 : index
    %172 = vector.load %arg9[%c0_68, %c0_69] : memref<1x128xf32, #tpu.memory_space<vmem>>, vector<1x128xf32>
    %173 = vector.broadcast %172 : vector<1x128xf32> to vector<8x128xf32>
    %174 = arith.addf %171, %173 : vector<8x128xf32>
    %cst_70 = arith.constant 0.000000e+00 : f32
    %175 = vector.broadcast %cst_70 : f32 to vector<8x128xf32>
    %176 = arith.maximumf %174, %175 : vector<8x128xf32>
    %177 = arith.truncf %176 : vector<8x128xf32> to vector<8x128xbf16>
    %c0_71 = arith.constant 0 : index
    %c0_72 = arith.constant 0 : index
    %178 = vector.load %arg10[%c0_71, %c0_72] : memref<128x128xbf16, #tpu.memory_space<vmem>>, vector<128x128xbf16>
    %cst_73 = arith.constant dense<0.000000e+00> : vector<8x128xf32>
    %179 = tpu.matmul %177, %178, %cst_73 {dimension_numbers = #tpu.dot_dimension_numbers<[1], [0], [0], [1], [0, 0, 1, 1], [], []>} : vector<8x128xbf16>, vector<128x128xbf16>, vector<8x128xf32> -> vector<8x128xf32>
    %c0_74 = arith.constant 0 : index
    %c0_75 = arith.constant 0 : index
    %180 = vector.load %arg11[%c0_74, %c0_75] : memref<1x128xf32, #tpu.memory_space<vmem>>, vector<1x128xf32>
    %181 = vector.broadcast %180 : vector<1x128xf32> to vector<8x128xf32>
    %182 = arith.addf %179, %181 : vector<8x128xf32>
    %c0_76 = arith.constant 0 : index
    %c0_77 = arith.constant 0 : index
    %183 = vector.load %arg12[%c0_76, %c0_77] : memref<8x128xf32, #tpu.memory_space<vmem>>, vector<8x128xf32>
    tpu.vector_store %arg12[%c0_76, %c0_77], %182 {strides = array<i32>} : memref<8x128xf32, #tpu.memory_space<vmem>>, vector<8x128xf32>,
    return
  }
  func.func @transform_0(%arg0: i32) -> (i32, i32, i32) {
    %c0_i32 = arith.constant 0 : i32
    %c0_i32_0 = arith.constant 0 : i32
    %c0_i32_1 = arith.constant 0 : i32
    return %arg0, %c0_i32, %c0_i32_0 : i32, i32, i32
  }
  func.func @transform_1(%arg0: i32) -> (i32, i32, i32) {
    %c0_i32 = arith.constant 0 : i32
    %c0_i32_0 = arith.constant 0 : i32
    %c0_i32_1 = arith.constant 0 : i32
    %c0_i32_2 = arith.constant 0 : i32
    return %c0_i32, %c0_i32_0, %c0_i32_1 : i32, i32, i32
  }
  func.func @transform_2(%arg0: i32) -> (i32, i32) {
    %c0_i32 = arith.constant 0 : i32
    %c0_i32_0 = arith.constant 0 : i32
    %c0_i32_1 = arith.constant 0 : i32
    return %c0_i32, %c0_i32_0 : i32, i32
  }
  func.func @transform_3(%arg0: i32) -> (i32, i32, i32) {
    %c0_i32 = arith.constant 0 : i32
    %c0_i32_0 = arith.constant 0 : i32
    %c0_i32_1 = arith.constant 0 : i32
    %c0_i32_2 = arith.constant 0 : i32
    return %c0_i32, %c0_i32_0, %c0_i32_1 : i32, i32, i32
  }
  func.func @transform_4(%arg0: i32) -> (i32, i32) {
    %c0_i32 = arith.constant 0 : i32
    %c0_i32_0 = arith.constant 0 : i32
    %c0_i32_1 = arith.constant 0 : i32
    return %c0_i32, %c0_i32_0 : i32, i32
  }
  func.func @transform_5(%arg0: i32) -> (i32, i32, i32) {
    %c0_i32 = arith.constant 0 : i32
    %c0_i32_0 = arith.constant 0 : i32
    %c0_i32_1 = arith.constant 0 : i32
    %c0_i32_2 = arith.constant 0 : i32
    return %c0_i32, %c0_i32_0, %c0_i32_1 : i32, i32, i32
  }
  func.func @transform_6(%arg0: i32) -> (i32, i32) {
    %c0_i32 = arith.constant 0 : i32
    %c0_i32_0 = arith.constant 0 : i32
    %c0_i32_1 = arith.constant 0 : i32
    return %c0_i32, %c0_i32_0 : i32, i32
  }
  func.func @transform_7(%arg0: i32) -> (i32, i32) {
    %c0_i32 = arith.constant 0 : i32
    %c0_i32_0 = arith.constant 0 : i32
    %c0_i32_1 = arith.constant 0 : i32
    return %c0_i32, %c0_i32_0 : i32, i32
  }
  func.func @transform_8(%arg0: i32) -> (i32, i32) {
    %c0_i32 = arith.constant 0 : i32
    %c0_i32_0 = arith.constant 0 : i32
    %c0_i32_1 = arith.constant 0 : i32
    return %c0_i32, %c0_i32_0 : i32, i32
  }
  func.func @transform_9(%arg0: i32) -> (i32, i32) {
    %c0_i32 = arith.constant 0 : i32
    %c0_i32_0 = arith.constant 0 : i32
    %c0_i32_1 = arith.constant 0 : i32
    return %c0_i32, %c0_i32_0 : i32, i32
  }
  func.func @transform_10(%arg0: i32) -> (i32, i32) {
    %c0_i32 = arith.constant 0 : i32
    %c0_i32_0 = arith.constant 0 : i32
    %c0_i32_1 = arith.constant 0 : i32
    return %c0_i32, %c0_i32_0 : i32, i32
  }
  func.func @transform_11(%arg0: i32) -> (i32, i32) {
    %c0_i32 = arith.constant 0 : i32
    %c0_i32_0 = arith.constant 0 : i32
    return %arg0, %c0_i32 : i32, i32
  }
}

</mosaic_0001>

<llo_original>
// kernel: lenet_laplace_forward.1
$region0: #{lenet_laplace_forward.1}
  #allocation0 [shape = 'u32[]', space=smem, size = 0x4, offset = 0x4, fixed_abs, tag = 'smem constant byte address 0x4 - core index']
  #allocation1 [shape = 'u32[144,128]{1,0:T(1,128)}', space=vmem, size = 0x12000, scoped, tag = 'internal scratch']
  %s0 = inlined_call_operand.vmem [shape: f32[8,28,28], index: 0, kind: input, shape index: {}]
  %s1 = inlined_call_operand.vmem [shape: bf16[5,28,144], index: 1, kind: input, shape index: {}]
  %s2 = inlined_call_operand.vmem [shape: f32[1,144], index: 2, kind: input, shape index: {}]
  %s3 = inlined_call_operand.vmem [shape: bf16[5,72,128], index: 3, kind: input, shape index: {}]
  %s4 = inlined_call_operand.vmem [shape: f32[1,128], index: 4, kind: input, shape index: {}]
  %s5 = inlined_call_operand.vmem [shape: bf16[4,64,128], index: 5, kind: input, shape index: {}]
  %s6 = inlined_call_operand.vmem [shape: f32[1,128], index: 6, kind: input, shape index: {}]
  %s7 = inlined_call_operand.vmem [shape: bf16[128,128], index: 7, kind: input, shape index: {}]
  %s8 = inlined_call_operand.vmem [shape: f32[1,128], index: 8, kind: input, shape index: {}]
  %s9 = inlined_call_operand.hbm [shape: bf16[128,128], index: 9, kind: input, shape index: {}]
  %s10 = inlined_call_operand.vmem [shape: f32[1,128], index: 10, kind: input, shape index: {}]
  %s11 = inlined_call_operand.vmem [shape: f32[8,128], index: 11, kind: output, shape index: {}]
  %s12 = sld [smem:[#allocation0]]
  $region58: #{lenet_laplace_forward.1} parent=0
    _
  %s14 = ssub.s32 1, %s12
  %s15 = scalar_select 0, %s14, %s12
  $region1: #{lenet_laplace_forward.1} parent=0
    #allocation2 [shape = 'u8[32768]{0}', space=vmem, size = 0x8000, scoped, tag = 'input window, operand 9, single buffered']
    #allocation3 [shape = 's32[1]{0}', space=sflag, size = 0x4, scoped, tag = 'scoped memory for lenet_laplace_forward.1']
    %16 = vsyncpa [#allocation3], 0
    // Predicated region
    $region2: #{lenet_laplace_forward.1} parent=1 // pred_check
      _
    $region3: #{lenet_laplace_forward.1} parent=1 // pred_check_branch
      %18 = sbr.rel (0) target = $region5
    $region4: #{lenet_laplace_forward.1} parent=1 // pred_region
      _
    $region5: #{lenet_laplace_forward.1} parent=1 // pred_fallthru
      _
    // Predicated region
    $region6: #{lenet_laplace_forward.1} parent=1 // pred_check
      _
    $region7: #{lenet_laplace_forward.1} parent=1 // pred_check_branch
      %20 = sbr.rel (0) target = $region9
    $region8: #{lenet_laplace_forward.1} parent=1 // pred_region
      _
    $region9: #{lenet_laplace_forward.1} parent=1 // pred_fallthru
      _
    // Predicated region
    $region10: #{lenet_laplace_forward.1} parent=1 // pred_check
      _
    $region11: #{lenet_laplace_forward.1} parent=1 // pred_check_branch
      %22 = sbr.rel (0) target = $region13
    $region12: #{lenet_laplace_forward.1} parent=1 // pred_region
      _
    $region13: #{lenet_laplace_forward.1} parent=1 // pred_fallthru
      _
    // Predicated region
    $region14: #{lenet_laplace_forward.1} parent=1 // pred_check
      _
    $region15: #{lenet_laplace_forward.1} parent=1 // pred_check_branch
      %24 = sbr.rel (0) target = $region17
    $region16: #{lenet_laplace_forward.1} parent=1 // pred_region
      _
    $region17: #{lenet_laplace_forward.1} parent=1 // pred_fallthru
      _
    // Predicated region
    $region18: #{lenet_laplace_forward.1} parent=1 // pred_check
      _
    $region19: #{lenet_laplace_forward.1} parent=1 // pred_check_branch
      %26 = sbr.rel (0) target = $region21
    $region20: #{lenet_laplace_forward.1} parent=1 // pred_region
      _
    $region21: #{lenet_laplace_forward.1} parent=1 // pred_fallthru
      _
    // Predicated region
    $region22: #{lenet_laplace_forward.1} parent=1 // pred_check
      _
    $region23: #{lenet_laplace_forward.1} parent=1 // pred_check_branch
      %28 = sbr.rel (0) target = $region25
    $region24: #{lenet_laplace_forward.1} parent=1 // pred_region
      _
    $region25: #{lenet_laplace_forward.1} parent=1 // pred_fallthru
      _
    // Predicated region
    $region26: #{lenet_laplace_forward.1} parent=1 // pred_check
      _
    $region27: #{lenet_laplace_forward.1} parent=1 // pred_check_branch
      %30 = sbr.rel (0) target = $region29
    $region28: #{lenet_laplace_forward.1} parent=1 // pred_region
      _
    $region29: #{lenet_laplace_forward.1} parent=1 // pred_fallthru
      _
    // Predicated region
    $region30: #{lenet_laplace_forward.1} parent=1 // pred_check
      _
    $region31: #{lenet_laplace_forward.1} parent=1 // pred_check_branch
      %32 = sbr.rel (0) target = $region33
    $region32: #{lenet_laplace_forward.1} parent=1 // pred_region
      _
    $region33: #{lenet_laplace_forward.1} parent=1 // pred_fallthru
      _
    // Predicated region
    $region34: #{lenet_laplace_forward.1} parent=1 // pred_check
      _
    $region35: #{lenet_laplace_forward.1} parent=1 // pred_check_branch
      %34 = sbr.rel (0) target = $region37
    $region36: #{lenet_laplace_forward.1} parent=1 // pred_region
      _
    $region37: #{lenet_laplace_forward.1} parent=1 // pred_fallthru
      _
    // Predicated region
    $region38: #{lenet_laplace_forward.1} parent=1 // pred_check
      _
    $region39: #{lenet_laplace_forward.1} parent=1 // pred_check_branch
      %36 = sbr.rel (0) target = $region41
    $region40: #{lenet_laplace_forward.1} parent=1 // pred_region
      %s38 = ssub.s32 1024, 1024
      %39 = vsyncadd [#allocation3], %s38
      %s40 = sshll.u32 [#allocation2], 4
      %s41 = int_to_ptr.vmem [resolvable:$true] %s40
      %46 = dma.hbm_to_vmem [thread:$0]  %s9, 1024, %s41, [#allocation3], 64, 64, 4
    $region41: #{lenet_laplace_forward.1} parent=1 // pred_fallthru
      _
    // Predicated region
    $region42: #{lenet_laplace_forward.1} parent=1 // pred_check
      _
    $region43: #{lenet_laplace_forward.1} parent=1 // pred_check_branch
      %48 = sbr.rel (0) target = $region45
    $region44: #{lenet_laplace_forward.1} parent=1 // pred_region
      _
    $region45: #{lenet_laplace_forward.1} parent=1 // pred_fallthru
      _
    // Predicated region
    $region46: #{lenet_laplace_forward.1} parent=1 // pred_check
      _
    $region47: #{lenet_laplace_forward.1} parent=1 // pred_check_branch
      %50 = sbr.rel (0) target = $region49
    $region48: #{lenet_laplace_forward.1} parent=1 // pred_region
      %51 = dma.done [#allocation3], 1024
    $region49: #{lenet_laplace_forward.1} parent=1 // pred_fallthru
      _
    %v53 = vld [vmem:[%s0] sm:$0xff]
    %v54 = vld [vmem:[%s0 + $0x8] sm:$0xff]
    %v55 = vld [vmem:[%s0 + $0x10] sm:$0xff]
    %v56 = vld [vmem:[%s0 + $0x18] sm:$0xf]
    %v57 = vld [vmem:[%s0 + $0x20] sm:$0xff]
    %v58 = vld [vmem:[%s0 + $0x28] sm:$0xff]
    %v59 = vld [vmem:[%s0 + $0x30] sm:$0xff]
    %v60 = vld [vmem:[%s0 + $0x38] sm:$0xf]
    %v61 = vld [vmem:[%s0 + $0x40] sm:$0xff]
    %v62 = vld [vmem:[%s0 + $0x48] sm:$0xff]
    %v63 = vld [vmem:[%s0 + $0x50] sm:$0xff]
    %v64 = vld [vmem:[%s0 + $0x58] sm:$0xf]
    %v65 = vld [vmem:[%s0 + $0x60] sm:$0xff]
    %v66 = vld [vmem:[%s0 + $0x68] sm:$0xff]
    %v67 = vld [vmem:[%s0 + $0x70] sm:$0xff]
    %v68 = vld [vmem:[%s0 + $0x78] sm:$0xf]
    %v69 = vld [vmem:[%s0 + $0x80] sm:$0xff]
    %v70 = vld [vmem:[%s0 + $0x88] sm:$0xff]
    %v71 = vld [vmem:[%s0 + $0x90] sm:$0xff]
    %v72 = vld [vmem:[%s0 + $0x98] sm:$0xf]
    %v73 = vld [vmem:[%s0 + $0xa0] sm:$0xff]
    %v74 = vld [vmem:[%s0 + $0xa8] sm:$0xff]
    %v75 = vld [vmem:[%s0 + $0xb0] sm:$0xff]
    %v76 = vld [vmem:[%s0 + $0xb8] sm:$0xf]
    %v77 = vld [vmem:[%s0 + $0xc0] sm:$0xff]
    %v78 = vld [vmem:[%s0 + $0xc8] sm:$0xff]
    %v79 = vld [vmem:[%s0 + $0xd0] sm:$0xff]
    %v80 = vld [vmem:[%s0 + $0xd8] sm:$0xf]
    %v81 = vld [vmem:[%s0 + $0xe0] sm:$0xff]
    %v82 = vld [vmem:[%s0 + $0xe8] sm:$0xff]
    %v83 = vld [vmem:[%s0 + $0xf0] sm:$0xff]
    %v84 = vld [vmem:[%s0 + $0xf8] sm:$0xf]
    %v85 = vpack.c.bf16 %v54, %v53
    %v86 = vpack.c.bf16 %v57, %v55
    %v87 = vpack.c.bf16 %v59, %v58
    %v88 = vpack.c.bf16 %v62, %v61
    %v89 = vpack.c.bf16 %v65, %v63
    %v90 = vpack.c.bf16 %v67, %v66
    %v91 = vpack.c.bf16 %v70, %v69
    %v92 = vpack.c.bf16 %v73, %v71
    %v93 = vpack.c.bf16 %v75, %v74
    %v94 = vpack.c.bf16 %v78, %v77
    %v95 = vpack.c.bf16 %v81, %v79
    %v96 = vpack.c.bf16 %v83, %v82
    %v97 = vld [vmem:[%s1] sm:$0xff]
    %v98 = vld [vmem:[%s1 + $0x8] sm:$0xff]
    %v99 = vld [vmem:[%s1 + $0x10] sm:$0xff]
    %v100 = vld [vmem:[%s1 + $0x18] sm:$0x33]
    %vm133 = vcmask 1046528
    %v134 = vrot.slane %v53, 1
    %v135 = vrot.slane %v54, 1
    %v136 = vsel %vm133, %v134, %v135
    %v137 = vrot.slane %v55, 1
    %v138 = vsel %vm133, %v135, %v137
    %v139 = vrot.slane %v56, 1
    %v140 = vsel %vm133, %v137, %v139
    %v141 = vrot.slane %v57, 1
    %v142 = vrot.slane %v58, 1
    %v143 = vsel %vm133, %v141, %v142
    %v144 = vrot.slane %v59, 1
    %v145 = vsel %vm133, %v142, %v144
    %v146 = vrot.slane %v60, 1
    %v147 = vsel %vm133, %v144, %v146
    %v148 = vrot.slane %v61, 1
    %v149 = vrot.slane %v62, 1
    %v150 = vsel %vm133, %v148, %v149
    %v151 = vrot.slane %v63, 1
    %v152 = vsel %vm133, %v149, %v151
    %v153 = vrot.slane %v64, 1
    %v154 = vsel %vm133, %v151, %v153
    %v155 = vrot.slane %v65, 1
    %v156 = vrot.slane %v66, 1
    %v157 = vsel %vm133, %v155, %v156
    %v158 = vrot.slane %v67, 1
    %v159 = vsel %vm133, %v156, %v158
    %v160 = vrot.slane %v68, 1
    %v161 = vsel %vm133, %v158, %v160
    %v162 = vrot.slane %v69, 1
    %v163 = vrot.slane %v70, 1
    %v164 = vsel %vm133, %v162, %v163
    %v165 = vrot.slane %v71, 1
    %v166 = vsel %vm133, %v163, %v165
    %v167 = vrot.slane %v72, 1
    %v168 = vsel %vm133, %v165, %v167
    %v169 = vrot.slane %v73, 1
    %v170 = vrot.slane %v74, 1
    %v171 = vsel %vm133, %v169, %v170
    %v172 = vrot.slane %v75, 1
    %v173 = vsel %vm133, %v170, %v172
    %v174 = vrot.slane %v76, 1
    %v175 = vsel %vm133, %v172, %v174
    %v176 = vrot.slane %v77, 1
    %v177 = vrot.slane %v78, 1
    %v178 = vsel %vm133, %v176, %v177
    %v179 = vrot.slane %v79, 1
    %v180 = vsel %vm133, %v177, %v179
    %v181 = vrot.slane %v80, 1
    %v182 = vsel %vm133, %v179, %v181
    %v183 = vrot.slane %v81, 1
    %v184 = vrot.slane %v82, 1
    %v185 = vsel %vm133, %v183, %v184
    %v186 = vrot.slane %v83, 1
    %v187 = vsel %vm133, %v184, %v186
    %v188 = vrot.slane %v84, 1
    %v189 = vsel %vm133, %v186, %v188
    %v214 = vpack.c.bf16 %v138, %v136
    %v215 = vpack.c.bf16 %v143, %v140
    %v216 = vpack.c.bf16 %v147, %v145
    %v217 = vpack.c.bf16 %v152, %v150
    %v218 = vpack.c.bf16 %v157, %v154
    %v219 = vpack.c.bf16 %v161, %v159
    %v220 = vpack.c.bf16 %v166, %v164
    %v221 = vpack.c.bf16 %v171, %v168
    %v222 = vpack.c.bf16 %v175, %v173
    %v223 = vpack.c.bf16 %v180, %v178
    %v224 = vpack.c.bf16 %v185, %v182
    %v225 = vpack.c.bf16 %v189, %v187
    %s226 = scalar_lea.vmem %s1, 32
    %v227 = vld [vmem:[%s226] sm:$0xff]
    %v228 = vld [vmem:[%s226 + $0x8] sm:$0xff]
    %v229 = vld [vmem:[%s226 + $0x10] sm:$0xff]
    %v230 = vld [vmem:[%s226 + $0x18] sm:$0x33]
    %v235 = vunpack.c.l.b16 %v227
    %v236 = vunpack.c.h.b16 %v227
    %v237 = vunpack.c.l.b16 %v228
    %v238 = vunpack.c.h.b16 %v228
    %v239 = vunpack.c.l.b16 %v229
    %v240 = vunpack.c.h.b16 %v229
    %v241 = vunpack.c.l.b16 %v230
    %v242 = vunpack.c.h.b16 %v230
    %v243 = vpack.c.b16 %v237, %v235
    %v244 = vpack.c.b16 %v238, %v236
    %v245 = vpack.c.b16 %v241, %v239
    %v246 = vpack.c.b16 %v242, %v240
    %vm249 = vcmask 228352
    %v251 = vsel %vm249, %v214, 0
    %v254 = vsel %vm249, %v215, 0
    %v257 = vsel %vm249, %v216, 0
    %v260 = vsel %vm249, %v217, 0
    %v263 = vsel %vm249, %v218, 0
    %v266 = vsel %vm249, %v219, 0
    %v269 = vsel %vm249, %v220, 0
    %v272 = vsel %vm249, %v221, 0
    %v275 = vsel %vm249, %v222, 0
    %v278 = vsel %vm249, %v223, 0
    %v281 = vsel %vm249, %v224, 0
    %v284 = vsel %vm249, %v225, 0
    %vm286 = vcmask 1045504
    %v288 = vsel %vm286, %v245, 0
    %v291 = vsel %vm286, %v246, 0
    %293 = vmatprep.subr.bf16.mxu0 %v244
    %294 = vmatpush1.bf16.msra.mxu0 %v243
    %295 = vmatprep.subr.bf16.mxu0 %v291
    %296 = vmatpush1.bf16.msra.mxu0 %v288
    %297 = vmatprep.subr.bf16.mxu0 0
    %298 = vmatpush1.bf16.msra.mxu0 0
    %299 = vmatprep.subr.bf16.mxu0 0
    %300 = vmatpush1.bf16.msra.mxu0 0
    %301 = vmatprep.subr.bf16.mxu0 0
    %302 = vmatpush1.bf16.msra.mxu0 0
    %303 = vmatprep.subr.bf16.mxu0 0
    %304 = vmatpush1.bf16.msra.mxu0 0
    %305 = vmatprep.subr.bf16.mxu0 0
    %306 = vmatpush1.bf16.msra.mxu0 0
    %307 = vmatprep.subr.bf16.mxu0 0
    %308 = vmatpush1.bf16.msra.mxu0 0
    %309 = vmatprep.subr.bf16.mxu0 0
    %310 = vmatpush1.bf16.msra.mxu0 0
    %311 = vmatprep.subr.bf16.mxu0 0
    %312 = vmatpush1.bf16.msra.mxu0 0
    %313 = vmatprep.subr.bf16.mxu0 0
    %314 = vmatpush1.bf16.msra.mxu0 0
    %315 = vmatprep.subr.bf16.mxu0 0
    %316 = vmatpush1.bf16.msra.mxu0 0
    %317 = vmatprep.subr.bf16.mxu0 0
    %318 = vmatpush1.bf16.msra.mxu0 0
    %319 = vmatprep.subr.bf16.mxu0 0
    %320 = vmatpush1.bf16.msra.mxu0 0
    %321 = vmatprep.subr.bf16.mxu0 0
    %322 = vmatpush1.bf16.msra.mxu0 0
    %323 = vmatprep.subr.bf16.mxu0 0
    %324 = vmatpush1.bf16.msra.mxu0 0
    %325 = vmatprep.mubr.bf16.mxu0 0
    %326 = vmatmul.mubr.bf16.gmra.mrb[0].mxu0 %v251
    %v327 = vpop.f32.mrb[0].mxu0
    %v328 = vadd.f32 0.0, %v327
    %v329 = vpop.f32.mrb[0].mxu0
    %v330 = vadd.f32 0.0, %v329
    %v331 = vpop.f32.mrb[0].mxu0
    %v332 = vadd.f32 0.0, %v331
    %v333 = vpop.f32.mrb[0].mxu0
    %v334 = vadd.f32 0.0, %v333
    %335 = vmatprep.mubr.bf16.mxu0 0
    %336 = vmatmul.mubr.bf16.gmra.mrb[0].mxu0 %v254
    %v337 = vpop.f32.mrb[0].mxu0
    %v338 = vadd.f32 0.0, %v337
    %v339 = vpop.f32.mrb[0].mxu0
    %v340 = vadd.f32 0.0, %v339
    %v341 = vpop.f32.mrb[0].mxu0
    %v342 = vadd.f32 0.0, %v341
    %v343 = vpop.f32.mrb[0].mxu0
    %v344 = vadd.f32 0.0, %v343
    %345 = vmatprep.mubr.bf16.mxu0 0
    %346 = vmatmul.mubr.bf16.gmra.mrb[0].mxu0 %v257
    %v347 = vpop.f32.mrb[0].mxu0
    %v348 = vadd.f32 0.0, %v347
    %v349 = vpop.f32.mrb[0].mxu0
    %v350 = vadd.f32 0.0, %v349
    %v351 = vpop.f32.mrb[0].mxu0
    %v352 = vadd.f32 0.0, %v351
    %v353 = vpop.f32.mrb[0].mxu0
    %v354 = vadd.f32 0.0, %v353
    %355 = vmatprep.mubr.bf16.mxu0 0
    %356 = vmatmul.mubr.bf16.gmra.mrb[0].mxu0 %v260
    %v357 = vpop.f32.mrb[0].mxu0
    %v358 = vadd.f32 0.0, %v357
    %v359 = vpop.f32.mrb[0].mxu0
    %v360 = vadd.f32 0.0, %v359
    %v361 = vpop.f32.mrb[0].mxu0
    %v362 = vadd.f32 0.0, %v361
    %v363 = vpop.f32.mrb[0].mxu0
    %v364 = vadd.f32 0.0, %v363
    %365 = vmatprep.mubr.bf16.mxu0 0
    %366 = vmatmul.mubr.bf16.gmra.mrb[0].mxu0 %v263
    %v367 = vpop.f32.mrb[0].mxu0
    %v368 = vadd.f32 0.0, %v367
    %v369 = vpop.f32.mrb[0].mxu0
    %v370 = vadd.f32 0.0, %v369
    %v371 = vpop.f32.mrb[0].mxu0
    %v372 = vadd.f32 0.0, %v371
    %v373 = vpop.f32.mrb[0].mxu0
    %v374 = vadd.f32 0.0, %v373
    %375 = vmatprep.mubr.bf16.mxu0 0
    %376 = vmatmul.mubr.bf16.gmra.mrb[0].mxu0 %v266
    %v377 = vpop.f32.mrb[0].mxu0
    %v378 = vadd.f32 0.0, %v377
    %v379 = vpop.f32.mrb[0].mxu0
    %v380 = vadd.f32 0.0, %v379
    %v381 = vpop.f32.mrb[0].mxu0
    %v382 = vadd.f32 0.0, %v381
    %v383 = vpop.f32.mrb[0].mxu0
    %v384 = vadd.f32 0.0, %v383
    %385 = vmatprep.mubr.bf16.mxu0 0
    %386 = vmatmul.mubr.bf16.gmra.mrb[0].mxu0 %v269
    %v387 = vpop.f32.mrb[0].mxu0
    %v388 = vadd.f32 0.0, %v387
    %v389 = vpop.f32.mrb[0].mxu0
    %v390 = vadd.f32 0.0, %v389
    %v391 = vpop.f32.mrb[0].mxu0
    %v392 = vadd.f32 0.0, %v391
    %v393 = vpop.f32.mrb[0].mxu0
    %v394 = vadd.f32 0.0, %v393
    %395 = vmatprep.mubr.bf16.mxu0 0
    %396 = vmatmul.mubr.bf16.gmra.mrb[0].mxu0 %v272
    %v397 = vpop.f32.mrb[0].mxu0
    %v398 = vadd.f32 0.0, %v397
    %v399 = vpop.f32.mrb[0].mxu0
    %v400 = vadd.f32 0.0, %v399
    %v401 = vpop.f32.mrb[0].mxu0
    %v402 = vadd.f32 0.0, %v401
    %v403 = vpop.f32.mrb[0].mxu0
    %v404 = vadd.f32 0.0, %v403
    %405 = vmatprep.mubr.bf16.mxu0 0
    %406 = vmatmul.mubr.bf16.gmra.mrb[0].mxu0 %v275
    %v407 = vpop.f32.mrb[0].mxu0
    %v408 = vadd.f32 0.0, %v407
    %v409 = vpop.f32.mrb[0].mxu0
    %v410 = vadd.f32 0.0, %v409
    %v411 = vpop.f32.mrb[0].mxu0
    %v412 = vadd.f32 0.0, %v411
    %v413 = vpop.f32.mrb[0].mxu0
    %v414 = vadd.f32 0.0, %v413
    %415 = vmatprep.mubr.bf16.mxu0 0
    %416 = vmatmul.mubr.bf16.gmra.mrb[0].mxu0 %v278
    %v417 = vpop.f32.mrb[0].mxu0
    %v418 = vadd.f32 0.0, %v417
    %v419 = vpop.f32.mrb[0].mxu0
    %v420 = vadd.f32 0.0, %v419
    %v421 = vpop.f32.mrb[0].mxu0
    %v422 = vadd.f32 0.0, %v421
    %v423 = vpop.f32.mrb[0].mxu0
    %v424 = vadd.f32 0.0, %v423
    %425 = vmatprep.mubr.bf16.mxu0 0
    %426 = vmatmul.mubr.bf16.gmra.mrb[0].mxu0 %v281
    %v427 = vpop.f32.mrb[0].mxu0
    %v428 = vadd.f32 0.0, %v427
    %v429 = vpop.f32.mrb[0].mxu0
    %v430 = vadd.f32 0.0, %v429
    %v431 = vpop.f32.mrb[0].mxu0
    %v432 = vadd.f32 0.0, %v431
    %v433 = vpop.f32.mrb[0].mxu0
    %v434 = vadd.f32 0.0, %v433
    %435 = vmatprep.mubr.bf16.mxu0 0
    %436 = vmatmul.mubr.bf16.gmra.mrb[0].mxu0 %v284
    %v437 = vpop.f32.mrb[0].mxu0
    %v438 = vadd.f32 0.0, %v437
    %v439 = vpop.f32.mrb[0].mxu0
    %v440 = vadd.f32 0.0, %v439
    %v441 = vpop.f32.mrb[0].mxu0
    %v442 = vadd.f32 0.0, %v441
    %v443 = vpop.f32.mrb[0].mxu0
    %v444 = vadd.f32 0.0, %v443
    %445 = vdwg.mxu0
    %v450 = vunpack.c.l.b16 %v97
    %v451 = vunpack.c.h.b16 %v97
    %v452 = vunpack.c.l.b16 %v98
    %v453 = vunpack.c.h.b16 %v98
    %v454 = vunpack.c.l.b16 %v99
    %v455 = vunpack.c.h.b16 %v99
    %v456 = vunpack.c.l.b16 %v100
    %v457 = vunpack.c.h.b16 %v100
    %v458 = vpack.c.b16 %v452, %v450
    %v459 = vpack.c.b16 %v453, %v451
    %v460 = vpack.c.b16 %v456, %v454
    %v461 = vpack.c.b16 %v457, %v455
    %v465 = vsel %vm249, %v85, 0
    %v468 = vsel %vm249, %v86, 0
    %v471 = vsel %vm249, %v87, 0
    %v474 = vsel %vm249, %v88, 0
    %v477 = vsel %vm249, %v89, 0
    %v480 = vsel %vm249, %v90, 0
    %v483 = vsel %vm249, %v91, 0
    %v486 = vsel %vm249, %v92, 0
    %v489 = vsel %vm249, %v93, 0
    %v492 = vsel %vm249, %v94, 0
    %v495 = vsel %vm249, %v95, 0
    %v498 = vsel %vm249, %v96, 0
    %v501 = vsel %vm286, %v460, 0
    %v504 = vsel %vm286, %v461, 0
    %506 = vmatprep.subr.bf16.mxu0 %v459
    %507 = vmatpush1.bf16.msra.mxu0 %v458
    %508 = vmatprep.subr.bf16.mxu0 %v504
    %509 = vmatpush1.bf16.msra.mxu0 %v501
    %510 = vmatprep.subr.bf16.mxu0 0
    %511 = vmatpush1.bf16.msra.mxu0 0
    %512 = vmatprep.subr.bf16.mxu0 0
    %513 = vmatpush1.bf16.msra.mxu0 0
    %514 = vmatprep.subr.bf16.mxu0 0
    %515 = vmatpush1.bf16.msra.mxu0 0
    %516 = vmatprep.subr.bf16.mxu0 0
    %517 = vmatpush1.bf16.msra.mxu0 0
    %518 = vmatprep.subr.bf16.mxu0 0
    %519 = vmatpush1.bf16.msra.mxu0 0
    %520 = vmatprep.subr.bf16.mxu0 0
    %521 = vmatpush1.bf16.msra.mxu0 0
    %522 = vmatprep.subr.bf16.mxu0 0
    %523 = vmatpush1.bf16.msra.mxu0 0
    %524 = vmatprep.subr.bf16.mxu0 0
    %525 = vmatpush1.bf16.msra.mxu0 0
    %526 = vmatprep.subr.bf16.mxu0 0
    %527 = vmatpush1.bf16.msra.mxu0 0
    %528 = vmatprep.subr.bf16.mxu0 0
    %529 = vmatpush1.bf16.msra.mxu0 0
    %530 = vmatprep.subr.bf16.mxu0 0
    %531 = vmatpush1.bf16.msra.mxu0 0
    %532 = vmatprep.subr.bf16.mxu0 0
    %533 = vmatpush1.bf16.msra.mxu0 0
    %534 = vmatprep.subr.bf16.mxu0 0
    %535 = vmatpush1.bf16.msra.mxu0 0
    %536 = vmatprep.subr.bf16.mxu0 0
    %537 = vmatpush1.bf16.msra.mxu0 0
    %538 = vmatprep.mubr.bf16.mxu0 0
    %539 = vmatmul.mubr.bf16.gmra.mrb[0].mxu0 %v465
    %v540 = vpop.f32.mrb[0].mxu0
    %v541 = vadd.f32 %v328, %v540
    %v542 = vpop.f32.mrb[0].mxu0
    %v543 = vadd.f32 %v330, %v542
    %v544 = vpop.f32.mrb[0].mxu0
    %v545 = vadd.f32 %v332, %v544
    %v546 = vpop.f32.mrb[0].mxu0
    %v547 = vadd.f32 %v334, %v546
    %548 = vmatprep.mubr.bf16.mxu0 0
    %549 = vmatmul.mubr.bf16.gmra.mrb[0].mxu0 %v468
    %v550 = vpop.f32.mrb[0].mxu0
    %v551 = vadd.f32 %v338, %v550
    %v552 = vpop.f32.mrb[0].mxu0
    %v553 = vadd.f32 %v340, %v552
    %v554 = vpop.f32.mrb[0].mxu0
    %v555 = vadd.f32 %v342, %v554
    %v556 = vpop.f32.mrb[0].mxu0
    %v557 = vadd.f32 %v344, %v556
    %558 = vmatprep.mubr.bf16.mxu0 0
    %559 = vmatmul.mubr.bf16.gmra.mrb[0].mxu0 %v471
    %v560 = vpop.f32.mrb[0].mxu0
    %v561 = vadd.f32 %v348, %v560
    %v562 = vpop.f32.mrb[0].mxu0
    %v563 = vadd.f32 %v350, %v562
    %v564 = vpop.f32.mrb[0].mxu0
    %v565 = vadd.f32 %v352, %v564
    %v566 = vpop.f32.mrb[0].mxu0
    %v567 = vadd.f32 %v354, %v566
    %568 = vmatprep.mubr.bf16.mxu0 0
    %569 = vmatmul.mubr.bf16.gmra.mrb[0].mxu0 %v474
    %v570 = vpop.f32.mrb[0].mxu0
    %v571 = vadd.f32 %v358, %v570
    %v572 = vpop.f32.mrb[0].mxu0
    %v573 = vadd.f32 %v360, %v572
    %v574 = vpop.f32.mrb[0].mxu0
    %v575 = vadd.f32 %v362, %v574
    %v576 = vpop.f32.mrb[0].mxu0
    %v577 = vadd.f32 %v364, %v576
    %578 = vmatprep.mubr.bf16.mxu0 0
    %579 = vmatmul.mubr.bf16.gmra.mrb[0].mxu0 %v477
    %v580 = vpop.f32.mrb[0].mxu0
    %v581 = vadd.f32 %v368, %v580
    %v582 = vpop.f32.mrb[0].mxu0
    %v583 = vadd.f32 %v370, %v582
    %v584 = vpop.f32.mrb[0].mxu0
    %v585 = vadd.f32 %v372, %v584
    %v586 = vpop.f32.mrb[0].mxu0
    %v587 = vadd.f32 %v374, %v586
    %588 = vmatprep.mubr.bf16.mxu0 0
    %589 = vmatmul.mubr.bf16.gmra.mrb[0].mxu0 %v480
    %v590 = vpop.f32.mrb[0].mxu0
    %v591 = vadd.f32 %v378, %v590
    %v592 = vpop.f32.mrb[0].mxu0
    %v593 = vadd.f32 %v380, %v592
    %v594 = vpop.f32.mrb[0].mxu0
    %v595 = vadd.f32 %v382, %v594
    %v596 = vpop.f32.mrb[0].mxu0
    %v597 = vadd.f32 %v384, %v596
    %598 = vmatprep.mubr.bf16.mxu0 0
    %599 = vmatmul.mubr.bf16.gmra.mrb[0].mxu0 %v483
    %v600 = vpop.f32.mrb[0].mxu0
    %v601 = vadd.f32 %v388, %v600
    %v602 = vpop.f32.mrb[0].mxu0
    %v603 = vadd.f32 %v390, %v602
    %v604 = vpop.f32.mrb[0].mxu0
    %v605 = vadd.f32 %v392, %v604
    %v606 = vpop.f32.mrb[0].mxu0
    %v607 = vadd.f32 %v394, %v606
    %608 = vmatprep.mubr.bf16.mxu0 0
    %609 = vmatmul.mubr.bf16.gmra.mrb[0].mxu0 %v486
    %v610 = vpop.f32.mrb[0].mxu0
    %v611 = vadd.f32 %v398, %v610
    %v612 = vpop.f32.mrb[0].mxu0
    %v613 = vadd.f32 %v400, %v612
    %v614 = vpop.f32.mrb[0].mxu0
    %v615 = vadd.f32 %v402, %v614
    %v616 = vpop.f32.mrb[0].mxu0
    %v617 = vadd.f32 %v404, %v616
    %618 = vmatprep.mubr.bf16.mxu0 0
    %619 = vmatmul.mubr.bf16.gmra.mrb[0].mxu0 %v489
    %v620 = vpop.f32.mrb[0].mxu0
    %v621 = vadd.f32 %v408, %v620
    %v622 = vpop.f32.mrb[0].mxu0
    %v623 = vadd.f32 %v410, %v622
    %v624 = vpop.f32.mrb[0].mxu0
    %v625 = vadd.f32 %v412, %v624
    %v626 = vpop.f32.mrb[0].mxu0
    %v627 = vadd.f32 %v414, %v626
    %628 = vmatprep.mubr.bf16.mxu0 0
    %629 = vmatmul.mubr.bf16.gmra.mrb[0].mxu0 %v492
    %v630 = vpop.f32.mrb[0].mxu0
    %v631 = vadd.f32 %v418, %v630
    %v632 = vpop.f32.mrb[0].mxu0
    %v633 = vadd.f32 %v420, %v632
    %v634 = vpop.f32.mrb[0].mxu0
    %v635 = vadd.f32 %v422, %v634
    %v636 = vpop.f32.mrb[0].mxu0
    %v637 = vadd.f32 %v424, %v636
    %638 = vmatprep.mubr.bf16.mxu0 0
    %639 = vmatmul.mubr.bf16.gmra.mrb[0].mxu0 %v495
    %v640 = vpop.f32.mrb[0].mxu0
    %v641 = vadd.f32 %v428, %v640
    %v642 = vpop.f32.mrb[0].mxu0
    %v643 = vadd.f32 %v430, %v642
    %v644 = vpop.f32.mrb[0].mxu0
    %v645 = vadd.f32 %v432, %v644
    %v646 = vpop.f32.mrb[0].mxu0
    %v647 = vadd.f32 %v434, %v646
    %648 = vmatprep.mubr.bf16.mxu0 0
    %649 = vmatmul.mubr.bf16.gmra.mrb[0].mxu0 %v498
    %v650 = vpop.f32.mrb[0].mxu0
    %v651 = vadd.f32 %v438, %v650
    %v652 = vpop.f32.mrb[0].mxu0
    %v653 = vadd.f32 %v440, %v652
    %v654 = vpop.f32.mrb[0].mxu0
    %v655 = vadd.f32 %v442, %v654
    %v656 = vpop.f32.mrb[0].mxu0
    %v657 = vadd.f32 %v444, %v656
    %658 = vdwg.mxu0
    %v659 = vrot.slane %v53, 2
    %v660 = vrot.slane %v54, 2
    %v661 = vsel %vm286, %v659, %v660
    %v662 = vrot.slane %v55, 2
    %v663 = vsel %vm286, %v660, %v662
    %v664 = vrot.slane %v56, 2
    %v665 = vsel %vm286, %v662, %v664
    %v666 = vrot.slane %v57, 2
    %v667 = vrot.slane %v58, 2
    %v668 = vsel %vm286, %v666, %v667
    %v669 = vrot.slane %v59, 2
    %v670 = vsel %vm286, %v667, %v669
    %v671 = vrot.slane %v60, 2
    %v672 = vsel %vm286, %v669, %v671
    %v673 = vrot.slane %v61, 2
    %v674 = vrot.slane %v62, 2
    %v675 = vsel %vm286, %v673, %v674
    %v676 = vrot.slane %v63, 2
    %v677 = vsel %vm286, %v674, %v676
    %v678 = vrot.slane %v64, 2
    %v679 = vsel %vm286, %v676, %v678
    %v680 = vrot.slane %v65, 2
    %v681 = vrot.slane %v66, 2
    %v682 = vsel %vm286, %v680, %v681
    %v683 = vrot.slane %v67, 2
    %v684 = vsel %vm286, %v681, %v683
    %v685 = vrot.slane %v68, 2
    %v686 = vsel %vm286, %v683, %v685
    %v687 = vrot.slane %v69, 2
    %v688 = vrot.slane %v70, 2
    %v689 = vsel %vm286, %v687, %v688
    %v690 = vrot.slane %v71, 2
    %v691 = vsel %vm286, %v688, %v690
    %v692 = vrot.slane %v72, 2
    %v693 = vsel %vm286, %v690, %v692
    %v694 = vrot.slane %v73, 2
    %v695 = vrot.slane %v74, 2
    %v696 = vsel %vm286, %v694, %v695
    %v697 = vrot.slane %v75, 2
    %v698 = vsel %vm286, %v695, %v697
    %v699 = vrot.slane %v76, 2
    %v700 = vsel %vm286, %v697, %v699
    %v701 = vrot.slane %v77, 2
    %v702 = vrot.slane %v78, 2
    %v703 = vsel %vm286, %v701, %v702
    %v704 = vrot.slane %v79, 2
    %v705 = vsel %vm286, %v702, %v704
    %v706 = vrot.slane %v80, 2
    %v707 = vsel %vm286, %v704, %v706
    %v708 = vrot.slane %v81, 2
    %v709 = vrot.slane %v82, 2
    %v710 = vsel %vm286, %v708, %v709
    %v711 = vrot.slane %v83, 2
    %v712 = vsel %vm286, %v709, %v711
    %v713 = vrot.slane %v84, 2
    %v714 = vsel %vm286, %v711, %v713
    %v739 = vpack.c.bf16 %v663, %v661
    %v740 = vpack.c.bf16 %v668, %v665
    %v741 = vpack.c.bf16 %v672, %v670
    %v742 = vpack.c.bf16 %v677, %v675
    %v743 = vpack.c.bf16 %v682, %v679
    %v744 = vpack.c.bf16 %v686, %v684
    %v745 = vpack.c.bf16 %v691, %v689
    %v746 = vpack.c.bf16 %v696, %v693
    %v747 = vpack.c.bf16 %v700, %v698
    %v748 = vpack.c.bf16 %v705, %v703
    %v749 = vpack.c.bf16 %v710, %v707
    %v750 = vpack.c.bf16 %v714, %v712
    %s751 = scalar_lea.vmem %s1, 64
    %v752 = vld [vmem:[%s751] sm:$0xff]
    %v753 = vld [vmem:[%s751 + $0x8] sm:$0xff]
    %v754 = vld [vmem:[%s751 + $0x10] sm:$0xff]
    %v755 = vld [vmem:[%s751 + $0x18] sm:$0x33]
    %v760 = vunpack.c.l.b16 %v752
    %v761 = vunpack.c.h.b16 %v752
    %v762 = vunpack.c.l.b16 %v753
    %v763 = vunpack.c.h.b16 %v753
    %v764 = vunpack.c.l.b16 %v754
    %v765 = vunpack.c.h.b16 %v754
    %v766 = vunpack.c.l.b16 %v755
    %v767 = vunpack.c.h.b16 %v755
    %v768 = vpack.c.b16 %v762, %v760
    %v769 = vpack.c.b16 %v763, %v761
    %v770 = vpack.c.b16 %v766, %v764
    %v771 = vpack.c.b16 %v767, %v765
    %v775 = vsel %vm249, %v739, 0
    %v778 = vsel %vm249, %v740, 0
    %v781 = vsel %vm249, %v741, 0
    %v784 = vsel %vm249, %v742, 0
    %v787 = vsel %vm249, %v743, 0
    %v790 = vsel %vm249, %v744, 0
    %v793 = vsel %vm249, %v745, 0
    %v796 = vsel %vm249, %v746, 0
    %v799 = vsel %vm249, %v747, 0
    %v802 = vsel %vm249, %v748, 0
    %v805 = vsel %vm249, %v749, 0
    %v808 = vsel %vm249, %v750, 0
    %v811 = vsel %vm286, %v770, 0
    %v814 = vsel %vm286, %v771, 0
    %816 = vmatprep.subr.bf16.mxu0 %v769
    %817 = vmatpush1.bf16.msra.mxu0 %v768
    %818 = vmatprep.subr.bf16.mxu0 %v814
    %819 = vmatpush1.bf16.msra.mxu0 %v811
    %820 = vmatprep.subr.bf16.mxu0 0
    %821 = vmatpush1.bf16.msra.mxu0 0
    %822 = vmatprep.subr.bf16.mxu0 0
    %823 = vmatpush1.bf16.msra.mxu0 0
    %824 = vmatprep.subr.bf16.mxu0 0
    %825 = vmatpush1.bf16.msra.mxu0 0
    %826 = vmatprep.subr.bf16.mxu0 0
    %827 = vmatpush1.bf16.msra.mxu0 0
    %828 = vmatprep.subr.bf16.mxu0 0
    %829 = vmatpush1.bf16.msra.mxu0 0
    %830 = vmatprep.subr.bf16.mxu0 0
    %831 = vmatpush1.bf16.msra.mxu0 0
    %832 = vmatprep.subr.bf16.mxu0 0
    %833 = vmatpush1.bf16.msra.mxu0 0
    %834 = vmatprep.subr.bf16.mxu0 0
    %835 = vmatpush1.bf16.msra.mxu0 0
    %836 = vmatprep.subr.bf16.mxu0 0
    %837 = vmatpush1.bf16.msra.mxu0 0
    %838 = vmatprep.subr.bf16.mxu0 0
    %839 = vmatpush1.bf16.msra.mxu0 0
    %840 = vmatprep.subr.bf16.mxu0 0
    %841 = vmatpush1.bf16.msra.mxu0 0
    %842 = vmatprep.subr.bf16.mxu0 0
    %843 = vmatpush1.bf16.msra.mxu0 0
    %844 = vmatprep.subr.bf16.mxu0 0
    %845 = vmatpush1.bf16.msra.mxu0 0
    %846 = vmatprep.subr.bf16.mxu0 0
    %847 = vmatpush1.bf16.msra.mxu0 0
    %848 = vmatprep.mubr.bf16.mxu0 0
    %849 = vmatmul.mubr.bf16.gmra.mrb[0].mxu0 %v775
    %v850 = vpop.f32.mrb[0].mxu0
    %v851 = vadd.f32 0.0, %v850
    %v852 = vpop.f32.mrb[0].mxu0
    %v853 = vadd.f32 0.0, %v852
    %v854 = vpop.f32.mrb[0].mxu0
    %v855 = vadd.f32 0.0, %v854
    %v856 = vpop.f32.mrb[0].mxu0
    %v857 = vadd.f32 0.0, %v856
    %858 = vmatprep.mubr.bf16.mxu0 0
    %859 = vmatmul.mubr.bf16.gmra.mrb[0].mxu0 %v778
    %v860 = vpop.f32.mrb[0].mxu0
    %v861 = vadd.f32 0.0, %v860
    %v862 = vpop.f32.mrb[0].mxu0
    %v863 = vadd.f32 0.0, %v862
    %v864 = vpop.f32.mrb[0].mxu0
    %v865 = vadd.f32 0.0, %v864
    %v866 = vpop.f32.mrb[0].mxu0
    %v867 = vadd.f32 0.0, %v866
    %868 = vmatprep.mubr.bf16.mxu0 0
    %869 = vmatmul.mubr.bf16.gmra.mrb[0].mxu0 %v781
    %v870 = vpop.f32.mrb[0].mxu0
    %v871 = vadd.f32 0.0, %v870
    %v872 = vpop.f32.mrb[0].mxu0
    %v873 = vadd.f32 0.0, %v872
    %v874 = vpop.f32.mrb[0].mxu0
    %v875 = vadd.f32 0.0, %v874
    %v876 = vpop.f32.mrb[0].mxu0
    %v877 = vadd.f32 0.0, %v876
    %878 = vmatprep.mubr.bf16.mxu0 0
    %879 = vmatmul.mubr.bf16.gmra.mrb[0].mxu0 %v784
    %v880 = vpop.f32.mrb[0].mxu0
    %v881 = vadd.f32 0.0, %v880
    %v882 = vpop.f32.mrb[0].mxu0
    %v883 = vadd.f32 0.0, %v882
    %v884 = vpop.f32.mrb[0].mxu0
    %v885 = vadd.f32 0.0, %v884
    %v886 = vpop.f32.mrb[0].mxu0
    %v887 = vadd.f32 0.0, %v886
    %888 = vmatprep.mubr.bf16.mxu0 0
    %889 = vmatmul.mubr.bf16.gmra.mrb[0].mxu0 %v787
    %v890 = vpop.f32.mrb[0].mxu0
    %v891 = vadd.f32 0.0, %v890
    %v892 = vpop.f32.mrb[0].mxu0
    %v893 = vadd.f32 0.0, %v892
    %v894 = vpop.f32.mrb[0].mxu0
    %v895 = vadd.f32 0.0, %v894
    %v896 = vpop.f32.mrb[0].mxu0
    %v897 = vadd.f32 0.0, %v896
    %898 = vmatprep.mubr.bf16.mxu0 0
    %899 = vmatmul.mubr.bf16.gmra.mrb[0].mxu0 %v790
    %v900 = vpop.f32.mrb[0].mxu0
    %v901 = vadd.f32 0.0, %v900
    %v902 = vpop.f32.mrb[0].mxu0
    %v903 = vadd.f32 0.0, %v902
    %v904 = vpop.f32.mrb[0].mxu0
    %v905 = vadd.f32 0.0, %v904
    %v906 = vpop.f32.mrb[0].mxu0
    %v907 = vadd.f32 0.0, %v906
    %908 = vmatprep.mubr.bf16.mxu0 0
    %909 = vmatmul.mubr.bf16.gmra.mrb[0].mxu0 %v793
    %v910 = vpop.f32.mrb[0].mxu0
    %v911 = vadd.f32 0.0, %v910
    %v912 = vpop.f32.mrb[0].mxu0
    %v913 = vadd.f32 0.0, %v912
    %v914 = vpop.f32.mrb[0].mxu0
    %v915 = vadd.f32 0.0, %v914
    %v916 = vpop.f32.mrb[0].mxu0
    %v917 = vadd.f32 0.0, %v916
    %918 = vmatprep.mubr.bf16.mxu0 0
    %919 = vmatmul.mubr.bf16.gmra.mrb[0].mxu0 %v796
    %v920 = vpop.f32.mrb[0].mxu0
    %v921 = vadd.f32 0.0, %v920
    %v922 = vpop.f32.mrb[0].mxu0
    %v923 = vadd.f32 0.0, %v922
    %v924 = vpop.f32.mrb[0].mxu0
    %v925 = vadd.f32 0.0, %v924
    %v926 = vpop.f32.mrb[0].mxu0
    %v927 = vadd.f32 0.0, %v926
    %928 = vmatprep.mubr.bf16.mxu0 0
    %929 = vmatmul.mubr.bf16.gmra.mrb[0].mxu0 %v799
    %v930 = vpop.f32.mrb[0].mxu0
    %v931 = vadd.f32 0.0, %v930
    %v932 = vpop.f32.mrb[0].mxu0
    %v933 = vadd.f32 0.0, %v932
    %v934 = vpop.f32.mrb[0].mxu0
    %v935 = vadd.f32 0.0, %v934
    %v936 = vpop.f32.mrb[0].mxu0
    %v937 = vadd.f32 0.0, %v936
    %938 = vmatprep.mubr.bf16.mxu0 0
    %939 = vmatmul.mubr.bf16.gmra.mrb[0].mxu0 %v802
    %v940 = vpop.f32.mrb[0].mxu0
    %v941 = vadd.f32 0.0, %v940
    %v942 = vpop.f32.mrb[0].mxu0
    %v943 = vadd.f32 0.0, %v942
    %v944 = vpop.f32.mrb[0].mxu0
    %v945 = vadd.f32 0.0, %v944
    %v946 = vpop.f32.mrb[0].mxu0
    %v947 = vadd.f32 0.0, %v946
    %948 = vmatprep.mubr.bf16.mxu0 0
    %949 = vmatmul.mubr.bf16.gmra.mrb[0].mxu0 %v805
    %v950 = vpop.f32.mrb[0].mxu0
    %v951 = vadd.f32 0.0, %v950
    %v952 = vpop.f32.mrb[0].mxu0
    %v953 = vadd.f32 0.0, %v952
    %v954 = vpop.f32.mrb[0].mxu0
    %v955 = vadd.f32 0.0, %v954
    %v956 = vpop.f32.mrb[0].mxu0
    %v957 = vadd.f32 0.0, %v956
    %958 = vmatprep.mubr.bf16.mxu0 0
    %959 = vmatmul.mubr.bf16.gmra.mrb[0].mxu0 %v808
    %v960 = vpop.f32.mrb[0].mxu0
    %v961 = vadd.f32 0.0, %v960
    %v962 = vpop.f32.mrb[0].mxu0
    %v963 = vadd.f32 0.0, %v962
    %v964 = vpop.f32.mrb[0].mxu0
    %v965 = vadd.f32 0.0, %v964
    %v966 = vpop.f32.mrb[0].mxu0
    %v967 = vadd.f32 0.0, %v966
    %968 = vdwg.mxu0
    %v969 = vadd.f32 %v541, %v851
    %v970 = vadd.f32 %v543, %v853
    %v971 = vadd.f32 %v545, %v855
    %v972 = vadd.f32 %v547, %v857
    %v973 = vadd.f32 %v551, %v861
    %v974 = vadd.f32 %v553, %v863
    %v975 = vadd.f32 %v555, %v865
    %v976 = vadd.f32 %v557, %v867
    %v977 = vadd.f32 %v561, %v871
    %v978 = vadd.f32 %v563, %v873
    %v979 = vadd.f32 %v565, %v875
    %v980 = vadd.f32 %v567, %v877
    %v981 = vadd.f32 %v571, %v881
    %v982 = vadd.f32 %v573, %v883
    %v983 = vadd.f32 %v575, %v885
    %v984 = vadd.f32 %v577, %v887
    %v985 = vadd.f32 %v581, %v891
    %v986 = vadd.f32 %v583, %v893
    %v987 = vadd.f32 %v585, %v895
    %v988 = vadd.f32 %v587, %v897
    %v989 = vadd.f32 %v591, %v901
    %v990 = vadd.f32 %v593, %v903
    %v991 = vadd.f32 %v595, %v905
    %v992 = vadd.f32 %v597, %v907
    %v993 = vadd.f32 %v601, %v911
    %v994 = vadd.f32 %v603, %v913
    %v995 = vadd.f32 %v605, %v915
    %v996 = vadd.f32 %v607, %v917
    %v997 = vadd.f32 %v611, %v921
    %v998 = vadd.f32 %v613, %v923
    %v999 = vadd.f32 %v615, %v925
    %v1000 = vadd.f32 %v617, %v927
    %v1001 = vadd.f32 %v621, %v931
    %v1002 = vadd.f32 %v623, %v933
    %v1003 = vadd.f32 %v625, %v935
    %v1004 = vadd.f32 %v627, %v937
    %v1005 = vadd.f32 %v631, %v941
    %v1006 = vadd.f32 %v633, %v943
    %v1007 = vadd.f32 %v635, %v945
    %v1008 = vadd.f32 %v637, %v947
    %v1009 = vadd.f32 %v641, %v951
    %v1010 = vadd.f32 %v643, %v953
    %v1011 = vadd.f32 %v645, %v955
    %v1012 = vadd.f32 %v647, %v957
    %v1013 = vadd.f32 %v651, %v961
    %v1014 = vadd.f32 %v653, %v963
    %v1015 = vadd.f32 %v655, %v965
    %v1016 = vadd.f32 %v657, %v967
    %vm1017 = vcmask 1044480
    %v1018 = vrot.slane %v53, 3
    %v1019 = vrot.slane %v54, 3
    %v1020 = vsel %vm1017, %v1018, %v1019
    %v1021 = vrot.slane %v55, 3
    %v1022 = vsel %vm1017, %v1019, %v1021
    %v1023 = vrot.slane %v56, 3
    %v1024 = vsel %vm1017, %v1021, %v1023
    %v1025 = vrot.slane %v57, 3
    %v1026 = vrot.slane %v58, 3
    %v1027 = vsel %vm1017, %v1025, %v1026
    %v1028 = vrot.slane %v59, 3
    %v1029 = vsel %vm1017, %v1026, %v1028
    %v1030 = vrot.slane %v60, 3
    %v1031 = vsel %vm1017, %v1028, %v1030
    %v1032 = vrot.slane %v61, 3
    %v1033 = vrot.slane %v62, 3
    %v1034 = vsel %vm1017, %v1032, %v1033
    %v1035 = vrot.slane %v63, 3
    %v1036 = vsel %vm1017, %v1033, %v1035
    %v1037 = vrot.slane %v64, 3
    %v1038 = vsel %vm1017, %v1035, %v1037
    %v1039 = vrot.slane %v65, 3
    %v1040 = vrot.slane %v66, 3
    %v1041 = vsel %vm1017, %v1039, %v1040
    %v1042 = vrot.slane %v67, 3
    %v1043 = vsel %vm1017, %v1040, %v1042
    %v1044 = vrot.slane %v68, 3
    %v1045 = vsel %vm1017, %v1042, %v1044
    %v1046 = vrot.slane %v69, 3
    %v1047 = vrot.slane %v70, 3
    %v1048 = vsel %vm1017, %v1046, %v1047
    %v1049 = vrot.slane %v71, 3
    %v1050 = vsel %vm1017, %v1047, %v1049
    %v1051 = vrot.slane %v72, 3
    %v1052 = vsel %vm1017, %v1049, %v1051
    %v1053 = vrot.slane %v73, 3
    %v1054 = vrot.slane %v74, 3
    %v1055 = vsel %vm1017, %v1053, %v1054
    %v1056 = vrot.slane %v75, 3
    %v1057 = vsel %vm1017, %v1054, %v1056
    %v1058 = vrot.slane %v76, 3
    %v1059 = vsel %vm1017, %v1056, %v1058
    %v1060 = vrot.slane %v77, 3
    %v1061 = vrot.slane %v78, 3
    %v1062 = vsel %vm1017, %v1060, %v1061
    %v1063 = vrot.slane %v79, 3
    %v1064 = vsel %vm1017, %v1061, %v1063
    %v1065 = vrot.slane %v80, 3
    %v1066 = vsel %vm1017, %v1063, %v1065
    %v1067 = vrot.slane %v81, 3
    %v1068 = vrot.slane %v82, 3
    %v1069 = vsel %vm1017, %v1067, %v1068
    %v1070 = vrot.slane %v83, 3
    %v1071 = vsel %vm1017, %v1068, %v1070
    %v1072 = vrot.slane %v84, 3
    %v1073 = vsel %vm1017, %v1070, %v1072
    %v1098 = vpack.c.bf16 %v1022, %v1020
    %v1099 = vpack.c.bf16 %v1027, %v1024
    %v1100 = vpack.c.bf16 %v1031, %v1029
    %v1101 = vpack.c.bf16 %v1036, %v1034
    %v1102 = vpack.c.bf16 %v1041, %v1038
    %v1103 = vpack.c.bf16 %v1045, %v1043
    %v1104 = vpack.c.bf16 %v1050, %v1048
    %v1105 = vpack.c.bf16 %v1055, %v1052
    %v1106 = vpack.c.bf16 %v1059, %v1057
    %v1107 = vpack.c.bf16 %v1064, %v1062
    %v1108 = vpack.c.bf16 %v1069, %v1066
    %v1109 = vpack.c.bf16 %v1073, %v1071
    %s1110 = scalar_lea.vmem %s1, 96
    %v1111 = vld [vmem:[%s1110] sm:$0xff]
    %v1112 = vld [vmem:[%s1110 + $0x8] sm:$0xff]
    %v1113 = vld [vmem:[%s1110 + $0x10] sm:$0xff]
    %v1114 = vld [vmem:[%s1110 + $0x18] sm:$0x33]
    %v1119 = vunpack.c.l.b16 %v1111
    %v1120 = vunpack.c.h.b16 %v1111
    %v1121 = vunpack.c.l.b16 %v1112
    %v1122 = vunpack.c.h.b16 %v1112
    %v1123 = vunpack.c.l.b16 %v1113
    %v1124 = vunpack.c.h.b16 %v1113
    %v1125 = vunpack.c.l.b16 %v1114
    %v1126 = vunpack.c.h.b16 %v1114
    %v1127 = vpack.c.b16 %v1121, %v1119
    %v1128 = vpack.c.b16 %v1122, %v1120
    %v1129 = vpack.c.b16 %v1125, %v1123
    %v1130 = vpack.c.b16 %v1126, %v1124
    %v1134 = vsel %vm249, %v1098, 0
    %v1137 = vsel %vm249, %v1099, 0
    %v1140 = vsel %vm249, %v1100, 0
    %v1143 = vsel %vm249, %v1101, 0
    %v1146 = vsel %vm249, %v1102, 0
    %v1149 = vsel %vm249, %v1103, 0
    %v1152 = vsel %vm249, %v1104, 0
    %v1155 = vsel %vm249, %v1105, 0
    %v1158 = vsel %vm249, %v1106, 0
    %v1161 = vsel %vm249, %v1107, 0
    %v1164 = vsel %vm249, %v1108, 0
    %v1167 = vsel %vm249, %v1109, 0
    %v1170 = vsel %vm286, %v1129, 0
    %v1173 = vsel %vm286, %v1130, 0
    %1175 = vmatprep.subr.bf16.mxu0 %v1128
    %1176 = vmatpush1.bf16.msra.mxu0 %v1127
    %1177 = vmatprep.subr.bf16.mxu0 %v1173
    %1178 = vmatpush1.bf16.msra.mxu0 %v1170
    %1179 = vmatprep.subr.bf16.mxu0 0
    %1180 = vmatpush1.bf16.msra.mxu0 0
    %1181 = vmatprep.subr.bf16.mxu0 0
    %1182 = vmatpush1.bf16.msra.mxu0 0
    %1183 = vmatprep.subr.bf16.mxu0 0
    %1184 = vmatpush1.bf16.msra.mxu0 0
    %1185 = vmatprep.subr.bf16.mxu0 0
    %1186 = vmatpush1.bf16.msra.mxu0 0
    %1187 = vmatprep.subr.bf16.mxu0 0
    %1188 = vmatpush1.bf16.msra.mxu0 0
    %1189 = vmatprep.subr.bf16.mxu0 0
    %1190 = vmatpush1.bf16.msra.mxu0 0
    %1191 = vmatprep.subr.bf16.mxu0 0
    %1192 = vmatpush1.bf16.msra.mxu0 0
    %1193 = vmatprep.subr.bf16.mxu0 0
    %1194 = vmatpush1.bf16.msra.mxu0 0
    %1195 = vmatprep.subr.bf16.mxu0 0
    %1196 = vmatpush1.bf16.msra.mxu0 0
    %1197 = vmatprep.subr.bf16.mxu0 0
    %1198 = vmatpush1.bf16.msra.mxu0 0
    %1199 = vmatprep.subr.bf16.mxu0 0
    %1200 = vmatpush1.bf16.msra.mxu0 0
    %1201 = vmatprep.subr.bf16.mxu0 0
    %1202 = vmatpush1.bf16.msra.mxu0 0
    %1203 = vmatprep.subr.bf16.mxu0 0
    %1204 = vmatpush1.bf16.msra.mxu0 0
    %1205 = vmatprep.subr.bf16.mxu0 0
    %1206 = vmatpush1.bf16.msra.mxu0 0
    %1207 = vmatprep.mubr.bf16.mxu0 0
    %1208 = vmatmul.mubr.bf16.gmra.mrb[0].mxu0 %v1134
    %v1209 = vpop.f32.mrb[0].mxu0
    %v1210 = vadd.f32 0.0, %v1209
    %v1211 = vpop.f32.mrb[0].mxu0
    %v1212 = vadd.f32 0.0, %v1211
    %v1213 = vpop.f32.mrb[0].mxu0
    %v1214 = vadd.f32 0.0, %v1213
    %v1215 = vpop.f32.mrb[0].mxu0
    %v1216 = vadd.f32 0.0, %v1215
    %1217 = vmatprep.mubr.bf16.mxu0 0
    %1218 = vmatmul.mubr.bf16.gmra.mrb[0].mxu0 %v1137
    %v1219 = vpop.f32.mrb[0].mxu0
    %v1220 = vadd.f32 0.0, %v1219
    %v1221 = vpop.f32.mrb[0].mxu0
    %v1222 = vadd.f32 0.0, %v1221
    %v1223 = vpop.f32.mrb[0].mxu0
    %v1224 = vadd.f32 0.0, %v1223
    %v1225 = vpop.f32.mrb[0].mxu0
    %v1226 = vadd.f32 0.0, %v1225
    %1227 = vmatprep.mubr.bf16.mxu0 0
    %1228 = vmatmul.mubr.bf16.gmra.mrb[0].mxu0 %v1140
    %v1229 = vpop.f32.mrb[0].mxu0
    %v1230 = vadd.f32 0.0, %v1229
    %v1231 = vpop.f32.mrb[0].mxu0
    %v1232 = vadd.f32 0.0, %v1231
    %v1233 = vpop.f32.mrb[0].mxu0
    %v1234 = vadd.f32 0.0, %v1233
    %v1235 = vpop.f32.mrb[0].mxu0
    %v1236 = vadd.f32 0.0, %v1235
    %1237 = vmatprep.mubr.bf16.mxu0 0
    %1238 = vmatmul.mubr.bf16.gmra.mrb[0].mxu0 %v1143
    %v1239 = vpop.f32.mrb[0].mxu0
    %v1240 = vadd.f32 0.0, %v1239
    %v1241 = vpop.f32.mrb[0].mxu0
    %v1242 = vadd.f32 0.0, %v1241
    %v1243 = vpop.f32.mrb[0].mxu0
    %v1244 = vadd.f32 0.0, %v1243
    %v1245 = vpop.f32.mrb[0].mxu0
    %v1246 = vadd.f32 0.0, %v1245
    %1247 = vmatprep.mubr.bf16.mxu0 0
    %1248 = vmatmul.mubr.bf16.gmra.mrb[0].mxu0 %v1146
    %v1249 = vpop.f32.mrb[0].mxu0
    %v1250 = vadd.f32 0.0, %v1249
    %v1251 = vpop.f32.mrb[0].mxu0
    %v1252 = vadd.f32 0.0, %v1251
    %v1253 = vpop.f32.mrb[0].mxu0
    %v1254 = vadd.f32 0.0, %v1253
    %v1255 = vpop.f32.mrb[0].mxu0
    %v1256 = vadd.f32 0.0, %v1255
    %1257 = vmatprep.mubr.bf16.mxu0 0
    %1258 = vmatmul.mubr.bf16.gmra.mrb[0].mxu0 %v1149
    %v1259 = vpop.f32.mrb[0].mxu0
    %v1260 = vadd.f32 0.0, %v1259
    %v1261 = vpop.f32.mrb[0].mxu0
    %v1262 = vadd.f32 0.0, %v1261
    %v1263 = vpop.f32.mrb[0].mxu0
    %v1264 = vadd.f32 0.0, %v1263
    %v1265 = vpop.f32.mrb[0].mxu0
    %v1266 = vadd.f32 0.0, %v1265
    %1267 = vmatprep.mubr.bf16.mxu0 0
    %1268 = vmatmul.mubr.bf16.gmra.mrb[0].mxu0 %v1152
    %v1269 = vpop.f32.mrb[0].mxu0
    %v1270 = vadd.f32 0.0, %v1269
    %v1271 = vpop.f32.mrb[0].mxu0
    %v1272 = vadd.f32 0.0, %v1271
    %v1273 = vpop.f32.mrb[0].mxu0
    %v1274 = vadd.f32 0.0, %v1273
    %v1275 = vpop.f32.mrb[0].mxu0
    %v1276 = vadd.f32 0.0, %v1275
    %1277 = vmatprep.mubr.bf16.mxu0 0
    %1278 = vmatmul.mubr.bf16.gmra.mrb[0].mxu0 %v1155
    %v1279 = vpop.f32.mrb[0].mxu0
    %v1280 = vadd.f32 0.0, %v1279
    %v1281 = vpop.f32.mrb[0].mxu0
    %v1282 = vadd.f32 0.0, %v1281
    %v1283 = vpop.f32.mrb[0].mxu0
    %v1284 = vadd.f32 0.0, %v1283
    %v1285 = vpop.f32.mrb[0].mxu0
    %v1286 = vadd.f32 0.0, %v1285
    %1287 = vmatprep.mubr.bf16.mxu0 0
    %1288 = vmatmul.mubr.bf16.gmra.mrb[0].mxu0 %v1158
    %v1289 = vpop.f32.mrb[0].mxu0
    %v1290 = vadd.f32 0.0, %v1289
    %v1291 = vpop.f32.mrb[0].mxu0
    %v1292 = vadd.f32 0.0, %v1291
    %v1293 = vpop.f32.mrb[0].mxu0
    %v1294 = vadd.f32 0.0, %v1293
    %v1295 = vpop.f32.mrb[0].mxu0
    %v1296 = vadd.f32 0.0, %v1295
    %1297 = vmatprep.mubr.bf16.mxu0 0
    %1298 = vmatmul.mubr.bf16.gmra.mrb[0].mxu0 %v1161
    %v1299 = vpop.f32.mrb[0].mxu0
    %v1300 = vadd.f32 0.0, %v1299
    %v1301 = vpop.f32.mrb[0].mxu0
    %v1302 = vadd.f32 0.0, %v1301
    %v1303 = vpop.f32.mrb[0].mxu0
    %v1304 = vadd.f32 0.0, %v1303
    %v1305 = vpop.f32.mrb[0].mxu0
    %v1306 = vadd.f32 0.0, %v1305
    %1307 = vmatprep.mubr.bf16.mxu0 0
    %1308 = vmatmul.mubr.bf16.gmra.mrb[0].mxu0 %v1164
    %v1309 = vpop.f32.mrb[0].mxu0
    %v1310 = vadd.f32 0.0, %v1309
    %v1311 = vpop.f32.mrb[0].mxu0
    %v1312 = vadd.f32 0.0, %v1311
    %v1313 = vpop.f32.mrb[0].mxu0
    %v1314 = vadd.f32 0.0, %v1313
    %v1315 = vpop.f32.mrb[0].mxu0
    %v1316 = vadd.f32 0.0, %v1315
    %1317 = vmatprep.mubr.bf16.mxu0 0
    %1318 = vmatmul.mubr.bf16.gmra.mrb[0].mxu0 %v1167
    %v1319 = vpop.f32.mrb[0].mxu0
    %v1320 = vadd.f32 0.0, %v1319
    %v1321 = vpop.f32.mrb[0].mxu0
    %v1322 = vadd.f32 0.0, %v1321
    %v1323 = vpop.f32.mrb[0].mxu0
    %v1324 = vadd.f32 0.0, %v1323
    %v1325 = vpop.f32.mrb[0].mxu0
    %v1326 = vadd.f32 0.0, %v1325
    %1327 = vdwg.mxu0
    %v1328 = vadd.f32 %v969, %v1210
    %v1329 = vadd.f32 %v970, %v1212
    %v1330 = vadd.f32 %v971, %v1214
    %v1331 = vadd.f32 %v972, %v1216
    %v1332 = vadd.f32 %v973, %v1220
    %v1333 = vadd.f32 %v974, %v1222
    %v1334 = vadd.f32 %v975, %v1224
    %v1335 = vadd.f32 %v976, %v1226
    %v1336 = vadd.f32 %v977, %v1230
    %v1337 = vadd.f32 %v978, %v1232
    %v1338 = vadd.f32 %v979, %v1234
    %v1339 = vadd.f32 %v980, %v1236
    %v1340 = vadd.f32 %v981, %v1240
    %v1341 = vadd.f32 %v982, %v1242
    %v1342 = vadd.f32 %v983, %v1244
    %v1343 = vadd.f32 %v984, %v1246
    %v1344 = vadd.f32 %v985, %v1250
    %v1345 = vadd.f32 %v986, %v1252
    %v1346 = vadd.f32 %v987, %v1254
    %v1347 = vadd.f32 %v988, %v1256
    %v1348 = vadd.f32 %v989, %v1260
    %v1349 = vadd.f32 %v990, %v1262
    %v1350 = vadd.f32 %v991, %v1264
    %v1351 = vadd.f32 %v992, %v1266
    %v1352 = vadd.f32 %v993, %v1270
    %v1353 = vadd.f32 %v994, %v1272
    %v1354 = vadd.f32 %v995, %v1274
    %v1355 = vadd.f32 %v996, %v1276
    %v1356 = vadd.f32 %v997, %v1280
    %v1357 = vadd.f32 %v998, %v1282
    %v1358 = vadd.f32 %v999, %v1284
    %v1359 = vadd.f32 %v1000, %v1286
    %v1360 = vadd.f32 %v1001, %v1290
    %v1361 = vadd.f32 %v1002, %v1292
    %v1362 = vadd.f32 %v1003, %v1294
    %v1363 = vadd.f32 %v1004, %v1296
    %v1364 = vadd.f32 %v1005, %v1300
    %v1365 = vadd.f32 %v1006, %v1302
    %v1366 = vadd.f32 %v1007, %v1304
    %v1367 = vadd.f32 %v1008, %v1306
    %v1368 = vadd.f32 %v1009, %v1310
    %v1369 = vadd.f32 %v1010, %v1312
    %v1370 = vadd.f32 %v1011, %v1314
    %v1371 = vadd.f32 %v1012, %v1316
    %v1372 = vadd.f32 %v1013, %v1320
    %v1373 = vadd.f32 %v1014, %v1322
    %v1374 = vadd.f32 %v1015, %v1324
    %v1375 = vadd.f32 %v1016, %v1326
    %vm1376 = vcmask 1043456
    %v1377 = vrot.slane %v53, 4
    %v1378 = vrot.slane %v54, 4
    %v1379 = vsel %vm1376, %v1377, %v1378
    %v1380 = vrot.slane %v55, 4
    %v1381 = vsel %vm1376, %v1378, %v1380
    %v1382 = vrot.slane %v56, 4
    %v1383 = vsel %vm1376, %v1380, %v1382
    %v1384 = vrot.slane %v57, 4
    %v1385 = vrot.slane %v58, 4
    %v1386 = vsel %vm1376, %v1384, %v1385
    %v1387 = vrot.slane %v59, 4
    %v1388 = vsel %vm1376, %v1385, %v1387
    %v1389 = vrot.slane %v60, 4
    %v1390 = vsel %vm1376, %v1387, %v1389
    %v1391 = vrot.slane %v61, 4
    %v1392 = vrot.slane %v62, 4
    %v1393 = vsel %vm1376, %v1391, %v1392
    %v1394 = vrot.slane %v63, 4
    %v1395 = vsel %vm1376, %v1392, %v1394
    %v1396 = vrot.slane %v64, 4
    %v1397 = vsel %vm1376, %v1394, %v1396
    %v1398 = vrot.slane %v65, 4
    %v1399 = vrot.slane %v66, 4
    %v1400 = vsel %vm1376, %v1398, %v1399
    %v1401 = vrot.slane %v67, 4
    %v1402 = vsel %vm1376, %v1399, %v1401
    %v1403 = vrot.slane %v68, 4
    %v1404 = vsel %vm1376, %v1401, %v1403
    %v1405 = vrot.slane %v69, 4
    %v1406 = vrot.slane %v70, 4
    %v1407 = vsel %vm1376, %v1405, %v1406
    %v1408 = vrot.slane %v71, 4
    %v1409 = vsel %vm1376, %v1406, %v1408
    %v1410 = vrot.slane %v72, 4
    %v1411 = vsel %vm1376, %v1408, %v1410
    %v1412 = vrot.slane %v73, 4
    %v1413 = vrot.slane %v74, 4
    %v1414 = vsel %vm1376, %v1412, %v1413
    %v1415 = vrot.slane %v75, 4
    %v1416 = vsel %vm1376, %v1413, %v1415
    %v1417 = vrot.slane %v76, 4
    %v1418 = vsel %vm1376, %v1415, %v1417
    %v1419 = vrot.slane %v77, 4
    %v1420 = vrot.slane %v78, 4
    %v1421 = vsel %vm1376, %v1419, %v1420
    %v1422 = vrot.slane %v79, 4
    %v1423 = vsel %vm1376, %v1420, %v1422
    %v1424 = vrot.slane %v80, 4
    %v1425 = vsel %vm1376, %v1422, %v1424
    %v1426 = vrot.slane %v81, 4
    %v1427 = vrot.slane %v82, 4
    %v1428 = vsel %vm1376, %v1426, %v1427
    %v1429 = vrot.slane %v83, 4
    %v1430 = vsel %vm1376, %v1427, %v1429
    %v1431 = vrot.slane %v84, 4
    %v1432 = vsel %vm1376, %v1429, %v1431
    %v1457 = vpack.c.bf16 %v1381, %v1379
    %v1458 = vpack.c.bf16 %v1386, %v1383
    %v1459 = vpack.c.bf16 %v1390, %v1388
    %v1460 = vpack.c.bf16 %v1395, %v1393
    %v1461 = vpack.c.bf16 %v1400, %v1397
    %v1462 = vpack.c.bf16 %v1404, %v1402
    %v1463 = vpack.c.bf16 %v1409, %v1407
    %v1464 = vpack.c.bf16 %v1414, %v1411
    %v1465 = vpack.c.bf16 %v1418, %v1416
    %v1466 = vpack.c.bf16 %v1423, %v1421
    %v1467 = vpack.c.bf16 %v1428, %v1425
    %v1468 = vpack.c.bf16 %v1432, %v1430
    %s1469 = scalar_lea.vmem %s1, 128
    %v1470 = vld [vmem:[%s1469] sm:$0xff]
    %v1471 = vld [vmem:[%s1469 + $0x8] sm:$0xff]
    %v1472 = vld [vmem:[%s1469 + $0x10] sm:$0xff]
    %v1473 = vld [vmem:[%s1469 + $0x18] sm:$0x33]
    %v1478 = vunpack.c.l.b16 %v1470
    %v1479 = vunpack.c.h.b16 %v1470
    %v1480 = vunpack.c.l.b16 %v1471
    %v1481 = vunpack.c.h.b16 %v1471
    %v1482 = vunpack.c.l.b16 %v1472
    %v1483 = vunpack.c.h.b16 %v1472
    %v1484 = vunpack.c.l.b16 %v1473
    %v1485 = vunpack.c.h.b16 %v1473
    %v1486 = vpack.c.b16 %v1480, %v1478
    %v1487 = vpack.c.b16 %v1481, %v1479
    %v1488 = vpack.c.b16 %v1484, %v1482
    %v1489 = vpack.c.b16 %v1485, %v1483
    %v1493 = vsel %vm249, %v1457, 0
    %v1496 = vsel %vm249, %v1458, 0
    %v1499 = vsel %vm249, %v1459, 0
    %v1502 = vsel %vm249, %v1460, 0
    %v1505 = vsel %vm249, %v1461, 0
    %v1508 = vsel %vm249, %v1462, 0
    %v1511 = vsel %vm249, %v1463, 0
    %v1514 = vsel %vm249, %v1464, 0
    %v1517 = vsel %vm249, %v1465, 0
    %v1520 = vsel %vm249, %v1466, 0
    %v1523 = vsel %vm249, %v1467, 0
    %v1526 = vsel %vm249, %v1468, 0
    %v1529 = vsel %vm286, %v1488, 0
    %v1532 = vsel %vm286, %v1489, 0
    %1534 = vmatprep.subr.bf16.mxu0 %v1487
    %1535 = vmatpush1.bf16.msra.mxu0 %v1486
    %1536 = vmatprep.subr.bf16.mxu0 %v1532
    %1537 = vmatpush1.bf16.msra.mxu0 %v1529
    %1538 = vmatprep.subr.bf16.mxu0 0
    %1539 = vmatpush1.bf16.msra.mxu0 0
    %1540 = vmatprep.subr.bf16.mxu0 0
    %1541 = vmatpush1.bf16.msra.mxu0 0
    %1542 = vmatprep.subr.bf16.mxu0 0
    %1543 = vmatpush1.bf16.msra.mxu0 0
    %1544 = vmatprep.subr.bf16.mxu0 0
    %1545 = vmatpush1.bf16.msra.mxu0 0
    %1546 = vmatprep.subr.bf16.mxu0 0
    %1547 = vmatpush1.bf16.msra.mxu0 0
    %1548 = vmatprep.subr.bf16.mxu0 0
    %1549 = vmatpush1.bf16.msra.mxu0 0
    %1550 = vmatprep.subr.bf16.mxu0 0
    %1551 = vmatpush1.bf16.msra.mxu0 0
    %1552 = vmatprep.subr.bf16.mxu0 0
    %1553 = vmatpush1.bf16.msra.mxu0 0
    %1554 = vmatprep.subr.bf16.mxu0 0
    %1555 = vmatpush1.bf16.msra.mxu0 0
    %1556 = vmatprep.subr.bf16.mxu0 0
    %1557 = vmatpush1.bf16.msra.mxu0 0
    %1558 = vmatprep.subr.bf16.mxu0 0
    %1559 = vmatpush1.bf16.msra.mxu0 0
    %1560 = vmatprep.subr.bf16.mxu0 0
    %1561 = vmatpush1.bf16.msra.mxu0 0
    %1562 = vmatprep.subr.bf16.mxu0 0
    %1563 = vmatpush1.bf16.msra.mxu0 0
    %1564 = vmatprep.subr.bf16.mxu0 0
    %1565 = vmatpush1.bf16.msra.mxu0 0
    %1566 = vmatprep.mubr.bf16.mxu0 0
    %1567 = vmatmul.mubr.bf16.gmra.mrb[0].mxu0 %v1493
    %v1568 = vpop.f32.mrb[0].mxu0
    %v1569 = vadd.f32 0.0, %v1568
    %v1570 = vpop.f32.mrb[0].mxu0
    %v1571 = vadd.f32 0.0, %v1570
    %v1572 = vpop.f32.mrb[0].mxu0
    %v1573 = vadd.f32 0.0, %v1572
    %v1574 = vpop.f32.mrb[0].mxu0
    %v1575 = vadd.f32 0.0, %v1574
    %1576 = vmatprep.mubr.bf16.mxu0 0
    %1577 = vmatmul.mubr.bf16.gmra.mrb[0].mxu0 %v1496
    %v1578 = vpop.f32.mrb[0].mxu0
    %v1579 = vadd.f32 0.0, %v1578
    %v1580 = vpop.f32.mrb[0].mxu0
    %v1581 = vadd.f32 0.0, %v1580
    %v1582 = vpop.f32.mrb[0].mxu0
    %v1583 = vadd.f32 0.0, %v1582
    %v1584 = vpop.f32.mrb[0].mxu0
    %v1585 = vadd.f32 0.0, %v1584
    %1586 = vmatprep.mubr.bf16.mxu0 0
    %1587 = vmatmul.mubr.bf16.gmra.mrb[0].mxu0 %v1499
    %v1588 = vpop.f32.mrb[0].mxu0
    %v1589 = vadd.f32 0.0, %v1588
    %v1590 = vpop.f32.mrb[0].mxu0
    %v1591 = vadd.f32 0.0, %v1590
    %v1592 = vpop.f32.mrb[0].mxu0
    %v1593 = vadd.f32 0.0, %v1592
    %v1594 = vpop.f32.mrb[0].mxu0
    %v1595 = vadd.f32 0.0, %v1594
    %1596 = vmatprep.mubr.bf16.mxu0 0
    %1597 = vmatmul.mubr.bf16.gmra.mrb[0].mxu0 %v1502
    %v1598 = vpop.f32.mrb[0].mxu0
    %v1599 = vadd.f32 0.0, %v1598
    %v1600 = vpop.f32.mrb[0].mxu0
    %v1601 = vadd.f32 0.0, %v1600
    %v1602 = vpop.f32.mrb[0].mxu0
    %v1603 = vadd.f32 0.0, %v1602
    %v1604 = vpop.f32.mrb[0].mxu0
    %v1605 = vadd.f32 0.0, %v1604
    %1606 = vmatprep.mubr.bf16.mxu0 0
    %1607 = vmatmul.mubr.bf16.gmra.mrb[0].mxu0 %v1505
    %v1608 = vpop.f32.mrb[0].mxu0
    %v1609 = vadd.f32 0.0, %v1608
    %v1610 = vpop.f32.mrb[0].mxu0
    %v1611 = vadd.f32 0.0, %v1610
    %v1612 = vpop.f32.mrb[0].mxu0
    %v1613 = vadd.f32 0.0, %v1612
    %v1614 = vpop.f32.mrb[0].mxu0
    %v1615 = vadd.f32 0.0, %v1614
    %1616 = vmatprep.mubr.bf16.mxu0 0
    %1617 = vmatmul.mubr.bf16.gmra.mrb[0].mxu0 %v1508
    %v1618 = vpop.f32.mrb[0].mxu0
    %v1619 = vadd.f32 0.0, %v1618
    %v1620 = vpop.f32.mrb[0].mxu0
    %v1621 = vadd.f32 0.0, %v1620
    %v1622 = vpop.f32.mrb[0].mxu0
    %v1623 = vadd.f32 0.0, %v1622
    %v1624 = vpop.f32.mrb[0].mxu0
    %v1625 = vadd.f32 0.0, %v1624
    %1626 = vmatprep.mubr.bf16.mxu0 0
    %1627 = vmatmul.mubr.bf16.gmra.mrb[0].mxu0 %v1511
    %v1628 = vpop.f32.mrb[0].mxu0
    %v1629 = vadd.f32 0.0, %v1628
    %v1630 = vpop.f32.mrb[0].mxu0
    %v1631 = vadd.f32 0.0, %v1630
    %v1632 = vpop.f32.mrb[0].mxu0
    %v1633 = vadd.f32 0.0, %v1632
    %v1634 = vpop.f32.mrb[0].mxu0
    %v1635 = vadd.f32 0.0, %v1634
    %1636 = vmatprep.mubr.bf16.mxu0 0
    %1637 = vmatmul.mubr.bf16.gmra.mrb[0].mxu0 %v1514
    %v1638 = vpop.f32.mrb[0].mxu0
    %v1639 = vadd.f32 0.0, %v1638
    %v1640 = vpop.f32.mrb[0].mxu0
    %v1641 = vadd.f32 0.0, %v1640
    %v1642 = vpop.f32.mrb[0].mxu0
    %v1643 = vadd.f32 0.0, %v1642
    %v1644 = vpop.f32.mrb[0].mxu0
    %v1645 = vadd.f32 0.0, %v1644
    %1646 = vmatprep.mubr.bf16.mxu0 0
    %1647 = vmatmul.mubr.bf16.gmra.mrb[0].mxu0 %v1517
    %v1648 = vpop.f32.mrb[0].mxu0
    %v1649 = vadd.f32 0.0, %v1648
    %v1650 = vpop.f32.mrb[0].mxu0
    %v1651 = vadd.f32 0.0, %v1650
    %v1652 = vpop.f32.mrb[0].mxu0
    %v1653 = vadd.f32 0.0, %v1652
    %v1654 = vpop.f32.mrb[0].mxu0
    %v1655 = vadd.f32 0.0, %v1654
    %1656 = vmatprep.mubr.bf16.mxu0 0
    %1657 = vmatmul.mubr.bf16.gmra.mrb[0].mxu0 %v1520
    %v1658 = vpop.f32.mrb[0].mxu0
    %v1659 = vadd.f32 0.0, %v1658
    %v1660 = vpop.f32.mrb[0].mxu0
    %v1661 = vadd.f32 0.0, %v1660
    %v1662 = vpop.f32.mrb[0].mxu0
    %v1663 = vadd.f32 0.0, %v1662
    %v1664 = vpop.f32.mrb[0].mxu0
    %v1665 = vadd.f32 0.0, %v1664
    %1666 = vmatprep.mubr.bf16.mxu0 0
    %1667 = vmatmul.mubr.bf16.gmra.mrb[0].mxu0 %v1523
    %v1668 = vpop.f32.mrb[0].mxu0
    %v1669 = vadd.f32 0.0, %v1668
    %v1670 = vpop.f32.mrb[0].mxu0
    %v1671 = vadd.f32 0.0, %v1670
    %v1672 = vpop.f32.mrb[0].mxu0
    %v1673 = vadd.f32 0.0, %v1672
    %v1674 = vpop.f32.mrb[0].mxu0
    %v1675 = vadd.f32 0.0, %v1674
    %1676 = vmatprep.mubr.bf16.mxu0 0
    %1677 = vmatmul.mubr.bf16.gmra.mrb[0].mxu0 %v1526
    %v1678 = vpop.f32.mrb[0].mxu0
    %v1679 = vadd.f32 0.0, %v1678
    %v1680 = vpop.f32.mrb[0].mxu0
    %v1681 = vadd.f32 0.0, %v1680
    %v1682 = vpop.f32.mrb[0].mxu0
    %v1683 = vadd.f32 0.0, %v1682
    %v1684 = vpop.f32.mrb[0].mxu0
    %v1685 = vadd.f32 0.0, %v1684
    %1686 = vdwg.mxu0
    %v1687 = vadd.f32 %v1328, %v1569
    %v1688 = vadd.f32 %v1329, %v1571
    %v1689 = vadd.f32 %v1330, %v1573
    %v1690 = vadd.f32 %v1331, %v1575
    %v1691 = vadd.f32 %v1332, %v1579
    %v1692 = vadd.f32 %v1333, %v1581
    %v1693 = vadd.f32 %v1334, %v1583
    %v1694 = vadd.f32 %v1335, %v1585
    %v1695 = vadd.f32 %v1336, %v1589
    %v1696 = vadd.f32 %v1337, %v1591
    %v1697 = vadd.f32 %v1338, %v1593
    %v1698 = vadd.f32 %v1339, %v1595
    %v1699 = vadd.f32 %v1340, %v1599
    %v1700 = vadd.f32 %v1341, %v1601
    %v1701 = vadd.f32 %v1342, %v1603
    %v1702 = vadd.f32 %v1343, %v1605
    %v1703 = vadd.f32 %v1344, %v1609
    %v1704 = vadd.f32 %v1345, %v1611
    %v1705 = vadd.f32 %v1346, %v1613
    %v1706 = vadd.f32 %v1347, %v1615
    %v1707 = vadd.f32 %v1348, %v1619
    %v1708 = vadd.f32 %v1349, %v1621
    %v1709 = vadd.f32 %v1350, %v1623
    %v1710 = vadd.f32 %v1351, %v1625
    %v1711 = vadd.f32 %v1352, %v1629
    %v1712 = vadd.f32 %v1353, %v1631
    %v1713 = vadd.f32 %v1354, %v1633
    %v1714 = vadd.f32 %v1355, %v1635
    %v1715 = vadd.f32 %v1356, %v1639
    %v1716 = vadd.f32 %v1357, %v1641
    %v1717 = vadd.f32 %v1358, %v1643
    %v1718 = vadd.f32 %v1359, %v1645
    %v1719 = vadd.f32 %v1360, %v1649
    %v1720 = vadd.f32 %v1361, %v1651
    %v1721 = vadd.f32 %v1362, %v1653
    %v1722 = vadd.f32 %v1363, %v1655
    %v1723 = vadd.f32 %v1364, %v1659
    %v1724 = vadd.f32 %v1365, %v1661
    %v1725 = vadd.f32 %v1366, %v1663
    %v1726 = vadd.f32 %v1367, %v1665
    %v1727 = vadd.f32 %v1368, %v1669
    %v1728 = vadd.f32 %v1369, %v1671
    %v1729 = vadd.f32 %v1370, %v1673
    %v1730 = vadd.f32 %v1371, %v1675
    %v1731 = vadd.f32 %v1372, %v1679
    %v1732 = vadd.f32 %v1373, %v1681
    %v1733 = vadd.f32 %v1374, %v1683
    %v1734 = vadd.f32 %v1375, %v1685
    %v1735 = vld [vmem:[%s2] sm:$0x3]
    %v1737 = vlaneseq
    %v1738 = vshrl.u32 %v1737, 7
    %v1739 = vsub.s32 0, %v1738
    %v1740 = vrot.slane %v1735, %v1739
    %v1741 = vlaneseq
    %v1742 = vshrl.u32 %v1741, 7
    %v1743 = vsub.s32 1, %v1742
    %v1744 = vrot.slane %v1735, %v1743
    %v1747 = vadd.f32 %v1687, %v1740
    %v1748 = vadd.f32 %v1688, %v1744
    %v1749 = vadd.f32 %v1689, %v1740
    %v1750 = vadd.f32 %v1690, %v1744
    %v1751 = vadd.f32 %v1691, %v1740
    %v1752 = vadd.f32 %v1692, %v1744
    %v1753 = vadd.f32 %v1693, %v1740
    %v1754 = vadd.f32 %v1694, %v1744
    %v1755 = vadd.f32 %v1695, %v1740
    %v1756 = vadd.f32 %v1696, %v1744
    %v1757 = vadd.f32 %v1697, %v1740
    %v1758 = vadd.f32 %v1698, %v1744
    %v1759 = vadd.f32 %v1699, %v1740
    %v1760 = vadd.f32 %v1700, %v1744
    %v1761 = vadd.f32 %v1701, %v1740
    %v1762 = vadd.f32 %v1702, %v1744
    %v1763 = vadd.f32 %v1703, %v1740
    %v1764 = vadd.f32 %v1704, %v1744
    %v1765 = vadd.f32 %v1705, %v1740
    %v1766 = vadd.f32 %v1706, %v1744
    %v1767 = vadd.f32 %v1707, %v1740
    %v1768 = vadd.f32 %v1708, %v1744
    %v1769 = vadd.f32 %v1709, %v1740
    %v1770 = vadd.f32 %v1710, %v1744
    %v1771 = vadd.f32 %v1711, %v1740
    %v1772 = vadd.f32 %v1712, %v1744
    %v1773 = vadd.f32 %v1713, %v1740
    %v1774 = vadd.f32 %v1714, %v1744
    %v1775 = vadd.f32 %v1715, %v1740
    %v1776 = vadd.f32 %v1716, %v1744
    %v1777 = vadd.f32 %v1717, %v1740
    %v1778 = vadd.f32 %v1718, %v1744
    %v1779 = vadd.f32 %v1719, %v1740
    %v1780 = vadd.f32 %v1720, %v1744
    %v1781 = vadd.f32 %v1721, %v1740
    %v1782 = vadd.f32 %v1722, %v1744
    %v1783 = vadd.f32 %v1723, %v1740
    %v1784 = vadd.f32 %v1724, %v1744
    %v1785 = vadd.f32 %v1725, %v1740
    %v1786 = vadd.f32 %v1726, %v1744
    %v1787 = vadd.f32 %v1727, %v1740
    %v1788 = vadd.f32 %v1728, %v1744
    %v1789 = vadd.f32 %v1729, %v1740
    %v1790 = vadd.f32 %v1730, %v1744
    %v1791 = vadd.f32 %v1731, %v1740
    %v1792 = vadd.f32 %v1732, %v1744
    %v1793 = vadd.f32 %v1733, %v1740
    %v1794 = vadd.f32 %v1734, %v1744
    %v1795 = vmax.f32 %v1747, 0.0
    %v1796 = vmax.f32 %v1748, 0.0
    %v1797 = vmax.f32 %v1749, 0.0
    %v1798 = vmax.f32 %v1750, 0.0
    %v1799 = vmax.f32 %v1751, 0.0
    %v1800 = vmax.f32 %v1752, 0.0
    %v1801 = vmax.f32 %v1753, 0.0
    %v1802 = vmax.f32 %v1754, 0.0
    %v1803 = vmax.f32 %v1755, 0.0
    %v1804 = vmax.f32 %v1756, 0.0
    %v1805 = vmax.f32 %v1757, 0.0
    %v1806 = vmax.f32 %v1758, 0.0
    %v1807 = vmax.f32 %v1759, 0.0
    %v1808 = vmax.f32 %v1760, 0.0
    %v1809 = vmax.f32 %v1761, 0.0
    %v1810 = vmax.f32 %v1762, 0.0
    %v1811 = vmax.f32 %v1763, 0.0
    %v1812 = vmax.f32 %v1764, 0.0
    %v1813 = vmax.f32 %v1765, 0.0
    %v1814 = vmax.f32 %v1766, 0.0
    %v1815 = vmax.f32 %v1767, 0.0
    %v1816 = vmax.f32 %v1768, 0.0
    %v1817 = vmax.f32 %v1769, 0.0
    %v1818 = vmax.f32 %v1770, 0.0
    %v1819 = vmax.f32 %v1771, 0.0
    %v1820 = vmax.f32 %v1772, 0.0
    %v1821 = vmax.f32 %v1773, 0.0
    %v1822 = vmax.f32 %v1774, 0.0
    %v1823 = vmax.f32 %v1775, 0.0
    %v1824 = vmax.f32 %v1776, 0.0
    %v1825 = vmax.f32 %v1777, 0.0
    %v1826 = vmax.f32 %v1778, 0.0
    %v1827 = vmax.f32 %v1779, 0.0
    %v1828 = vmax.f32 %v1780, 0.0
    %v1829 = vmax.f32 %v1781, 0.0
    %v1830 = vmax.f32 %v1782, 0.0
    %v1831 = vmax.f32 %v1783, 0.0
    %v1832 = vmax.f32 %v1784, 0.0
    %v1833 = vmax.f32 %v1785, 0.0
    %v1834 = vmax.f32 %v1786, 0.0
    %v1835 = vmax.f32 %v1787, 0.0
    %v1836 = vmax.f32 %v1788, 0.0
    %v1837 = vmax.f32 %v1789, 0.0
    %v1838 = vmax.f32 %v1790, 0.0
    %v1839 = vmax.f32 %v1791, 0.0
    %v1840 = vmax.f32 %v1792, 0.0
    %v1841 = vmax.f32 %v1793, 0.0
    %v1842 = vmax.f32 %v1794, 0.0
    %v1891 = vrot.slane %v1795, 1
    %v1892 = vrot.slane %v1797, 1
    %v1893 = vsel %vm133, %v1891, %v1892
    %v1894 = vrot.slane %v1796, 1
    %v1895 = vrot.slane %v1798, 1
    %v1896 = vsel %vm133, %v1894, %v1895
    %v1897 = vrot.slane %v1799, 1
    %v1898 = vsel %vm133, %v1892, %v1897
    %v1899 = vrot.slane %v1800, 1
    %v1900 = vsel %vm133, %v1895, %v1899
    %v1901 = vrot.slane %v1801, 1
    %v1902 = vrot.slane %v1803, 1
    %v1903 = vsel %vm133, %v1901, %v1902
    %v1904 = vrot.slane %v1802, 1
    %v1905 = vrot.slane %v1804, 1
    %v1906 = vsel %vm133, %v1904, %v1905
    %v1907 = vrot.slane %v1805, 1
    %v1908 = vsel %vm133, %v1902, %v1907
    %v1909 = vrot.slane %v1806, 1
    %v1910 = vsel %vm133, %v1905, %v1909
    %v1911 = vrot.slane %v1807, 1
    %v1912 = vrot.slane %v1809, 1
    %v1913 = vsel %vm133, %v1911, %v1912
    %v1914 = vrot.slane %v1808, 1
    %v1915 = vrot.slane %v1810, 1
    %v1916 = vsel %vm133, %v1914, %v1915
    %v1917 = vrot.slane %v1811, 1
    %v1918 = vsel %vm133, %v1912, %v1917
    %v1919 = vrot.slane %v1812, 1
    %v1920 = vsel %vm133, %v1915, %v1919
    %v1921 = vrot.slane %v1813, 1
    %v1922 = vrot.slane %v1815, 1
    %v1923 = vsel %vm133, %v1921, %v1922
    %v1924 = vrot.slane %v1814, 1
    %v1925 = vrot.slane %v1816, 1
    %v1926 = vsel %vm133, %v1924, %v1925
    %v1927 = vrot.slane %v1817, 1
    %v1928 = vsel %vm133, %v1922, %v1927
    %v1929 = vrot.slane %v1818, 1
    %v1930 = vsel %vm133, %v1925, %v1929
    %v1931 = vrot.slane %v1819, 1
    %v1932 = vrot.slane %v1821, 1
    %v1933 = vsel %vm133, %v1931, %v1932
    %v1934 = vrot.slane %v1820, 1
    %v1935 = vrot.slane %v1822, 1
    %v1936 = vsel %vm133, %v1934, %v1935
    %v1937 = vrot.slane %v1823, 1
    %v1938 = vsel %vm133, %v1932, %v1937
    %v1939 = vrot.slane %v1824, 1
    %v1940 = vsel %vm133, %v1935, %v1939
    %v1941 = vrot.slane %v1825, 1
    %v1942 = vrot.slane %v1827, 1
    %v1943 = vsel %vm133, %v1941, %v1942
    %v1944 = vrot.slane %v1826, 1
    %v1945 = vrot.slane %v1828, 1
    %v1946 = vsel %vm133, %v1944, %v1945
    %v1947 = vrot.slane %v1829, 1
    %v1948 = vsel %vm133, %v1942, %v1947
    %v1949 = vrot.slane %v1830, 1
    %v1950 = vsel %vm133, %v1945, %v1949
    %v1951 = vrot.slane %v1831, 1
    %v1952 = vrot.slane %v1833, 1
    %v1953 = vsel %vm133, %v1951, %v1952
    %v1954 = vrot.slane %v1832, 1
    %v1955 = vrot.slane %v1834, 1
    %v1956 = vsel %vm133, %v1954, %v1955
    %v1957 = vrot.slane %v1835, 1
    %v1958 = vsel %vm133, %v1952, %v1957
    %v1959 = vrot.slane %v1836, 1
    %v1960 = vsel %vm133, %v1955, %v1959
    %v1961 = vrot.slane %v1837, 1
    %v1962 = vrot.slane %v1839, 1
    %v1963 = vsel %vm133, %v1961, %v1962
    %v1964 = vrot.slane %v1838, 1
    %v1965 = vrot.slane %v1840, 1
    %v1966 = vsel %vm133, %v1964, %v1965
    %v1967 = vrot.slane %v1841, 1
    %v1968 = vsel %vm133, %v1962, %v1967
    %v1969 = vrot.slane %v1842, 1
    %v1970 = vsel %vm133, %v1965, %v1969
    %v2019 = vmax.f32 %v1795, %v1893
    %v2020 = vmax.f32 %v1796, %v1896
    %v2021 = vmax.f32 %v1797, %v1898
    %v2022 = vmax.f32 %v1798, %v1900
    %v2023 = vmax.f32 %v1799, %v1897
    %v2024 = vmax.f32 %v1800, %v1899
    %v2025 = vmax.f32 %v1801, %v1903
    %v2026 = vmax.f32 %v1802, %v1906
    %v2027 = vmax.f32 %v1803, %v1908
    %v2028 = vmax.f32 %v1804, %v1910
    %v2029 = vmax.f32 %v1805, %v1907
    %v2030 = vmax.f32 %v1806, %v1909
    %v2031 = vmax.f32 %v1807, %v1913
    %v2032 = vmax.f32 %v1808, %v1916
    %v2033 = vmax.f32 %v1809, %v1918
    %v2034 = vmax.f32 %v1810, %v1920
    %v2035 = vmax.f32 %v1811, %v1917
    %v2036 = vmax.f32 %v1812, %v1919
    %v2037 = vmax.f32 %v1813, %v1923
    %v2038 = vmax.f32 %v1814, %v1926
    %v2039 = vmax.f32 %v1815, %v1928
    %v2040 = vmax.f32 %v1816, %v1930
    %v2041 = vmax.f32 %v1817, %v1927
    %v2042 = vmax.f32 %v1818, %v1929
    %v2043 = vmax.f32 %v1819, %v1933
    %v2044 = vmax.f32 %v1820, %v1936
    %v2045 = vmax.f32 %v1821, %v1938
    %v2046 = vmax.f32 %v1822, %v1940
    %v2047 = vmax.f32 %v1823, %v1937
    %v2048 = vmax.f32 %v1824, %v1939
    %v2049 = vmax.f32 %v1825, %v1943
    %v2050 = vmax.f32 %v1826, %v1946
    %v2051 = vmax.f32 %v1827, %v1948
    %v2052 = vmax.f32 %v1828, %v1950
    %v2053 = vmax.f32 %v1829, %v1947
    %v2054 = vmax.f32 %v1830, %v1949
    %v2055 = vmax.f32 %v1831, %v1953
    %v2056 = vmax.f32 %v1832, %v1956
    %v2057 = vmax.f32 %v1833, %v1958
    %v2058 = vmax.f32 %v1834, %v1960
    %v2059 = vmax.f32 %v1835, %v1957
    %v2060 = vmax.f32 %v1836, %v1959
    %v2061 = vmax.f32 %v1837, %v1963
    %v2062 = vmax.f32 %v1838, %v1966
    %v2063 = vmax.f32 %v1839, %v1968
    %v2064 = vmax.f32 %v1840, %v1970
    %v2065 = vmax.f32 %v1841, %v1967
    %v2066 = vmax.f32 %v1842, %v1969
    %v2083 = vrot.slane %v2019, 1
    %v2084 = vrot.slane %v2020, 1
    %v2085 = vrot.slane %v2025, 1
    %v2086 = vrot.slane %v2026, 1
    %v2087 = vrot.slane %v2031, 1
    %v2088 = vrot.slane %v2032, 1
    %v2089 = vrot.slane %v2037, 1
    %v2090 = vrot.slane %v2038, 1
    %v2091 = vrot.slane %v2043, 1
    %v2092 = vrot.slane %v2044, 1
    %v2093 = vrot.slane %v2049, 1
    %v2094 = vrot.slane %v2050, 1
    %v2095 = vrot.slane %v2055, 1
    %v2096 = vrot.slane %v2056, 1
    %v2097 = vrot.slane %v2061, 1
    %v2098 = vrot.slane %v2062, 1
    %v2115 = vrot.slane %v2019, 2
    %v2116 = vrot.slane %v2020, 2
    %v2117 = vrot.slane %v2025, 2
    %v2118 = vrot.slane %v2026, 2
    %v2119 = vrot.slane %v2031, 2
    %v2120 = vrot.slane %v2032, 2
    %v2121 = vrot.slane %v2037, 2
    %v2122 = vrot.slane %v2038, 2
    %v2123 = vrot.slane %v2043, 2
    %v2124 = vrot.slane %v2044, 2
    %v2125 = vrot.slane %v2049, 2
    %v2126 = vrot.slane %v2050, 2
    %v2127 = vrot.slane %v2055, 2
    %v2128 = vrot.slane %v2056, 2
    %v2129 = vrot.slane %v2061, 2
    %v2130 = vrot.slane %v2062, 2
    %v2147 = vrot.slane %v2019, 3
    %v2148 = vrot.slane %v2020, 3
    %v2149 = vrot.slane %v2025, 3
    %v2150 = vrot.slane %v2026, 3
    %v2151 = vrot.slane %v2031, 3
    %v2152 = vrot.slane %v2032, 3
    %v2153 = vrot.slane %v2037, 3
    %v2154 = vrot.slane %v2038, 3
    %v2155 = vrot.slane %v2043, 3
    %v2156 = vrot.slane %v2044, 3
    %v2157 = vrot.slane %v2049, 3
    %v2158 = vrot.slane %v2050, 3
    %v2159 = vrot.slane %v2055, 3
    %v2160 = vrot.slane %v2056, 3
    %v2161 = vrot.slane %v2061, 3
    %v2162 = vrot.slane %v2062, 3
    %v2195 = vrot.slane %v2021, 4
    %v2196 = vrot.slane %v2022, 4
    %v2197 = vrot.slane %v2027, 4
    %v2198 = vrot.slane %v2028, 4
    %v2199 = vrot.slane %v2033, 4
    %v2200 = vrot.slane %v2034, 4
    %v2201 = vrot.slane %v2039, 4
    %v2202 = vrot.slane %v2040, 4
    %v2203 = vrot.slane %v2045, 4
    %v2204 = vrot.slane %v2046, 4
    %v2205 = vrot.slane %v2051, 4
    %v2206 = vrot.slane %v2052, 4
    %v2207 = vrot.slane %v2057, 4
    %v2208 = vrot.slane %v2058, 4
    %v2209 = vrot.slane %v2063, 4
    %v2210 = vrot.slane %v2064, 4
    %v2227 = vrot.slane %v2021, 5
    %v2228 = vrot.slane %v2022, 5
    %v2229 = vrot.slane %v2027, 5
    %v2230 = vrot.slane %v2028, 5
    %v2231 = vrot.slane %v2033, 5
    %v2232 = vrot.slane %v2034, 5
    %v2233 = vrot.slane %v2039, 5
    %v2234 = vrot.slane %v2040, 5
    %v2235 = vrot.slane %v2045, 5
    %v2236 = vrot.slane %v2046, 5
    %v2237 = vrot.slane %v2051, 5
    %v2238 = vrot.slane %v2052, 5
    %v2239 = vrot.slane %v2057, 5
    %v2240 = vrot.slane %v2058, 5
    %v2241 = vrot.slane %v2063, 5
    %v2242 = vrot.slane %v2064, 5
    %v2259 = vrot.slane %v2021, 6
    %v2260 = vrot.slane %v2022, 6
    %v2261 = vrot.slane %v2027, 6
    %v2262 = vrot.slane %v2028, 6
    %v2263 = vrot.slane %v2033, 6
    %v2264 = vrot.slane %v2034, 6
    %v2265 = vrot.slane %v2039, 6
    %v2266 = vrot.slane %v2040, 6
    %v2267 = vrot.slane %v2045, 6
    %v2268 = vrot.slane %v2046, 6
    %v2269 = vrot.slane %v2051, 6
    %v2270 = vrot.slane %v2052, 6
    %v2271 = vrot.slane %v2057, 6
    %v2272 = vrot.slane %v2058, 6
    %v2273 = vrot.slane %v2063, 6
    %v2274 = vrot.slane %v2064, 6
    %v2291 = vrot.slane %v2021, 7
    %v2292 = vrot.slane %v2022, 7
    %v2293 = vrot.slane %v2027, 7
    %v2294 = vrot.slane %v2028, 7
    %v2295 = vrot.slane %v2033, 7
    %v2296 = vrot.slane %v2034, 7
    %v2297 = vrot.slane %v2039, 7
    %v2298 = vrot.slane %v2040, 7
    %v2299 = vrot.slane %v2045, 7
    %v2300 = vrot.slane %v2046, 7
    %v2301 = vrot.slane %v2051, 7
    %v2302 = vrot.slane %v2052, 7
    %v2303 = vrot.slane %v2057, 7
    %v2304 = vrot.slane %v2058, 7
    %v2305 = vrot.slane %v2063, 7
    %v2306 = vrot.slane %v2064, 7
    %v2339 = vrot.slane %v2023, 1
    %v2340 = vrot.slane %v2024, 1
    %v2341 = vrot.slane %v2029, 1
    %v2342 = vrot.slane %v2030, 1
    %v2343 = vrot.slane %v2035, 1
    %v2344 = vrot.slane %v2036, 1
    %v2345 = vrot.slane %v2041, 1
    %v2346 = vrot.slane %v2042, 1
    %v2347 = vrot.slane %v2047, 1
    %v2348 = vrot.slane %v2048, 1
    %v2349 = vrot.slane %v2053, 1
    %v2350 = vrot.slane %v2054, 1
    %v2351 = vrot.slane %v2059, 1
    %v2352 = vrot.slane %v2060, 1
    %v2353 = vrot.slane %v2065, 1
    %v2354 = vrot.slane %v2066, 1
    %v2371 = vrot.slane %v2023, 2
    %v2372 = vrot.slane %v2024, 2
    %v2373 = vrot.slane %v2029, 2
    %v2374 = vrot.slane %v2030, 2
    %v2375 = vrot.slane %v2035, 2
    %v2376 = vrot.slane %v2036, 2
    %v2377 = vrot.slane %v2041, 2
    %v2378 = vrot.slane %v2042, 2
    %v2379 = vrot.slane %v2047, 2
    %v2380 = vrot.slane %v2048, 2
    %v2381 = vrot.slane %v2053, 2
    %v2382 = vrot.slane %v2054, 2
    %v2383 = vrot.slane %v2059, 2
    %v2384 = vrot.slane %v2060, 2
    %v2385 = vrot.slane %v2065, 2
    %v2386 = vrot.slane %v2066, 2
    %v2403 = vrot.slane %v2023, 3
    %v2404 = vrot.slane %v2024, 3
    %v2405 = vrot.slane %v2029, 3
    %v2406 = vrot.slane %v2030, 3
    %v2407 = vrot.slane %v2035, 3
    %v2408 = vrot.slane %v2036, 3
    %v2409 = vrot.slane %v2041, 3
    %v2410 = vrot.slane %v2042, 3
    %v2411 = vrot.slane %v2047, 3
    %v2412 = vrot.slane %v2048, 3
    %v2413 = vrot.slane %v2053, 3
    %v2414 = vrot.slane %v2054, 3
    %v2415 = vrot.slane %v2059, 3
    %v2416 = vrot.slane %v2060, 3
    %v2417 = vrot.slane %v2065, 3
    %v2418 = vrot.slane %v2066, 3
    %vm2435 = vcmask 1040384
    %v2436 = vsel %vm2435, %v2019, %v2083
    %v2437 = vsel %vm2435, %v2020, %v2084
    %v2438 = vsel %vm2435, %v2025, %v2085
    %v2439 = vsel %vm2435, %v2026, %v2086
    %v2440 = vsel %vm2435, %v2031, %v2087
    %v2441 = vsel %vm2435, %v2032, %v2088
    %v2442 = vsel %vm2435, %v2037, %v2089
    %v2443 = vsel %vm2435, %v2038, %v2090
    %v2444 = vsel %vm2435, %v2043, %v2091
    %v2445 = vsel %vm2435, %v2044, %v2092
    %v2446 = vsel %vm2435, %v2049, %v2093
    %v2447 = vsel %vm2435, %v2050, %v2094
    %v2448 = vsel %vm2435, %v2055, %v2095
    %v2449 = vsel %vm2435, %v2056, %v2096
    %v2450 = vsel %vm2435, %v2061, %v2097
    %v2451 = vsel %vm2435, %v2062, %v2098
    %vm2452 = vcmask 1041408
    %v2453 = vsel %vm2452, %v2436, %v2115
    %v2454 = vsel %vm2452, %v2437, %v2116
    %v2455 = vsel %vm2452, %v2438, %v2117
    %v2456 = vsel %vm2452, %v2439, %v2118
    %v2457 = vsel %vm2452, %v2440, %v2119
    %v2458 = vsel %vm2452, %v2441, %v2120
    %v2459 = vsel %vm2452, %v2442, %v2121
    %v2460 = vsel %vm2452, %v2443, %v2122
    %v2461 = vsel %vm2452, %v2444, %v2123
    %v2462 = vsel %vm2452, %v2445, %v2124
    %v2463 = vsel %vm2452, %v2446, %v2125
    %v2464 = vsel %vm2452, %v2447, %v2126
    %v2465 = vsel %vm2452, %v2448, %v2127
    %v2466 = vsel %vm2452, %v2449, %v2128
    %v2467 = vsel %vm2452, %v2450, %v2129
    %v2468 = vsel %vm2452, %v2451, %v2130
    %vm2469 = vcmask 1042432
    %v2470 = vsel %vm2469, %v2453, %v2147
    %v2471 = vsel %vm2469, %v2454, %v2148
    %v2472 = vsel %vm2469, %v2455, %v2149
    %v2473 = vsel %vm2469, %v2456, %v2150
    %v2474 = vsel %vm2469, %v2457, %v2151
    %v2475 = vsel %vm2469, %v2458, %v2152
    %v2476 = vsel %vm2469, %v2459, %v2153
    %v2477 = vsel %vm2469, %v2460, %v2154
    %v2478 = vsel %vm2469, %v2461, %v2155
    %v2479 = vsel %vm2469, %v2462, %v2156
    %v2480 = vsel %vm2469, %v2463, %v2157
    %v2481 = vsel %vm2469, %v2464, %v2158
    %v2482 = vsel %vm2469, %v2465, %v2159
    %v2483 = vsel %vm2469, %v2466, %v2160
    %v2484 = vsel %vm2469, %v2467, %v2161
    %v2485 = vsel %vm2469, %v2468, %v2162
    %v2486 = vsel %vm1376, %v2470, %v2195
    %v2487 = vsel %vm1376, %v2471, %v2196
    %v2488 = vsel %vm1376, %v2472, %v2197
    %v2489 = vsel %vm1376, %v2473, %v2198
    %v2490 = vsel %vm1376, %v2474, %v2199
    %v2491 = vsel %vm1376, %v2475, %v2200
    %v2492 = vsel %vm1376, %v2476, %v2201
    %v2493 = vsel %vm1376, %v2477, %v2202
    %v2494 = vsel %vm1376, %v2478, %v2203
    %v2495 = vsel %vm1376, %v2479, %v2204
    %v2496 = vsel %vm1376, %v2480, %v2205
    %v2497 = vsel %vm1376, %v2481, %v2206
    %v2498 = vsel %vm1376, %v2482, %v2207
    %v2499 = vsel %vm1376, %v2483, %v2208
    %v2500 = vsel %vm1376, %v2484, %v2209
    %v2501 = vsel %vm1376, %v2485, %v2210
    %v2502 = vsel %vm1017, %v2486, %v2227
    %v2503 = vsel %vm1017, %v2487, %v2228
    %v2504 = vsel %vm1017, %v2488, %v2229
    %v2505 = vsel %vm1017, %v2489, %v2230
    %v2506 = vsel %vm1017, %v2490, %v2231
    %v2507 = vsel %vm1017, %v2491, %v2232
    %v2508 = vsel %vm1017, %v2492, %v2233
    %v2509 = vsel %vm1017, %v2493, %v2234
    %v2510 = vsel %vm1017, %v2494, %v2235
    %v2511 = vsel %vm1017, %v2495, %v2236
    %v2512 = vsel %vm1017, %v2496, %v2237
    %v2513 = vsel %vm1017, %v2497, %v2238
    %v2514 = vsel %vm1017, %v2498, %v2239
    %v2515 = vsel %vm1017, %v2499, %v2240
    %v2516 = vsel %vm1017, %v2500, %v2241
    %v2517 = vsel %vm1017, %v2501, %v2242
    %v2518 = vsel %vm286, %v2502, %v2259
    %v2519 = vsel %vm286, %v2503, %v2260
    %v2520 = vsel %vm286, %v2504, %v2261
    %v2521 = vsel %vm286, %v2505, %v2262
    %v2522 = vsel %vm286, %v2506, %v2263
    %v2523 = vsel %vm286, %v2507, %v2264
    %v2524 = vsel %vm286, %v2508, %v2265
    %v2525 = vsel %vm286, %v2509, %v2266
    %v2526 = vsel %vm286, %v2510, %v2267
    %v2527 = vsel %vm286, %v2511, %v2268
    %v2528 = vsel %vm286, %v2512, %v2269
    %v2529 = vsel %vm286, %v2513, %v2270
    %v2530 = vsel %vm286, %v2514, %v2271
    %v2531 = vsel %vm286, %v2515, %v2272
    %v2532 = vsel %vm286, %v2516, %v2273
    %v2533 = vsel %vm286, %v2517, %v2274
    %v2534 = vsel %vm133, %v2518, %v2291
    %v2535 = vsel %vm133, %v2519, %v2292
    %v2536 = vsel %vm133, %v2520, %v2293
    %v2537 = vsel %vm133, %v2521, %v2294
    %v2538 = vsel %vm133, %v2522, %v2295
    %v2539 = vsel %vm133, %v2523, %v2296
    %v2540 = vsel %vm133, %v2524, %v2297
    %v2541 = vsel %vm133, %v2525, %v2298
    %v2542 = vsel %vm133, %v2526, %v2299
    %v2543 = vsel %vm133, %v2527, %v2300
    %v2544 = vsel %vm133, %v2528, %v2301
    %v2545 = vsel %vm133, %v2529, %v2302
    %v2546 = vsel %vm133, %v2530, %v2303
    %v2547 = vsel %vm133, %v2531, %v2304
    %v2548 = vsel %vm133, %v2532, %v2305
    %v2549 = vsel %vm133, %v2533, %v2306
    %v2550 = vsel %vm2435, %v2023, %v2339
    %v2551 = vsel %vm2435, %v2024, %v2340
    %v2552 = vsel %vm2435, %v2029, %v2341
    %v2553 = vsel %vm2435, %v2030, %v2342
    %v2554 = vsel %vm2435, %v2035, %v2343
    %v2555 = vsel %vm2435, %v2036, %v2344
    %v2556 = vsel %vm2435, %v2041, %v2345
    %v2557 = vsel %vm2435, %v2042, %v2346
    %v2558 = vsel %vm2435, %v2047, %v2347
    %v2559 = vsel %vm2435, %v2048, %v2348
    %v2560 = vsel %vm2435, %v2053, %v2349
    %v2561 = vsel %vm2435, %v2054, %v2350
    %v2562 = vsel %vm2435, %v2059, %v2351
    %v2563 = vsel %vm2435, %v2060, %v2352
    %v2564 = vsel %vm2435, %v2065, %v2353
    %v2565 = vsel %vm2435, %v2066, %v2354
    %v2566 = vsel %vm2452, %v2550, %v2371
    %v2567 = vsel %vm2452, %v2551, %v2372
    %v2568 = vsel %vm2452, %v2552, %v2373
    %v2569 = vsel %vm2452, %v2553, %v2374
    %v2570 = vsel %vm2452, %v2554, %v2375
    %v2571 = vsel %vm2452, %v2555, %v2376
    %v2572 = vsel %vm2452, %v2556, %v2377
    %v2573 = vsel %vm2452, %v2557, %v2378
    %v2574 = vsel %vm2452, %v2558, %v2379
    %v2575 = vsel %vm2452, %v2559, %v2380
    %v2576 = vsel %vm2452, %v2560, %v2381
    %v2577 = vsel %vm2452, %v2561, %v2382
    %v2578 = vsel %vm2452, %v2562, %v2383
    %v2579 = vsel %vm2452, %v2563, %v2384
    %v2580 = vsel %vm2452, %v2564, %v2385
    %v2581 = vsel %vm2452, %v2565, %v2386
    %v2582 = vsel %vm2469, %v2566, %v2403
    %v2583 = vsel %vm2469, %v2567, %v2404
    %v2584 = vsel %vm2469, %v2568, %v2405
    %v2585 = vsel %vm2469, %v2569, %v2406
    %v2586 = vsel %vm2469, %v2570, %v2407
    %v2587 = vsel %vm2469, %v2571, %v2408
    %v2588 = vsel %vm2469, %v2572, %v2409
    %v2589 = vsel %vm2469, %v2573, %v2410
    %v2590 = vsel %vm2469, %v2574, %v2411
    %v2591 = vsel %vm2469, %v2575, %v2412
    %v2592 = vsel %vm2469, %v2576, %v2413
    %v2593 = vsel %vm2469, %v2577, %v2414
    %v2594 = vsel %vm2469, %v2578, %v2415
    %v2595 = vsel %vm2469, %v2579, %v2416
    %v2596 = vsel %vm2469, %v2580, %v2417
    %v2597 = vsel %vm2469, %v2581, %v2418
    %2630 = vrot.lane.b32.xlu0 %v2534, 122
    %v2631 = vpop.permute.xlu0 %2630
    %2632 = vrot.lane.b32.xlu0 %v2535, 122
    %v2633 = vpop.permute.xlu0 %2632
    %2634 = vrot.lane.b32.xlu0 %v2582, 122
    %v2635 = vpop.permute.xlu0 %2634
    %2636 = vrot.lane.b32.xlu0 %v2583, 122
    %v2637 = vpop.permute.xlu0 %2636
    %2638 = vrot.lane.b32.xlu0 %v2536, 122
    %v2639 = vpop.permute.xlu0 %2638
    %2640 = vrot.lane.b32.xlu0 %v2537, 122
    %v2641 = vpop.permute.xlu0 %2640
    %2642 = vrot.lane.b32.xlu0 %v2584, 122
    %v2643 = vpop.permute.xlu0 %2642
    %2644 = vrot.lane.b32.xlu0 %v2585, 122
    %v2645 = vpop.permute.xlu0 %2644
    %2646 = vrot.lane.b32.xlu0 %v2538, 122
    %v2647 = vpop.permute.xlu0 %2646
    %2648 = vrot.lane.b32.xlu0 %v2539, 122
    %v2649 = vpop.permute.xlu0 %2648
    %2650 = vrot.lane.b32.xlu0 %v2586, 122
    %v2651 = vpop.permute.xlu0 %2650
    %2652 = vrot.lane.b32.xlu0 %v2587, 122
    %v2653 = vpop.permute.xlu0 %2652
    %2654 = vrot.lane.b32.xlu0 %v2540, 122
    %v2655 = vpop.permute.xlu0 %2654
    %2656 = vrot.lane.b32.xlu0 %v2541, 122
    %v2657 = vpop.permute.xlu0 %2656
    %2658 = vrot.lane.b32.xlu0 %v2588, 122
    %v2659 = vpop.permute.xlu0 %2658
    %2660 = vrot.lane.b32.xlu0 %v2589, 122
    %v2661 = vpop.permute.xlu0 %2660
    %2662 = vrot.lane.b32.xlu0 %v2542, 122
    %v2663 = vpop.permute.xlu0 %2662
    %2664 = vrot.lane.b32.xlu0 %v2543, 122
    %v2665 = vpop.permute.xlu0 %2664
    %2666 = vrot.lane.b32.xlu0 %v2590, 122
    %v2667 = vpop.permute.xlu0 %2666
    %2668 = vrot.lane.b32.xlu0 %v2591, 122
    %v2669 = vpop.permute.xlu0 %2668
    %2670 = vrot.lane.b32.xlu0 %v2544, 122
    %v2671 = vpop.permute.xlu0 %2670
    %2672 = vrot.lane.b32.xlu0 %v2545, 122
    %v2673 = vpop.permute.xlu0 %2672
    %2674 = vrot.lane.b32.xlu0 %v2592, 122
    %v2675 = vpop.permute.xlu0 %2674
    %2676 = vrot.lane.b32.xlu0 %v2593, 122
    %v2677 = vpop.permute.xlu0 %2676
    %2678 = vrot.lane.b32.xlu0 %v2546, 122
    %v2679 = vpop.permute.xlu0 %2678
    %2680 = vrot.lane.b32.xlu0 %v2547, 122
    %v2681 = vpop.permute.xlu0 %2680
    %2682 = vrot.lane.b32.xlu0 %v2594, 122
    %v2683 = vpop.permute.xlu0 %2682
    %2684 = vrot.lane.b32.xlu0 %v2595, 122
    %v2685 = vpop.permute.xlu0 %2684
    %2686 = vrot.lane.b32.xlu0 %v2548, 122
    %v2687 = vpop.permute.xlu0 %2686
    %2688 = vrot.lane.b32.xlu0 %v2549, 122
    %v2689 = vpop.permute.xlu0 %2688
    %2690 = vrot.lane.b32.xlu0 %v2596, 122
    %v2691 = vpop.permute.xlu0 %2690
    %2692 = vrot.lane.b32.xlu0 %v2597, 122
    %v2693 = vpop.permute.xlu0 %2692
    %vm2694 = vcmask 998400
    %v2695 = vsel %vm2694, %v2631, %v2633
    %v2696 = vsel %vm2694, %v2635, %v2637
    %v2697 = vsel %vm2694, %v2639, %v2641
    %v2698 = vsel %vm2694, %v2643, %v2645
    %v2699 = vsel %vm2694, %v2647, %v2649
    %v2700 = vsel %vm2694, %v2651, %v2653
    %v2701 = vsel %vm2694, %v2655, %v2657
    %v2702 = vsel %vm2694, %v2659, %v2661
    %v2703 = vsel %vm2694, %v2663, %v2665
    %v2704 = vsel %vm2694, %v2667, %v2669
    %v2705 = vsel %vm2694, %v2671, %v2673
    %v2706 = vsel %vm2694, %v2675, %v2677
    %v2707 = vsel %vm2694, %v2679, %v2681
    %v2708 = vsel %vm2694, %v2683, %v2685
    %v2709 = vsel %vm2694, %v2687, %v2689
    %v2710 = vsel %vm2694, %v2691, %v2693
    %v2743 = vmax.f32 %v2534, %v2695
    %v2744 = vmax.f32 %v2535, %v2633
    %v2745 = vmax.f32 %v2582, %v2696
    %v2746 = vmax.f32 %v2583, %v2637
    %v2747 = vmax.f32 %v2536, %v2697
    %v2748 = vmax.f32 %v2537, %v2641
    %v2749 = vmax.f32 %v2584, %v2698
    %v2750 = vmax.f32 %v2585, %v2645
    %v2751 = vmax.f32 %v2538, %v2699
    %v2752 = vmax.f32 %v2539, %v2649
    %v2753 = vmax.f32 %v2586, %v2700
    %v2754 = vmax.f32 %v2587, %v2653
    %v2755 = vmax.f32 %v2540, %v2701
    %v2756 = vmax.f32 %v2541, %v2657
    %v2757 = vmax.f32 %v2588, %v2702
    %v2758 = vmax.f32 %v2589, %v2661
    %v2759 = vmax.f32 %v2542, %v2703
    %v2760 = vmax.f32 %v2543, %v2665
    %v2761 = vmax.f32 %v2590, %v2704
    %v2762 = vmax.f32 %v2591, %v2669
    %v2763 = vmax.f32 %v2544, %v2705
    %v2764 = vmax.f32 %v2545, %v2673
    %v2765 = vmax.f32 %v2592, %v2706
    %v2766 = vmax.f32 %v2593, %v2677
    %v2767 = vmax.f32 %v2546, %v2707
    %v2768 = vmax.f32 %v2547, %v2681
    %v2769 = vmax.f32 %v2594, %v2708
    %v2770 = vmax.f32 %v2595, %v2685
    %v2771 = vmax.f32 %v2548, %v2709
    %v2772 = vmax.f32 %v2549, %v2689
    %v2773 = vmax.f32 %v2596, %v2710
    %v2774 = vmax.f32 %v2597, %v2693
    %2791 = vrot.lane.b32.xlu0 %v2743, 122
    %v2792 = vpop.permute.xlu0 %2791
    %2793 = vrot.lane.b32.xlu0 %v2745, 122
    %v2794 = vpop.permute.xlu0 %2793
    %2795 = vrot.lane.b32.xlu0 %v2747, 122
    %v2796 = vpop.permute.xlu0 %2795
    %2797 = vrot.lane.b32.xlu0 %v2749, 122
    %v2798 = vpop.permute.xlu0 %2797
    %2799 = vrot.lane.b32.xlu0 %v2751, 122
    %v2800 = vpop.permute.xlu0 %2799
    %2801 = vrot.lane.b32.xlu0 %v2753, 122
    %v2802 = vpop.permute.xlu0 %2801
    %2803 = vrot.lane.b32.xlu0 %v2755, 122
    %v2804 = vpop.permute.xlu0 %2803
    %2805 = vrot.lane.b32.xlu0 %v2757, 122
    %v2806 = vpop.permute.xlu0 %2805
    %2807 = vrot.lane.b32.xlu0 %v2759, 122
    %v2808 = vpop.permute.xlu0 %2807
    %2809 = vrot.lane.b32.xlu0 %v2761, 122
    %v2810 = vpop.permute.xlu0 %2809
    %2811 = vrot.lane.b32.xlu0 %v2763, 122
    %v2812 = vpop.permute.xlu0 %2811
    %2813 = vrot.lane.b32.xlu0 %v2765, 122
    %v2814 = vpop.permute.xlu0 %2813
    %2815 = vrot.lane.b32.xlu0 %v2767, 122
    %v2816 = vpop.permute.xlu0 %2815
    %2817 = vrot.lane.b32.xlu0 %v2769, 122
    %v2818 = vpop.permute.xlu0 %2817
    %2819 = vrot.lane.b32.xlu0 %v2771, 122
    %v2820 = vpop.permute.xlu0 %2819
    %2821 = vrot.lane.b32.xlu0 %v2773, 122
    %v2822 = vpop.permute.xlu0 %2821
    %2839 = vrot.lane.b32.xlu0 %v2743, 116
    %v2840 = vpop.permute.xlu0 %2839
    %2841 = vrot.lane.b32.xlu0 %v2745, 116
    %v2842 = vpop.permute.xlu0 %2841
    %2843 = vrot.lane.b32.xlu0 %v2747, 116
    %v2844 = vpop.permute.xlu0 %2843
    %2845 = vrot.lane.b32.xlu0 %v2749, 116
    %v2846 = vpop.permute.xlu0 %2845
    %2847 = vrot.lane.b32.xlu0 %v2751, 116
    %v2848 = vpop.permute.xlu0 %2847
    %2849 = vrot.lane.b32.xlu0 %v2753, 116
    %v2850 = vpop.permute.xlu0 %2849
    %2851 = vrot.lane.b32.xlu0 %v2755, 116
    %v2852 = vpop.permute.xlu0 %2851
    %2853 = vrot.lane.b32.xlu0 %v2757, 116
    %v2854 = vpop.permute.xlu0 %2853
    %2855 = vrot.lane.b32.xlu0 %v2759, 116
    %v2856 = vpop.permute.xlu0 %2855
    %2857 = vrot.lane.b32.xlu0 %v2761, 116
    %v2858 = vpop.permute.xlu0 %2857
    %2859 = vrot.lane.b32.xlu0 %v2763, 116
    %v2860 = vpop.permute.xlu0 %2859
    %2861 = vrot.lane.b32.xlu0 %v2765, 116
    %v2862 = vpop.permute.xlu0 %2861
    %2863 = vrot.lane.b32.xlu0 %v2767, 116
    %v2864 = vpop.permute.xlu0 %2863
    %2865 = vrot.lane.b32.xlu0 %v2769, 116
    %v2866 = vpop.permute.xlu0 %2865
    %2867 = vrot.lane.b32.xlu0 %v2771, 116
    %v2868 = vpop.permute.xlu0 %2867
    %2869 = vrot.lane.b32.xlu0 %v2773, 116
    %v2870 = vpop.permute.xlu0 %2869
    %2887 = vrot.lane.b32.xlu0 %v2743, 110
    %v2888 = vpop.permute.xlu0 %2887
    %2889 = vrot.lane.b32.xlu0 %v2745, 110
    %v2890 = vpop.permute.xlu0 %2889
    %2891 = vrot.lane.b32.xlu0 %v2747, 110
    %v2892 = vpop.permute.xlu0 %2891
    %2893 = vrot.lane.b32.xlu0 %v2749, 110
    %v2894 = vpop.permute.xlu0 %2893
    %2895 = vrot.lane.b32.xlu0 %v2751, 110
    %v2896 = vpop.permute.xlu0 %2895
    %2897 = vrot.lane.b32.xlu0 %v2753, 110
    %v2898 = vpop.permute.xlu0 %2897
    %2899 = vrot.lane.b32.xlu0 %v2755, 110
    %v2900 = vpop.permute.xlu0 %2899
    %2901 = vrot.lane.b32.xlu0 %v2757, 110
    %v2902 = vpop.permute.xlu0 %2901
    %2903 = vrot.lane.b32.xlu0 %v2759, 110
    %v2904 = vpop.permute.xlu0 %2903
    %2905 = vrot.lane.b32.xlu0 %v2761, 110
    %v2906 = vpop.permute.xlu0 %2905
    %2907 = vrot.lane.b32.xlu0 %v2763, 110
    %v2908 = vpop.permute.xlu0 %2907
    %2909 = vrot.lane.b32.xlu0 %v2765, 110
    %v2910 = vpop.permute.xlu0 %2909
    %2911 = vrot.lane.b32.xlu0 %v2767, 110
    %v2912 = vpop.permute.xlu0 %2911
    %2913 = vrot.lane.b32.xlu0 %v2769, 110
    %v2914 = vpop.permute.xlu0 %2913
    %2915 = vrot.lane.b32.xlu0 %v2771, 110
    %v2916 = vpop.permute.xlu0 %2915
    %2917 = vrot.lane.b32.xlu0 %v2773, 110
    %v2918 = vpop.permute.xlu0 %2917
    %2935 = vrot.lane.b32.xlu0 %v2743, 104
    %v2936 = vpop.permute.xlu0 %2935
    %2937 = vrot.lane.b32.xlu0 %v2745, 104
    %v2938 = vpop.permute.xlu0 %2937
    %2939 = vrot.lane.b32.xlu0 %v2747, 104
    %v2940 = vpop.permute.xlu0 %2939
    %2941 = vrot.lane.b32.xlu0 %v2749, 104
    %v2942 = vpop.permute.xlu0 %2941
    %2943 = vrot.lane.b32.xlu0 %v2751, 104
    %v2944 = vpop.permute.xlu0 %2943
    %2945 = vrot.lane.b32.xlu0 %v2753, 104
    %v2946 = vpop.permute.xlu0 %2945
    %2947 = vrot.lane.b32.xlu0 %v2755, 104
    %v2948 = vpop.permute.xlu0 %2947
    %2949 = vrot.lane.b32.xlu0 %v2757, 104
    %v2950 = vpop.permute.xlu0 %2949
    %2951 = vrot.lane.b32.xlu0 %v2759, 104
    %v2952 = vpop.permute.xlu0 %2951
    %2953 = vrot.lane.b32.xlu0 %v2761, 104
    %v2954 = vpop.permute.xlu0 %2953
    %2955 = vrot.lane.b32.xlu0 %v2763, 104
    %v2956 = vpop.permute.xlu0 %2955
    %2957 = vrot.lane.b32.xlu0 %v2765, 104
    %v2958 = vpop.permute.xlu0 %2957
    %2959 = vrot.lane.b32.xlu0 %v2767, 104
    %v2960 = vpop.permute.xlu0 %2959
    %2961 = vrot.lane.b32.xlu0 %v2769, 104
    %v2962 = vpop.permute.xlu0 %2961
    %2963 = vrot.lane.b32.xlu0 %v2771, 104
    %v2964 = vpop.permute.xlu0 %2963
    %2965 = vrot.lane.b32.xlu0 %v2773, 104
    %v2966 = vpop.permute.xlu0 %2965
    %2983 = vrot.lane.b32.xlu0 %v2743, 98
    %v2984 = vpop.permute.xlu0 %2983
    %2985 = vrot.lane.b32.xlu0 %v2745, 98
    %v2986 = vpop.permute.xlu0 %2985
    %2987 = vrot.lane.b32.xlu0 %v2747, 98
    %v2988 = vpop.permute.xlu0 %2987
    %2989 = vrot.lane.b32.xlu0 %v2749, 98
    %v2990 = vpop.permute.xlu0 %2989
    %2991 = vrot.lane.b32.xlu0 %v2751, 98
    %v2992 = vpop.permute.xlu0 %2991
    %2993 = vrot.lane.b32.xlu0 %v2753, 98
    %v2994 = vpop.permute.xlu0 %2993
    %2995 = vrot.lane.b32.xlu0 %v2755, 98
    %v2996 = vpop.permute.xlu0 %2995
    %2997 = vrot.lane.b32.xlu0 %v2757, 98
    %v2998 = vpop.permute.xlu0 %2997
    %2999 = vrot.lane.b32.xlu0 %v2759, 98
    %v3000 = vpop.permute.xlu0 %2999
    %3001 = vrot.lane.b32.xlu0 %v2761, 98
    %v3002 = vpop.permute.xlu0 %3001
    %3003 = vrot.lane.b32.xlu0 %v2763, 98
    %v3004 = vpop.permute.xlu0 %3003
    %3005 = vrot.lane.b32.xlu0 %v2765, 98
    %v3006 = vpop.permute.xlu0 %3005
    %3007 = vrot.lane.b32.xlu0 %v2767, 98
    %v3008 = vpop.permute.xlu0 %3007
    %3009 = vrot.lane.b32.xlu0 %v2769, 98
    %v3010 = vpop.permute.xlu0 %3009
    %3011 = vrot.lane.b32.xlu0 %v2771, 98
    %v3012 = vpop.permute.xlu0 %3011
    %3013 = vrot.lane.b32.xlu0 %v2773, 98
    %v3014 = vpop.permute.xlu0 %3013
    %3031 = vrot.lane.b32.xlu0 %v2743, 92
    %v3032 = vpop.permute.xlu0 %3031
    %3033 = vrot.lane.b32.xlu0 %v2745, 92
    %v3034 = vpop.permute.xlu0 %3033
    %3035 = vrot.lane.b32.xlu0 %v2747, 92
    %v3036 = vpop.permute.xlu0 %3035
    %3037 = vrot.lane.b32.xlu0 %v2749, 92
    %v3038 = vpop.permute.xlu0 %3037
    %3039 = vrot.lane.b32.xlu0 %v2751, 92
    %v3040 = vpop.permute.xlu0 %3039
    %3041 = vrot.lane.b32.xlu0 %v2753, 92
    %v3042 = vpop.permute.xlu0 %3041
    %3043 = vrot.lane.b32.xlu0 %v2755, 92
    %v3044 = vpop.permute.xlu0 %3043
    %3045 = vrot.lane.b32.xlu0 %v2757, 92
    %v3046 = vpop.permute.xlu0 %3045
    %3047 = vrot.lane.b32.xlu0 %v2759, 92
    %v3048 = vpop.permute.xlu0 %3047
    %3049 = vrot.lane.b32.xlu0 %v2761, 92
    %v3050 = vpop.permute.xlu0 %3049
    %3051 = vrot.lane.b32.xlu0 %v2763, 92
    %v3052 = vpop.permute.xlu0 %3051
    %3053 = vrot.lane.b32.xlu0 %v2765, 92
    %v3054 = vpop.permute.xlu0 %3053
    %3055 = vrot.lane.b32.xlu0 %v2767, 92
    %v3056 = vpop.permute.xlu0 %3055
    %3057 = vrot.lane.b32.xlu0 %v2769, 92
    %v3058 = vpop.permute.xlu0 %3057
    %3059 = vrot.lane.b32.xlu0 %v2771, 92
    %v3060 = vpop.permute.xlu0 %3059
    %3061 = vrot.lane.b32.xlu0 %v2773, 92
    %v3062 = vpop.permute.xlu0 %3061
    %3079 = vrot.lane.b32.xlu0 %v2743, 86
    %v3080 = vpop.permute.xlu0 %3079
    %3081 = vrot.lane.b32.xlu0 %v2745, 86
    %v3082 = vpop.permute.xlu0 %3081
    %3083 = vrot.lane.b32.xlu0 %v2747, 86
    %v3084 = vpop.permute.xlu0 %3083
    %3085 = vrot.lane.b32.xlu0 %v2749, 86
    %v3086 = vpop.permute.xlu0 %3085
    %3087 = vrot.lane.b32.xlu0 %v2751, 86
    %v3088 = vpop.permute.xlu0 %3087
    %3089 = vrot.lane.b32.xlu0 %v2753, 86
    %v3090 = vpop.permute.xlu0 %3089
    %3091 = vrot.lane.b32.xlu0 %v2755, 86
    %v3092 = vpop.permute.xlu0 %3091
    %3093 = vrot.lane.b32.xlu0 %v2757, 86
    %v3094 = vpop.permute.xlu0 %3093
    %3095 = vrot.lane.b32.xlu0 %v2759, 86
    %v3096 = vpop.permute.xlu0 %3095
    %3097 = vrot.lane.b32.xlu0 %v2761, 86
    %v3098 = vpop.permute.xlu0 %3097
    %3099 = vrot.lane.b32.xlu0 %v2763, 86
    %v3100 = vpop.permute.xlu0 %3099
    %3101 = vrot.lane.b32.xlu0 %v2765, 86
    %v3102 = vpop.permute.xlu0 %3101
    %3103 = vrot.lane.b32.xlu0 %v2767, 86
    %v3104 = vpop.permute.xlu0 %3103
    %3105 = vrot.lane.b32.xlu0 %v2769, 86
    %v3106 = vpop.permute.xlu0 %3105
    %3107 = vrot.lane.b32.xlu0 %v2771, 86
    %v3108 = vpop.permute.xlu0 %3107
    %3109 = vrot.lane.b32.xlu0 %v2773, 86
    %v3110 = vpop.permute.xlu0 %3109
    %3127 = vrot.lane.b32.xlu0 %v2743, 80
    %v3128 = vpop.permute.xlu0 %3127
    %3129 = vrot.lane.b32.xlu0 %v2745, 80
    %v3130 = vpop.permute.xlu0 %3129
    %3131 = vrot.lane.b32.xlu0 %v2747, 80
    %v3132 = vpop.permute.xlu0 %3131
    %3133 = vrot.lane.b32.xlu0 %v2749, 80
    %v3134 = vpop.permute.xlu0 %3133
    %3135 = vrot.lane.b32.xlu0 %v2751, 80
    %v3136 = vpop.permute.xlu0 %3135
    %3137 = vrot.lane.b32.xlu0 %v2753, 80
    %v3138 = vpop.permute.xlu0 %3137
    %3139 = vrot.lane.b32.xlu0 %v2755, 80
    %v3140 = vpop.permute.xlu0 %3139
    %3141 = vrot.lane.b32.xlu0 %v2757, 80
    %v3142 = vpop.permute.xlu0 %3141
    %3143 = vrot.lane.b32.xlu0 %v2759, 80
    %v3144 = vpop.permute.xlu0 %3143
    %3145 = vrot.lane.b32.xlu0 %v2761, 80
    %v3146 = vpop.permute.xlu0 %3145
    %3147 = vrot.lane.b32.xlu0 %v2763, 80
    %v3148 = vpop.permute.xlu0 %3147
    %3149 = vrot.lane.b32.xlu0 %v2765, 80
    %v3150 = vpop.permute.xlu0 %3149
    %3151 = vrot.lane.b32.xlu0 %v2767, 80
    %v3152 = vpop.permute.xlu0 %3151
    %3153 = vrot.lane.b32.xlu0 %v2769, 80
    %v3154 = vpop.permute.xlu0 %3153
    %3155 = vrot.lane.b32.xlu0 %v2771, 80
    %v3156 = vpop.permute.xlu0 %3155
    %3157 = vrot.lane.b32.xlu0 %v2773, 80
    %v3158 = vpop.permute.xlu0 %3157
    %3175 = vrot.lane.b32.xlu0 %v2743, 74
    %v3176 = vpop.permute.xlu0 %3175
    %3177 = vrot.lane.b32.xlu0 %v2745, 74
    %v3178 = vpop.permute.xlu0 %3177
    %3179 = vrot.lane.b32.xlu0 %v2747, 74
    %v3180 = vpop.permute.xlu0 %3179
    %3181 = vrot.lane.b32.xlu0 %v2749, 74
    %v3182 = vpop.permute.xlu0 %3181
    %3183 = vrot.lane.b32.xlu0 %v2751, 74
    %v3184 = vpop.permute.xlu0 %3183
    %3185 = vrot.lane.b32.xlu0 %v2753, 74
    %v3186 = vpop.permute.xlu0 %3185
    %3187 = vrot.lane.b32.xlu0 %v2755, 74
    %v3188 = vpop.permute.xlu0 %3187
    %3189 = vrot.lane.b32.xlu0 %v2757, 74
    %v3190 = vpop.permute.xlu0 %3189
    %3191 = vrot.lane.b32.xlu0 %v2759, 74
    %v3192 = vpop.permute.xlu0 %3191
    %3193 = vrot.lane.b32.xlu0 %v2761, 74
    %v3194 = vpop.permute.xlu0 %3193
    %3195 = vrot.lane.b32.xlu0 %v2763, 74
    %v3196 = vpop.permute.xlu0 %3195
    %3197 = vrot.lane.b32.xlu0 %v2765, 74
    %v3198 = vpop.permute.xlu0 %3197
    %3199 = vrot.lane.b32.xlu0 %v2767, 74
    %v3200 = vpop.permute.xlu0 %3199
    %3201 = vrot.lane.b32.xlu0 %v2769, 74
    %v3202 = vpop.permute.xlu0 %3201
    %3203 = vrot.lane.b32.xlu0 %v2771, 74
    %v3204 = vpop.permute.xlu0 %3203
    %3205 = vrot.lane.b32.xlu0 %v2773, 74
    %v3206 = vpop.permute.xlu0 %3205
    %3223 = vrot.lane.b32.xlu0 %v2743, 68
    %v3224 = vpop.permute.xlu0 %3223
    %3225 = vrot.lane.b32.xlu0 %v2745, 68
    %v3226 = vpop.permute.xlu0 %3225
    %3227 = vrot.lane.b32.xlu0 %v2747, 68
    %v3228 = vpop.permute.xlu0 %3227
    %3229 = vrot.lane.b32.xlu0 %v2749, 68
    %v3230 = vpop.permute.xlu0 %3229
    %3231 = vrot.lane.b32.xlu0 %v2751, 68
    %v3232 = vpop.permute.xlu0 %3231
    %3233 = vrot.lane.b32.xlu0 %v2753, 68
    %v3234 = vpop.permute.xlu0 %3233
    %3235 = vrot.lane.b32.xlu0 %v2755, 68
    %v3236 = vpop.permute.xlu0 %3235
    %3237 = vrot.lane.b32.xlu0 %v2757, 68
    %v3238 = vpop.permute.xlu0 %3237
    %3239 = vrot.lane.b32.xlu0 %v2759, 68
    %v3240 = vpop.permute.xlu0 %3239
    %3241 = vrot.lane.b32.xlu0 %v2761, 68
    %v3242 = vpop.permute.xlu0 %3241
    %3243 = vrot.lane.b32.xlu0 %v2763, 68
    %v3244 = vpop.permute.xlu0 %3243
    %3245 = vrot.lane.b32.xlu0 %v2765, 68
    %v3246 = vpop.permute.xlu0 %3245
    %3247 = vrot.lane.b32.xlu0 %v2767, 68
    %v3248 = vpop.permute.xlu0 %3247
    %3249 = vrot.lane.b32.xlu0 %v2769, 68
    %v3250 = vpop.permute.xlu0 %3249
    %3251 = vrot.lane.b32.xlu0 %v2771, 68
    %v3252 = vpop.permute.xlu0 %3251
    %3253 = vrot.lane.b32.xlu0 %v2773, 68
    %v3254 = vpop.permute.xlu0 %3253
    %3287 = vrot.lane.b32.xlu0 %v2744, 62
    %v3288 = vpop.permute.xlu0 %3287
    %3289 = vrot.lane.b32.xlu0 %v2746, 62
    %v3290 = vpop.permute.xlu0 %3289
    %3291 = vrot.lane.b32.xlu0 %v2748, 62
    %v3292 = vpop.permute.xlu0 %3291
    %3293 = vrot.lane.b32.xlu0 %v2750, 62
    %v3294 = vpop.permute.xlu0 %3293
    %3295 = vrot.lane.b32.xlu0 %v2752, 62
    %v3296 = vpop.permute.xlu0 %3295
    %3297 = vrot.lane.b32.xlu0 %v2754, 62
    %v3298 = vpop.permute.xlu0 %3297
    %3299 = vrot.lane.b32.xlu0 %v2756, 62
    %v3300 = vpop.permute.xlu0 %3299
    %3301 = vrot.lane.b32.xlu0 %v2758, 62
    %v3302 = vpop.permute.xlu0 %3301
    %3303 = vrot.lane.b32.xlu0 %v2760, 62
    %v3304 = vpop.permute.xlu0 %3303
    %3305 = vrot.lane.b32.xlu0 %v2762, 62
    %v3306 = vpop.permute.xlu0 %3305
    %3307 = vrot.lane.b32.xlu0 %v2764, 62
    %v3308 = vpop.permute.xlu0 %3307
    %3309 = vrot.lane.b32.xlu0 %v2766, 62
    %v3310 = vpop.permute.xlu0 %3309
    %3311 = vrot.lane.b32.xlu0 %v2768, 62
    %v3312 = vpop.permute.xlu0 %3311
    %3313 = vrot.lane.b32.xlu0 %v2770, 62
    %v3314 = vpop.permute.xlu0 %3313
    %3315 = vrot.lane.b32.xlu0 %v2772, 62
    %v3316 = vpop.permute.xlu0 %3315
    %3317 = vrot.lane.b32.xlu0 %v2774, 62
    %v3318 = vpop.permute.xlu0 %3317
    %vm3335 = vcmask 48128
    %v3336 = vsel %vm3335, %v2743, %v2792
    %v3337 = vsel %vm3335, %v2745, %v2794
    %v3338 = vsel %vm3335, %v2747, %v2796
    %v3339 = vsel %vm3335, %v2749, %v2798
    %v3340 = vsel %vm3335, %v2751, %v2800
    %v3341 = vsel %vm3335, %v2753, %v2802
    %v3342 = vsel %vm3335, %v2755, %v2804
    %v3343 = vsel %vm3335, %v2757, %v2806
    %v3344 = vsel %vm3335, %v2759, %v2808
    %v3345 = vsel %vm3335, %v2761, %v2810
    %v3346 = vsel %vm3335, %v2763, %v2812
    %v3347 = vsel %vm3335, %v2765, %v2814
    %v3348 = vsel %vm3335, %v2767, %v2816
    %v3349 = vsel %vm3335, %v2769, %v2818
    %v3350 = vsel %vm3335, %v2771, %v2820
    %v3351 = vsel %vm3335, %v2773, %v2822
    %vm3352 = vcmask 97280
    %v3353 = vsel %vm3352, %v3336, %v2840
    %v3354 = vsel %vm3352, %v3337, %v2842
    %v3355 = vsel %vm3352, %v3338, %v2844
    %v3356 = vsel %vm3352, %v3339, %v2846
    %v3357 = vsel %vm3352, %v3340, %v2848
    %v3358 = vsel %vm3352, %v3341, %v2850
    %v3359 = vsel %vm3352, %v3342, %v2852
    %v3360 = vsel %vm3352, %v3343, %v2854
    %v3361 = vsel %vm3352, %v3344, %v2856
    %v3362 = vsel %vm3352, %v3345, %v2858
    %v3363 = vsel %vm3352, %v3346, %v2860
    %v3364 = vsel %vm3352, %v3347, %v2862
    %v3365 = vsel %vm3352, %v3348, %v2864
    %v3366 = vsel %vm3352, %v3349, %v2866
    %v3367 = vsel %vm3352, %v3350, %v2868
    %v3368 = vsel %vm3352, %v3351, %v2870
    %vm3369 = vcmask 146432
    %v3370 = vsel %vm3369, %v3353, %v2888
    %v3371 = vsel %vm3369, %v3354, %v2890
    %v3372 = vsel %vm3369, %v3355, %v2892
    %v3373 = vsel %vm3369, %v3356, %v2894
    %v3374 = vsel %vm3369, %v3357, %v2896
    %v3375 = vsel %vm3369, %v3358, %v2898
    %v3376 = vsel %vm3369, %v3359, %v2900
    %v3377 = vsel %vm3369, %v3360, %v2902
    %v3378 = vsel %vm3369, %v3361, %v2904
    %v3379 = vsel %vm3369, %v3362, %v2906
    %v3380 = vsel %vm3369, %v3363, %v2908
    %v3381 = vsel %vm3369, %v3364, %v2910
    %v3382 = vsel %vm3369, %v3365, %v2912
    %v3383 = vsel %vm3369, %v3366, %v2914
    %v3384 = vsel %vm3369, %v3367, %v2916
    %v3385 = vsel %vm3369, %v3368, %v2918
    %vm3386 = vcmask 195584
    %v3387 = vsel %vm3386, %v3370, %v2936
    %v3388 = vsel %vm3386, %v3371, %v2938
    %v3389 = vsel %vm3386, %v3372, %v2940
    %v3390 = vsel %vm3386, %v3373, %v2942
    %v3391 = vsel %vm3386, %v3374, %v2944
    %v3392 = vsel %vm3386, %v3375, %v2946
    %v3393 = vsel %vm3386, %v3376, %v2948
    %v3394 = vsel %vm3386, %v3377, %v2950
    %v3395 = vsel %vm3386, %v3378, %v2952
    %v3396 = vsel %vm3386, %v3379, %v2954
    %v3397 = vsel %vm3386, %v3380, %v2956
    %v3398 = vsel %vm3386, %v3381, %v2958
    %v3399 = vsel %vm3386, %v3382, %v2960
    %v3400 = vsel %vm3386, %v3383, %v2962
    %v3401 = vsel %vm3386, %v3384, %v2964
    %v3402 = vsel %vm3386, %v3385, %v2966
    %vm3403 = vcmask 244736
    %v3404 = vsel %vm3403, %v3387, %v2984
    %v3405 = vsel %vm3403, %v3388, %v2986
    %v3406 = vsel %vm3403, %v3389, %v2988
    %v3407 = vsel %vm3403, %v3390, %v2990
    %v3408 = vsel %vm3403, %v3391, %v2992
    %v3409 = vsel %vm3403, %v3392, %v2994
    %v3410 = vsel %vm3403, %v3393, %v2996
    %v3411 = vsel %vm3403, %v3394, %v2998
    %v3412 = vsel %vm3403, %v3395, %v3000
    %v3413 = vsel %vm3403, %v3396, %v3002
    %v3414 = vsel %vm3403, %v3397, %v3004
    %v3415 = vsel %vm3403, %v3398, %v3006
    %v3416 = vsel %vm3403, %v3399, %v3008
    %v3417 = vsel %vm3403, %v3400, %v3010
    %v3418 = vsel %vm3403, %v3401, %v3012
    %v3419 = vsel %vm3403, %v3402, %v3014
    %vm3420 = vcmask 293888
    %v3421 = vsel %vm3420, %v3404, %v3032
    %v3422 = vsel %vm3420, %v3405, %v3034
    %v3423 = vsel %vm3420, %v3406, %v3036
    %v3424 = vsel %vm3420, %v3407, %v3038
    %v3425 = vsel %vm3420, %v3408, %v3040
    %v3426 = vsel %vm3420, %v3409, %v3042
    %v3427 = vsel %vm3420, %v3410, %v3044
    %v3428 = vsel %vm3420, %v3411, %v3046
    %v3429 = vsel %vm3420, %v3412, %v3048
    %v3430 = vsel %vm3420, %v3413, %v3050
    %v3431 = vsel %vm3420, %v3414, %v3052
    %v3432 = vsel %vm3420, %v3415, %v3054
    %v3433 = vsel %vm3420, %v3416, %v3056
    %v3434 = vsel %vm3420, %v3417, %v3058
    %v3435 = vsel %vm3420, %v3418, %v3060
    %v3436 = vsel %vm3420, %v3419, %v3062
    %vm3437 = vcmask 343040
    %v3438 = vsel %vm3437, %v3421, %v3080
    %v3439 = vsel %vm3437, %v3422, %v3082
    %v3440 = vsel %vm3437, %v3423, %v3084
    %v3441 = vsel %vm3437, %v3424, %v3086
    %v3442 = vsel %vm3437, %v3425, %v3088
    %v3443 = vsel %vm3437, %v3426, %v3090
    %v3444 = vsel %vm3437, %v3427, %v3092
    %v3445 = vsel %vm3437, %v3428, %v3094
    %v3446 = vsel %vm3437, %v3429, %v3096
    %v3447 = vsel %vm3437, %v3430, %v3098
    %v3448 = vsel %vm3437, %v3431, %v3100
    %v3449 = vsel %vm3437, %v3432, %v3102
    %v3450 = vsel %vm3437, %v3433, %v3104
    %v3451 = vsel %vm3437, %v3434, %v3106
    %v3452 = vsel %vm3437, %v3435, %v3108
    %v3453 = vsel %vm3437, %v3436, %v3110
    %vm3454 = vcmask 392192
    %v3455 = vsel %vm3454, %v3438, %v3128
    %v3456 = vsel %vm3454, %v3439, %v3130
    %v3457 = vsel %vm3454, %v3440, %v3132
    %v3458 = vsel %vm3454, %v3441, %v3134
    %v3459 = vsel %vm3454, %v3442, %v3136
    %v3460 = vsel %vm3454, %v3443, %v3138
    %v3461 = vsel %vm3454, %v3444, %v3140
    %v3462 = vsel %vm3454, %v3445, %v3142
    %v3463 = vsel %vm3454, %v3446, %v3144
    %v3464 = vsel %vm3454, %v3447, %v3146
    %v3465 = vsel %vm3454, %v3448, %v3148
    %v3466 = vsel %vm3454, %v3449, %v3150
    %v3467 = vsel %vm3454, %v3450, %v3152
    %v3468 = vsel %vm3454, %v3451, %v3154
    %v3469 = vsel %vm3454, %v3452, %v3156
    %v3470 = vsel %vm3454, %v3453, %v3158
    %vm3471 = vcmask 441344
    %v3472 = vsel %vm3471, %v3455, %v3176
    %v3473 = vsel %vm3471, %v3456, %v3178
    %v3474 = vsel %vm3471, %v3457, %v3180
    %v3475 = vsel %vm3471, %v3458, %v3182
    %v3476 = vsel %vm3471, %v3459, %v3184
    %v3477 = vsel %vm3471, %v3460, %v3186
    %v3478 = vsel %vm3471, %v3461, %v3188
    %v3479 = vsel %vm3471, %v3462, %v3190
    %v3480 = vsel %vm3471, %v3463, %v3192
    %v3481 = vsel %vm3471, %v3464, %v3194
    %v3482 = vsel %vm3471, %v3465, %v3196
    %v3483 = vsel %vm3471, %v3466, %v3198
    %v3484 = vsel %vm3471, %v3467, %v3200
    %v3485 = vsel %vm3471, %v3468, %v3202
    %v3486 = vsel %vm3471, %v3469, %v3204
    %v3487 = vsel %vm3471, %v3470, %v3206
    %vm3488 = vcmask 490496
    %v3489 = vsel %vm3488, %v3472, %v3224
    %v3490 = vsel %vm3488, %v3473, %v3226
    %v3491 = vsel %vm3488, %v3474, %v3228
    %v3492 = vsel %vm3488, %v3475, %v3230
    %v3493 = vsel %vm3488, %v3476, %v3232
    %v3494 = vsel %vm3488, %v3477, %v3234
    %v3495 = vsel %vm3488, %v3478, %v3236
    %v3496 = vsel %vm3488, %v3479, %v3238
    %v3497 = vsel %vm3488, %v3480, %v3240
    %v3498 = vsel %vm3488, %v3481, %v3242
    %v3499 = vsel %vm3488, %v3482, %v3244
    %v3500 = vsel %vm3488, %v3483, %v3246
    %v3501 = vsel %vm3488, %v3484, %v3248
    %v3502 = vsel %vm3488, %v3485, %v3250
    %v3503 = vsel %vm3488, %v3486, %v3252
    %v3504 = vsel %vm3488, %v3487, %v3254
    %vm3505 = vcmask 539648
    %v3506 = vsel %vm3505, %v3489, %v3288
    %v3507 = vsel %vm3505, %v3490, %v3290
    %v3508 = vsel %vm3505, %v3491, %v3292
    %v3509 = vsel %vm3505, %v3492, %v3294
    %v3510 = vsel %vm3505, %v3493, %v3296
    %v3511 = vsel %vm3505, %v3494, %v3298
    %v3512 = vsel %vm3505, %v3495, %v3300
    %v3513 = vsel %vm3505, %v3496, %v3302
    %v3514 = vsel %vm3505, %v3497, %v3304
    %v3515 = vsel %vm3505, %v3498, %v3306
    %v3516 = vsel %vm3505, %v3499, %v3308
    %v3517 = vsel %vm3505, %v3500, %v3310
    %v3518 = vsel %vm3505, %v3501, %v3312
    %v3519 = vsel %vm3505, %v3502, %v3314
    %v3520 = vsel %vm3505, %v3503, %v3316
    %v3521 = vsel %vm3505, %v3504, %v3318
    %v3522 = vpack.c.bf16 %v3508, %v3506
    %v3523 = vpack.c.bf16 %v3512, %v3510
    %v3524 = vpack.c.bf16 %v3516, %v3514
    %v3525 = vpack.c.bf16 %v3520, %v3518
    %v3526 = vld [vmem:[%s3] sm:$0xf]
    %v3527 = vld [vmem:[%s3 + $0x4] sm:$0xf]
    %v3528 = vld [vmem:[%s3 + $0x8] sm:$0xf]
    %v3529 = vld [vmem:[%s3 + $0xc] sm:$0xf]
    %v3530 = vld [vmem:[%s3 + $0x10] sm:$0xf]
    %v3531 = vld [vmem:[%s3 + $0x14] sm:$0xf]
    %v3532 = vld [vmem:[%s3 + $0x18] sm:$0xf]
    %v3533 = vld [vmem:[%s3 + $0x1c] sm:$0xf]
    %v3534 = vld [vmem:[%s3 + $0x20] sm:$0xf]
    %v3551 = vrot.slane %v3506, 1
    %v3552 = vrot.slane %v3507, 1
    %v3553 = vsel %vm133, %v3551, %v3552
    %v3554 = vrot.slane %v3508, 1
    %v3555 = vrot.slane %v3509, 1
    %v3556 = vsel %vm133, %v3554, %v3555
    %v3557 = vrot.slane %v3510, 1
    %v3558 = vrot.slane %v3511, 1
    %v3559 = vsel %vm133, %v3557, %v3558
    %v3560 = vrot.slane %v3512, 1
    %v3561 = vrot.slane %v3513, 1
    %v3562 = vsel %vm133, %v3560, %v3561
    %v3563 = vrot.slane %v3514, 1
    %v3564 = vrot.slane %v3515, 1
    %v3565 = vsel %vm133, %v3563, %v3564
    %v3566 = vrot.slane %v3516, 1
    %v3567 = vrot.slane %v3517, 1
    %v3568 = vsel %vm133, %v3566, %v3567
    %v3569 = vrot.slane %v3518, 1
    %v3570 = vrot.slane %v3519, 1
    %v3571 = vsel %vm133, %v3569, %v3570
    %v3572 = vrot.slane %v3520, 1
    %v3573 = vrot.slane %v3521, 1
    %v3574 = vsel %vm133, %v3572, %v3573
    %v3583 = vpack.c.bf16 %v3556, %v3553
    %v3584 = vpack.c.bf16 %v3562, %v3559
    %v3585 = vpack.c.bf16 %v3568, %v3565
    %v3586 = vpack.c.bf16 %v3574, %v3571
    %s3587 = scalar_lea.vmem %s3, 36
    %v3588 = vld [vmem:[%s3587] sm:$0xf]
    %v3589 = vld [vmem:[%s3587 + $0x4] sm:$0xf]
    %v3590 = vld [vmem:[%s3587 + $0x8] sm:$0xf]
    %v3591 = vld [vmem:[%s3587 + $0xc] sm:$0xf]
    %v3592 = vld [vmem:[%s3587 + $0x10] sm:$0xf]
    %v3593 = vld [vmem:[%s3587 + $0x14] sm:$0xf]
    %v3594 = vld [vmem:[%s3587 + $0x18] sm:$0xf]
    %v3595 = vld [vmem:[%s3587 + $0x1c] sm:$0xf]
    %v3596 = vld [vmem:[%s3587 + $0x20] sm:$0xf]
    %v3606 = vunpack.c.l.b16 %v3588
    %v3607 = vunpack.c.l.b16 %v3589
    %v3608 = vunpack.c.l.b16 %v3590
    %v3609 = vunpack.c.l.b16 %v3591
    %v3610 = vunpack.c.l.b16 %v3592
    %v3611 = vunpack.c.l.b16 %v3593
    %v3612 = vunpack.c.l.b16 %v3594
    %v3613 = vunpack.c.l.b16 %v3595
    %v3614 = vunpack.c.l.b16 %v3596
    %v3615 = vpack.c.b16 %v3607, %v3606
    %v3616 = vpack.c.b16 %v3609, %v3608
    %v3617 = vpack.c.b16 %v3611, %v3610
    %v3618 = vpack.c.b16 %v3613, %v3612
    %v3619 = vpack.c.b16 %v3614, %v3614
    %vm3624 = vcmask 588800
    %v3626 = vsel %vm3624, %v3583, 0
    %v3629 = vsel %vm3624, %v3584, 0
    %v3632 = vsel %vm3624, %v3585, 0
    %v3635 = vsel %vm3624, %v3586, 0
    %v3638 = vsel %vm1376, %v3619, 0
    %3640 = vmatprep.subr.bf16.mxu0 0
    %3641 = vmatpush1.bf16.msra.mxu0 %v3615
    %3642 = vmatprep.subr.bf16.mxu0 0
    %3643 = vmatpush1.bf16.msra.mxu0 %v3616
    %3644 = vmatprep.subr.bf16.mxu0 0
    %3645 = vmatpush1.bf16.msra.mxu0 %v3617
    %3646 = vmatprep.subr.bf16.mxu0 0
    %3647 = vmatpush1.bf16.msra.mxu0 %v3618
    %3648 = vmatprep.subr.bf16.mxu0 0
    %3649 = vmatpush1.bf16.msra.mxu0 %v3638
    %3650 = vmatprep.subr.bf16.mxu0 0
    %3651 = vmatpush1.bf16.msra.mxu0 0
    %3652 = vmatprep.subr.bf16.mxu0 0
    %3653 = vmatpush1.bf16.msra.mxu0 0
    %3654 = vmatprep.subr.bf16.mxu0 0
    %3655 = vmatpush1.bf16.msra.mxu0 0
    %3656 = vmatprep.subr.bf16.mxu0 0
    %3657 = vmatpush1.bf16.msra.mxu0 0
    %3658 = vmatprep.subr.bf16.mxu0 0
    %3659 = vmatpush1.bf16.msra.mxu0 0
    %3660 = vmatprep.subr.bf16.mxu0 0
    %3661 = vmatpush1.bf16.msra.mxu0 0
    %3662 = vmatprep.subr.bf16.mxu0 0
    %3663 = vmatpush1.bf16.msra.mxu0 0
    %3664 = vmatprep.subr.bf16.mxu0 0
    %3665 = vmatpush1.bf16.msra.mxu0 0
    %3666 = vmatprep.subr.bf16.mxu0 0
    %3667 = vmatpush1.bf16.msra.mxu0 0
    %3668 = vmatprep.subr.bf16.mxu0 0
    %3669 = vmatpush1.bf16.msra.mxu0 0
    %3670 = vmatprep.subr.bf16.mxu0 0
    %3671 = vmatpush1.bf16.msra.mxu0 0
    %3672 = vmatprep.mubr.bf16.mxu0 0
    %3673 = vmatmul.mubr.bf16.gmra.mrb[0].mxu0 %v3626
    %v3674 = vpop.f32.mrb[0].mxu0
    %v3675 = vadd.f32 0.0, %v3674
    %v3676 = vpop.f32.mrb[0].mxu0
    %v3677 = vpop.f32.mrb[0].mxu0
    %v3678 = vadd.f32 0.0, %v3677
    %v3679 = vpop.f32.mrb[0].mxu0
    %3680 = vmatprep.mubr.bf16.mxu0 0
    %3681 = vmatmul.mubr.bf16.gmra.mrb[0].mxu0 %v3629
    %v3682 = vpop.f32.mrb[0].mxu0
    %v3683 = vadd.f32 0.0, %v3682
    %v3684 = vpop.f32.mrb[0].mxu0
    %v3685 = vpop.f32.mrb[0].mxu0
    %v3686 = vadd.f32 0.0, %v3685
    %v3687 = vpop.f32.mrb[0].mxu0
    %3688 = vmatprep.mubr.bf16.mxu0 0
    %3689 = vmatmul.mubr.bf16.gmra.mrb[0].mxu0 %v3632
    %v3690 = vpop.f32.mrb[0].mxu0
    %v3691 = vadd.f32 0.0, %v3690
    %v3692 = vpop.f32.mrb[0].mxu0
    %v3693 = vpop.f32.mrb[0].mxu0
    %v3694 = vadd.f32 0.0, %v3693
    %v3695 = vpop.f32.mrb[0].mxu0
    %3696 = vmatprep.mubr.bf16.mxu0 0
    %3697 = vmatmul.mubr.bf16.gmra.mrb[0].mxu0 %v3635
    %v3698 = vpop.f32.mrb[0].mxu0
    %v3699 = vadd.f32 0.0, %v3698
    %v3700 = vpop.f32.mrb[0].mxu0
    %v3701 = vpop.f32.mrb[0].mxu0
    %v3702 = vadd.f32 0.0, %v3701
    %v3703 = vpop.f32.mrb[0].mxu0
    %3704 = vdwg.mxu0
    %v3714 = vunpack.c.l.b16 %v3526
    %v3715 = vunpack.c.l.b16 %v3527
    %v3716 = vunpack.c.l.b16 %v3528
    %v3717 = vunpack.c.l.b16 %v3529
    %v3718 = vunpack.c.l.b16 %v3530
    %v3719 = vunpack.c.l.b16 %v3531
    %v3720 = vunpack.c.l.b16 %v3532
    %v3721 = vunpack.c.l.b16 %v3533
    %v3722 = vunpack.c.l.b16 %v3534
    %v3723 = vpack.c.b16 %v3715, %v3714
    %v3724 = vpack.c.b16 %v3717, %v3716
    %v3725 = vpack.c.b16 %v3719, %v3718
    %v3726 = vpack.c.b16 %v3721, %v3720
    %v3727 = vpack.c.b16 %v3722, %v3722
    %v3733 = vsel %vm3624, %v3522, 0
    %v3736 = vsel %vm3624, %v3523, 0
    %v3739 = vsel %vm3624, %v3524, 0
    %v3742 = vsel %vm3624, %v3525, 0
    %v3745 = vsel %vm1376, %v3727, 0
    %3747 = vmatprep.subr.bf16.mxu0 0
    %3748 = vmatpush1.bf16.msra.mxu0 %v3723
    %3749 = vmatprep.subr.bf16.mxu0 0
    %3750 = vmatpush1.bf16.msra.mxu0 %v3724
    %3751 = vmatprep.subr.bf16.mxu0 0
    %3752 = vmatpush1.bf16.msra.mxu0 %v3725
    %3753 = vmatprep.subr.bf16.mxu0 0
    %3754 = vmatpush1.bf16.msra.mxu0 %v3726
    %3755 = vmatprep.subr.bf16.mxu0 0
    %3756 = vmatpush1.bf16.msra.mxu0 %v3745
    %3757 = vmatprep.subr.bf16.mxu0 0
    %3758 = vmatpush1.bf16.msra.mxu0 0
    %3759 = vmatprep.subr.bf16.mxu0 0
    %3760 = vmatpush1.bf16.msra.mxu0 0
    %3761 = vmatprep.subr.bf16.mxu0 0
    %3762 = vmatpush1.bf16.msra.mxu0 0
    %3763 = vmatprep.subr.bf16.mxu0 0
    %3764 = vmatpush1.bf16.msra.mxu0 0
    %3765 = vmatprep.subr.bf16.mxu0 0
    %3766 = vmatpush1.bf16.msra.mxu0 0
    %3767 = vmatprep.subr.bf16.mxu0 0
    %3768 = vmatpush1.bf16.msra.mxu0 0
    %3769 = vmatprep.subr.bf16.mxu0 0
    %3770 = vmatpush1.bf16.msra.mxu0 0
    %3771 = vmatprep.subr.bf16.mxu0 0
    %3772 = vmatpush1.bf16.msra.mxu0 0
    %3773 = vmatprep.subr.bf16.mxu0 0
    %3774 = vmatpush1.bf16.msra.mxu0 0
    %3775 = vmatprep.subr.bf16.mxu0 0
    %3776 = vmatpush1.bf16.msra.mxu0 0
    %3777 = vmatprep.subr.bf16.mxu0 0
    %3778 = vmatpush1.bf16.msra.mxu0 0
    %3779 = vmatprep.mubr.bf16.mxu0 0
    %3780 = vmatmul.mubr.bf16.gmra.mrb[0].mxu0 %v3733
    %v3781 = vpop.f32.mrb[0].mxu0
    %v3782 = vadd.f32 %v3675, %v3781
    %v3783 = vpop.f32.mrb[0].mxu0
    %v3784 = vpop.f32.mrb[0].mxu0
    %v3785 = vadd.f32 %v3678, %v3784
    %v3786 = vpop.f32.mrb[0].mxu0
    %3787 = vmatprep.mubr.bf16.mxu0 0
    %3788 = vmatmul.mubr.bf16.gmra.mrb[0].mxu0 %v3736
    %v3789 = vpop.f32.mrb[0].mxu0
    %v3790 = vadd.f32 %v3683, %v3789
    %v3791 = vpop.f32.mrb[0].mxu0
    %v3792 = vpop.f32.mrb[0].mxu0
    %v3793 = vadd.f32 %v3686, %v3792
    %v3794 = vpop.f32.mrb[0].mxu0
    %3795 = vmatprep.mubr.bf16.mxu0 0
    %3796 = vmatmul.mubr.bf16.gmra.mrb[0].mxu0 %v3739
    %v3797 = vpop.f32.mrb[0].mxu0
    %v3798 = vadd.f32 %v3691, %v3797
    %v3799 = vpop.f32.mrb[0].mxu0
    %v3800 = vpop.f32.mrb[0].mxu0
    %v3801 = vadd.f32 %v3694, %v3800
    %v3802 = vpop.f32.mrb[0].mxu0
    %3803 = vmatprep.mubr.bf16.mxu0 0
    %3804 = vmatmul.mubr.bf16.gmra.mrb[0].mxu0 %v3742
    %v3805 = vpop.f32.mrb[0].mxu0
    %v3806 = vadd.f32 %v3699, %v3805
    %v3807 = vpop.f32.mrb[0].mxu0
    %v3808 = vpop.f32.mrb[0].mxu0
    %v3809 = vadd.f32 %v3702, %v3808
    %v3810 = vpop.f32.mrb[0].mxu0
    %3811 = vdwg.mxu0
    %v3812 = vrot.slane %v3506, 2
    %v3813 = vrot.slane %v3507, 2
    %v3814 = vsel %vm286, %v3812, %v3813
    %v3815 = vrot.slane %v3508, 2
    %v3816 = vrot.slane %v3509, 2
    %v3817 = vsel %vm286, %v3815, %v3816
    %v3818 = vrot.slane %v3510, 2
    %v3819 = vrot.slane %v3511, 2
    %v3820 = vsel %vm286, %v3818, %v3819
    %v3821 = vrot.slane %v3512, 2
    %v3822 = vrot.slane %v3513, 2
    %v3823 = vsel %vm286, %v3821, %v3822
    %v3824 = vrot.slane %v3514, 2
    %v3825 = vrot.slane %v3515, 2
    %v3826 = vsel %vm286, %v3824, %v3825
    %v3827 = vrot.slane %v3516, 2
    %v3828 = vrot.slane %v3517, 2
    %v3829 = vsel %vm286, %v3827, %v3828
    %v3830 = vrot.slane %v3518, 2
    %v3831 = vrot.slane %v3519, 2
    %v3832 = vsel %vm286, %v3830, %v3831
    %v3833 = vrot.slane %v3520, 2
    %v3834 = vrot.slane %v3521, 2
    %v3835 = vsel %vm286, %v3833, %v3834
    %v3844 = vpack.c.bf16 %v3817, %v3814
    %v3845 = vpack.c.bf16 %v3823, %v3820
    %v3846 = vpack.c.bf16 %v3829, %v3826
    %v3847 = vpack.c.bf16 %v3835, %v3832
    %s3848 = scalar_lea.vmem %s3, 72
    %v3849 = vld [vmem:[%s3848] sm:$0xf]
    %v3850 = vld [vmem:[%s3848 + $0x4] sm:$0xf]
    %v3851 = vld [vmem:[%s3848 + $0x8] sm:$0xf]
    %v3852 = vld [vmem:[%s3848 + $0xc] sm:$0xf]
    %v3853 = vld [vmem:[%s3848 + $0x10] sm:$0xf]
    %v3854 = vld [vmem:[%s3848 + $0x14] sm:$0xf]
    %v3855 = vld [vmem:[%s3848 + $0x18] sm:$0xf]
    %v3856 = vld [vmem:[%s3848 + $0x1c] sm:$0xf]
    %v3857 = vld [vmem:[%s3848 + $0x20] sm:$0xf]
    %v3867 = vunpack.c.l.b16 %v3849
    %v3868 = vunpack.c.l.b16 %v3850
    %v3869 = vunpack.c.l.b16 %v3851
    %v3870 = vunpack.c.l.b16 %v3852
    %v3871 = vunpack.c.l.b16 %v3853
    %v3872 = vunpack.c.l.b16 %v3854
    %v3873 = vunpack.c.l.b16 %v3855
    %v3874 = vunpack.c.l.b16 %v3856
    %v3875 = vunpack.c.l.b16 %v3857
    %v3876 = vpack.c.b16 %v3868, %v3867
    %v3877 = vpack.c.b16 %v3870, %v3869
    %v3878 = vpack.c.b16 %v3872, %v3871
    %v3879 = vpack.c.b16 %v3874, %v3873
    %v3880 = vpack.c.b16 %v3875, %v3875
    %v3886 = vsel %vm3624, %v3844, 0
    %v3889 = vsel %vm3624, %v3845, 0
    %v3892 = vsel %vm3624, %v3846, 0
    %v3895 = vsel %vm3624, %v3847, 0
    %v3898 = vsel %vm1376, %v3880, 0
    %3900 = vmatprep.subr.bf16.mxu0 0
    %3901 = vmatpush1.bf16.msra.mxu0 %v3876
    %3902 = vmatprep.subr.bf16.mxu0 0
    %3903 = vmatpush1.bf16.msra.mxu0 %v3877
    %3904 = vmatprep.subr.bf16.mxu0 0
    %3905 = vmatpush1.bf16.msra.mxu0 %v3878
    %3906 = vmatprep.subr.bf16.mxu0 0
    %3907 = vmatpush1.bf16.msra.mxu0 %v3879
    %3908 = vmatprep.subr.bf16.mxu0 0
    %3909 = vmatpush1.bf16.msra.mxu0 %v3898
    %3910 = vmatprep.subr.bf16.mxu0 0
    %3911 = vmatpush1.bf16.msra.mxu0 0
    %3912 = vmatprep.subr.bf16.mxu0 0
    %3913 = vmatpush1.bf16.msra.mxu0 0
    %3914 = vmatprep.subr.bf16.mxu0 0
    %3915 = vmatpush1.bf16.msra.mxu0 0
    %3916 = vmatprep.subr.bf16.mxu0 0
    %3917 = vmatpush1.bf16.msra.mxu0 0
    %3918 = vmatprep.subr.bf16.mxu0 0
    %3919 = vmatpush1.bf16.msra.mxu0 0
    %3920 = vmatprep.subr.bf16.mxu0 0
    %3921 = vmatpush1.bf16.msra.mxu0 0
    %3922 = vmatprep.subr.bf16.mxu0 0
    %3923 = vmatpush1.bf16.msra.mxu0 0
    %3924 = vmatprep.subr.bf16.mxu0 0
    %3925 = vmatpush1.bf16.msra.mxu0 0
    %3926 = vmatprep.subr.bf16.mxu0 0
    %3927 = vmatpush1.bf16.msra.mxu0 0
    %3928 = vmatprep.subr.bf16.mxu0 0
    %3929 = vmatpush1.bf16.msra.mxu0 0
    %3930 = vmatprep.subr.bf16.mxu0 0
    %3931 = vmatpush1.bf16.msra.mxu0 0
    %3932 = vmatprep.mubr.bf16.mxu0 0
    %3933 = vmatmul.mubr.bf16.gmra.mrb[0].mxu0 %v3886
    %v3934 = vpop.f32.mrb[0].mxu0
    %v3935 = vadd.f32 0.0, %v3934
    %v3936 = vpop.f32.mrb[0].mxu0
    %v3937 = vpop.f32.mrb[0].mxu0
    %v3938 = vadd.f32 0.0, %v3937
    %v3939 = vpop.f32.mrb[0].mxu0
    %3940 = vmatprep.mubr.bf16.mxu0 0
    %3941 = vmatmul.mubr.bf16.gmra.mrb[0].mxu0 %v3889
    %v3942 = vpop.f32.mrb[0].mxu0
    %v3943 = vadd.f32 0.0, %v3942
    %v3944 = vpop.f32.mrb[0].mxu0
    %v3945 = vpop.f32.mrb[0].mxu0
    %v3946 = vadd.f32 0.0, %v3945
    %v3947 = vpop.f32.mrb[0].mxu0
    %3948 = vmatprep.mubr.bf16.mxu0 0
    %3949 = vmatmul.mubr.bf16.gmra.mrb[0].mxu0 %v3892
    %v3950 = vpop.f32.mrb[0].mxu0
    %v3951 = vadd.f32 0.0, %v3950
    %v3952 = vpop.f32.mrb[0].mxu0
    %v3953 = vpop.f32.mrb[0].mxu0
    %v3954 = vadd.f32 0.0, %v3953
    %v3955 = vpop.f32.mrb[0].mxu0
    %3956 = vmatprep.mubr.bf16.mxu0 0
    %3957 = vmatmul.mubr.bf16.gmra.mrb[0].mxu0 %v3895
    %v3958 = vpop.f32.mrb[0].mxu0
    %v3959 = vadd.f32 0.0, %v3958
    %v3960 = vpop.f32.mrb[0].mxu0
    %v3961 = vpop.f32.mrb[0].mxu0
    %v3962 = vadd.f32 0.0, %v3961
    %v3963 = vpop.f32.mrb[0].mxu0
    %3964 = vdwg.mxu0
    %v3965 = vadd.f32 %v3782, %v3935
    %v3966 = vadd.f32 %v3785, %v3938
    %v3967 = vadd.f32 %v3790, %v3943
    %v3968 = vadd.f32 %v3793, %v3946
    %v3969 = vadd.f32 %v3798, %v3951
    %v3970 = vadd.f32 %v3801, %v3954
    %v3971 = vadd.f32 %v3806, %v3959
    %v3972 = vadd.f32 %v3809, %v3962
    %v3973 = vrot.slane %v3506, 3
    %v3974 = vrot.slane %v3507, 3
    %v3975 = vsel %vm1017, %v3973, %v3974
    %v3976 = vrot.slane %v3508, 3
    %v3977 = vrot.slane %v3509, 3
    %v3978 = vsel %vm1017, %v3976, %v3977
    %v3979 = vrot.slane %v3510, 3
    %v3980 = vrot.slane %v3511, 3
    %v3981 = vsel %vm1017, %v3979, %v3980
    %v3982 = vrot.slane %v3512, 3
    %v3983 = vrot.slane %v3513, 3
    %v3984 = vsel %vm1017, %v3982, %v3983
    %v3985 = vrot.slane %v3514, 3
    %v3986 = vrot.slane %v3515, 3
    %v3987 = vsel %vm1017, %v3985, %v3986
    %v3988 = vrot.slane %v3516, 3
    %v3989 = vrot.slane %v3517, 3
    %v3990 = vsel %vm1017, %v3988, %v3989
    %v3991 = vrot.slane %v3518, 3
    %v3992 = vrot.slane %v3519, 3
    %v3993 = vsel %vm1017, %v3991, %v3992
    %v3994 = vrot.slane %v3520, 3
    %v3995 = vrot.slane %v3521, 3
    %v3996 = vsel %vm1017, %v3994, %v3995
    %v4005 = vpack.c.bf16 %v3978, %v3975
    %v4006 = vpack.c.bf16 %v3984, %v3981
    %v4007 = vpack.c.bf16 %v3990, %v3987
    %v4008 = vpack.c.bf16 %v3996, %v3993
    %s4009 = scalar_lea.vmem %s3, 108
    %v4010 = vld [vmem:[%s4009] sm:$0xf]
    %v4011 = vld [vmem:[%s4009 + $0x4] sm:$0xf]
    %v4012 = vld [vmem:[%s4009 + $0x8] sm:$0xf]
    %v4013 = vld [vmem:[%s4009 + $0xc] sm:$0xf]
    %v4014 = vld [vmem:[%s4009 + $0x10] sm:$0xf]
    %v4015 = vld [vmem:[%s4009 + $0x14] sm:$0xf]
    %v4016 = vld [vmem:[%s4009 + $0x18] sm:$0xf]
    %v4017 = vld [vmem:[%s4009 + $0x1c] sm:$0xf]
    %v4018 = vld [vmem:[%s4009 + $0x20] sm:$0xf]
    %v4028 = vunpack.c.l.b16 %v4010
    %v4029 = vunpack.c.l.b16 %v4011
    %v4030 = vunpack.c.l.b16 %v4012
    %v4031 = vunpack.c.l.b16 %v4013
    %v4032 = vunpack.c.l.b16 %v4014
    %v4033 = vunpack.c.l.b16 %v4015
    %v4034 = vunpack.c.l.b16 %v4016
    %v4035 = vunpack.c.l.b16 %v4017
    %v4036 = vunpack.c.l.b16 %v4018
    %v4037 = vpack.c.b16 %v4029, %v4028
    %v4038 = vpack.c.b16 %v4031, %v4030
    %v4039 = vpack.c.b16 %v4033, %v4032
    %v4040 = vpack.c.b16 %v4035, %v4034
    %v4041 = vpack.c.b16 %v4036, %v4036
    %v4047 = vsel %vm3624, %v4005, 0
    %v4050 = vsel %vm3624, %v4006, 0
    %v4053 = vsel %vm3624, %v4007, 0
    %v4056 = vsel %vm3624, %v4008, 0
    %v4059 = vsel %vm1376, %v4041, 0
    %4061 = vmatprep.subr.bf16.mxu0 0
    %4062 = vmatpush1.bf16.msra.mxu0 %v4037
    %4063 = vmatprep.subr.bf16.mxu0 0
    %4064 = vmatpush1.bf16.msra.mxu0 %v4038
    %4065 = vmatprep.subr.bf16.mxu0 0
    %4066 = vmatpush1.bf16.msra.mxu0 %v4039
    %4067 = vmatprep.subr.bf16.mxu0 0
    %4068 = vmatpush1.bf16.msra.mxu0 %v4040
    %4069 = vmatprep.subr.bf16.mxu0 0
    %4070 = vmatpush1.bf16.msra.mxu0 %v4059
    %4071 = vmatprep.subr.bf16.mxu0 0
    %4072 = vmatpush1.bf16.msra.mxu0 0
    %4073 = vmatprep.subr.bf16.mxu0 0
    %4074 = vmatpush1.bf16.msra.mxu0 0
    %4075 = vmatprep.subr.bf16.mxu0 0
    %4076 = vmatpush1.bf16.msra.mxu0 0
    %4077 = vmatprep.subr.bf16.mxu0 0
    %4078 = vmatpush1.bf16.msra.mxu0 0
    %4079 = vmatprep.subr.bf16.mxu0 0
    %4080 = vmatpush1.bf16.msra.mxu0 0
    %4081 = vmatprep.subr.bf16.mxu0 0
    %4082 = vmatpush1.bf16.msra.mxu0 0
    %4083 = vmatprep.subr.bf16.mxu0 0
    %4084 = vmatpush1.bf16.msra.mxu0 0
    %4085 = vmatprep.subr.bf16.mxu0 0
    %4086 = vmatpush1.bf16.msra.mxu0 0
    %4087 = vmatprep.subr.bf16.mxu0 0
    %4088 = vmatpush1.bf16.msra.mxu0 0
    %4089 = vmatprep.subr.bf16.mxu0 0
    %4090 = vmatpush1.bf16.msra.mxu0 0
    %4091 = vmatprep.subr.bf16.mxu0 0
    %4092 = vmatpush1.bf16.msra.mxu0 0
    %4093 = vmatprep.mubr.bf16.mxu0 0
    %4094 = vmatmul.mubr.bf16.gmra.mrb[0].mxu0 %v4047
    %v4095 = vpop.f32.mrb[0].mxu0
    %v4096 = vadd.f32 0.0, %v4095
    %v4097 = vpop.f32.mrb[0].mxu0
    %v4098 = vpop.f32.mrb[0].mxu0
    %v4099 = vadd.f32 0.0, %v4098
    %v4100 = vpop.f32.mrb[0].mxu0
    %4101 = vmatprep.mubr.bf16.mxu0 0
    %4102 = vmatmul.mubr.bf16.gmra.mrb[0].mxu0 %v4050
    %v4103 = vpop.f32.mrb[0].mxu0
    %v4104 = vadd.f32 0.0, %v4103
    %v4105 = vpop.f32.mrb[0].mxu0
    %v4106 = vpop.f32.mrb[0].mxu0
    %v4107 = vadd.f32 0.0, %v4106
    %v4108 = vpop.f32.mrb[0].mxu0
    %4109 = vmatprep.mubr.bf16.mxu0 0
    %4110 = vmatmul.mubr.bf16.gmra.mrb[0].mxu0 %v4053
    %v4111 = vpop.f32.mrb[0].mxu0
    %v4112 = vadd.f32 0.0, %v4111
    %v4113 = vpop.f32.mrb[0].mxu0
    %v4114 = vpop.f32.mrb[0].mxu0
    %v4115 = vadd.f32 0.0, %v4114
    %v4116 = vpop.f32.mrb[0].mxu0
    %4117 = vmatprep.mubr.bf16.mxu0 0
    %4118 = vmatmul.mubr.bf16.gmra.mrb[0].mxu0 %v4056
    %v4119 = vpop.f32.mrb[0].mxu0
    %v4120 = vadd.f32 0.0, %v4119
    %v4121 = vpop.f32.mrb[0].mxu0
    %v4122 = vpop.f32.mrb[0].mxu0
    %v4123 = vadd.f32 0.0, %v4122
    %v4124 = vpop.f32.mrb[0].mxu0
    %4125 = vdwg.mxu0
    %v4126 = vadd.f32 %v3965, %v4096
    %v4127 = vadd.f32 %v3966, %v4099
    %v4128 = vadd.f32 %v3967, %v4104
    %v4129 = vadd.f32 %v3968, %v4107
    %v4130 = vadd.f32 %v3969, %v4112
    %v4131 = vadd.f32 %v3970, %v4115
    %v4132 = vadd.f32 %v3971, %v4120
    %v4133 = vadd.f32 %v3972, %v4123
    %v4134 = vrot.slane %v3506, 4
    %v4135 = vrot.slane %v3507, 4
    %v4136 = vsel %vm1376, %v4134, %v4135
    %v4137 = vrot.slane %v3508, 4
    %v4138 = vrot.slane %v3509, 4
    %v4139 = vsel %vm1376, %v4137, %v4138
    %v4140 = vrot.slane %v3510, 4
    %v4141 = vrot.slane %v3511, 4
    %v4142 = vsel %vm1376, %v4140, %v4141
    %v4143 = vrot.slane %v3512, 4
    %v4144 = vrot.slane %v3513, 4
    %v4145 = vsel %vm1376, %v4143, %v4144
    %v4146 = vrot.slane %v3514, 4
    %v4147 = vrot.slane %v3515, 4
    %v4148 = vsel %vm1376, %v4146, %v4147
    %v4149 = vrot.slane %v3516, 4
    %v4150 = vrot.slane %v3517, 4
    %v4151 = vsel %vm1376, %v4149, %v4150
    %v4152 = vrot.slane %v3518, 4
    %v4153 = vrot.slane %v3519, 4
    %v4154 = vsel %vm1376, %v4152, %v4153
    %v4155 = vrot.slane %v3520, 4
    %v4156 = vrot.slane %v3521, 4
    %v4157 = vsel %vm1376, %v4155, %v4156
    %v4166 = vpack.c.bf16 %v4139, %v4136
    %v4167 = vpack.c.bf16 %v4145, %v4142
    %v4168 = vpack.c.bf16 %v4151, %v4148
    %v4169 = vpack.c.bf16 %v4157, %v4154
    %s4170 = scalar_lea.vmem %s3, 144
    %v4171 = vld [vmem:[%s4170] sm:$0xf]
    %v4172 = vld [vmem:[%s4170 + $0x4] sm:$0xf]
    %v4173 = vld [vmem:[%s4170 + $0x8] sm:$0xf]
    %v4174 = vld [vmem:[%s4170 + $0xc] sm:$0xf]
    %v4175 = vld [vmem:[%s4170 + $0x10] sm:$0xf]
    %v4176 = vld [vmem:[%s4170 + $0x14] sm:$0xf]
    %v4177 = vld [vmem:[%s4170 + $0x18] sm:$0xf]
    %v4178 = vld [vmem:[%s4170 + $0x1c] sm:$0xf]
    %v4179 = vld [vmem:[%s4170 + $0x20] sm:$0xf]
    %v4189 = vunpack.c.l.b16 %v4171
    %v4190 = vunpack.c.l.b16 %v4172
    %v4191 = vunpack.c.l.b16 %v4173
    %v4192 = vunpack.c.l.b16 %v4174
    %v4193 = vunpack.c.l.b16 %v4175
    %v4194 = vunpack.c.l.b16 %v4176
    %v4195 = vunpack.c.l.b16 %v4177
    %v4196 = vunpack.c.l.b16 %v4178
    %v4197 = vunpack.c.l.b16 %v4179
    %v4198 = vpack.c.b16 %v4190, %v4189
    %v4199 = vpack.c.b16 %v4192, %v4191
    %v4200 = vpack.c.b16 %v4194, %v4193
    %v4201 = vpack.c.b16 %v4196, %v4195
    %v4202 = vpack.c.b16 %v4197, %v4197
    %v4208 = vsel %vm3624, %v4166, 0
    %v4211 = vsel %vm3624, %v4167, 0
    %v4214 = vsel %vm3624, %v4168, 0
    %v4217 = vsel %vm3624, %v4169, 0
    %v4220 = vsel %vm1376, %v4202, 0
    %4222 = vmatprep.subr.bf16.mxu0 0
    %4223 = vmatpush1.bf16.msra.mxu0 %v4198
    %4224 = vmatprep.subr.bf16.mxu0 0
    %4225 = vmatpush1.bf16.msra.mxu0 %v4199
    %4226 = vmatprep.subr.bf16.mxu0 0
    %4227 = vmatpush1.bf16.msra.mxu0 %v4200
    %4228 = vmatprep.subr.bf16.mxu0 0
    %4229 = vmatpush1.bf16.msra.mxu0 %v4201
    %4230 = vmatprep.subr.bf16.mxu0 0
    %4231 = vmatpush1.bf16.msra.mxu0 %v4220
    %4232 = vmatprep.subr.bf16.mxu0 0
    %4233 = vmatpush1.bf16.msra.mxu0 0
    %4234 = vmatprep.subr.bf16.mxu0 0
    %4235 = vmatpush1.bf16.msra.mxu0 0
    %4236 = vmatprep.subr.bf16.mxu0 0
    %4237 = vmatpush1.bf16.msra.mxu0 0
    %4238 = vmatprep.subr.bf16.mxu0 0
    %4239 = vmatpush1.bf16.msra.mxu0 0
    %4240 = vmatprep.subr.bf16.mxu0 0
    %4241 = vmatpush1.bf16.msra.mxu0 0
    %4242 = vmatprep.subr.bf16.mxu0 0
    %4243 = vmatpush1.bf16.msra.mxu0 0
    %4244 = vmatprep.subr.bf16.mxu0 0
    %4245 = vmatpush1.bf16.msra.mxu0 0
    %4246 = vmatprep.subr.bf16.mxu0 0
    %4247 = vmatpush1.bf16.msra.mxu0 0
    %4248 = vmatprep.subr.bf16.mxu0 0
    %4249 = vmatpush1.bf16.msra.mxu0 0
    %4250 = vmatprep.subr.bf16.mxu0 0
    %4251 = vmatpush1.bf16.msra.mxu0 0
    %4252 = vmatprep.subr.bf16.mxu0 0
    %4253 = vmatpush1.bf16.msra.mxu0 0
    %4254 = vmatprep.mubr.bf16.mxu0 0
    %4255 = vmatmul.mubr.bf16.gmra.mrb[0].mxu0 %v4208
    %v4256 = vpop.f32.mrb[0].mxu0
    %v4257 = vadd.f32 0.0, %v4256
    %v4258 = vpop.f32.mrb[0].mxu0
    %v4259 = vpop.f32.mrb[0].mxu0
    %v4260 = vadd.f32 0.0, %v4259
    %v4261 = vpop.f32.mrb[0].mxu0
    %4262 = vmatprep.mubr.bf16.mxu0 0
    %4263 = vmatmul.mubr.bf16.gmra.mrb[0].mxu0 %v4211
    %v4264 = vpop.f32.mrb[0].mxu0
    %v4265 = vadd.f32 0.0, %v4264
    %v4266 = vpop.f32.mrb[0].mxu0
    %v4267 = vpop.f32.mrb[0].mxu0
    %v4268 = vadd.f32 0.0, %v4267
    %v4269 = vpop.f32.mrb[0].mxu0
    %4270 = vmatprep.mubr.bf16.mxu0 0
    %4271 = vmatmul.mubr.bf16.gmra.mrb[0].mxu0 %v4214
    %v4272 = vpop.f32.mrb[0].mxu0
    %v4273 = vadd.f32 0.0, %v4272
    %v4274 = vpop.f32.mrb[0].mxu0
    %v4275 = vpop.f32.mrb[0].mxu0
    %v4276 = vadd.f32 0.0, %v4275
    %v4277 = vpop.f32.mrb[0].mxu0
    %4278 = vmatprep.mubr.bf16.mxu0 0
    %4279 = vmatmul.mubr.bf16.gmra.mrb[0].mxu0 %v4217
    %v4280 = vpop.f32.mrb[0].mxu0
    %v4281 = vadd.f32 0.0, %v4280
    %v4282 = vpop.f32.mrb[0].mxu0
    %v4283 = vpop.f32.mrb[0].mxu0
    %v4284 = vadd.f32 0.0, %v4283
    %v4285 = vpop.f32.mrb[0].mxu0
    %4286 = vdwg.mxu0
    %v4287 = vadd.f32 %v4126, %v4257
    %v4288 = vadd.f32 %v4127, %v4260
    %v4289 = vadd.f32 %v4128, %v4265
    %v4290 = vadd.f32 %v4129, %v4268
    %v4291 = vadd.f32 %v4130, %v4273
    %v4292 = vadd.f32 %v4131, %v4276
    %v4293 = vadd.f32 %v4132, %v4281
    %v4294 = vadd.f32 %v4133, %v4284
    %v4295 = vld [vmem:[%s4] sm:$0x1]
    %v4297 = vlaneseq
    %v4298 = vshrl.u32 %v4297, 7
    %v4299 = vsub.s32 0, %v4298
    %v4300 = vrot.slane %v4295, %v4299
    %v4302 = vadd.f32 %v4287, %v4300
    %v4303 = vadd.f32 %v4288, %v4300
    %v4304 = vadd.f32 %v4289, %v4300
    %v4305 = vadd.f32 %v4290, %v4300
    %v4306 = vadd.f32 %v4291, %v4300
    %v4307 = vadd.f32 %v4292, %v4300
    %v4308 = vadd.f32 %v4293, %v4300
    %v4309 = vadd.f32 %v4294, %v4300
    %v4310 = vmax.f32 %v4302, 0.0
    %v4311 = vmax.f32 %v4303, 0.0
    %v4312 = vmax.f32 %v4304, 0.0
    %v4313 = vmax.f32 %v4305, 0.0
    %v4314 = vmax.f32 %v4306, 0.0
    %v4315 = vmax.f32 %v4307, 0.0
    %v4316 = vmax.f32 %v4308, 0.0
    %v4317 = vmax.f32 %v4309, 0.0
    %v4326 = vrot.slane %v4310, 1
    %v4327 = vrot.slane %v4311, 1
    %v4328 = vrot.slane %v4312, 1
    %v4329 = vrot.slane %v4313, 1
    %v4330 = vrot.slane %v4314, 1
    %v4331 = vrot.slane %v4315, 1
    %v4332 = vrot.slane %v4316, 1
    %v4333 = vrot.slane %v4317, 1
    %v4342 = vmax.f32 %v4310, %v4326
    %v4343 = vmax.f32 %v4311, %v4327
    %v4344 = vmax.f32 %v4312, %v4328
    %v4345 = vmax.f32 %v4313, %v4329
    %v4346 = vmax.f32 %v4314, %v4330
    %v4347 = vmax.f32 %v4315, %v4331
    %v4348 = vmax.f32 %v4316, %v4332
    %v4349 = vmax.f32 %v4317, %v4333
    %v4358 = vrot.slane %v4342, 1
    %v4359 = vrot.slane %v4343, 1
    %v4360 = vrot.slane %v4344, 1
    %v4361 = vrot.slane %v4345, 1
    %v4362 = vrot.slane %v4346, 1
    %v4363 = vrot.slane %v4347, 1
    %v4364 = vrot.slane %v4348, 1
    %v4365 = vrot.slane %v4349, 1
    %v4374 = vrot.slane %v4342, 2
    %v4375 = vrot.slane %v4343, 2
    %v4376 = vrot.slane %v4344, 2
    %v4377 = vrot.slane %v4345, 2
    %v4378 = vrot.slane %v4346, 2
    %v4379 = vrot.slane %v4347, 2
    %v4380 = vrot.slane %v4348, 2
    %v4381 = vrot.slane %v4349, 2
    %v4390 = vrot.slane %v4342, 3
    %v4391 = vrot.slane %v4343, 3
    %v4392 = vrot.slane %v4344, 3
    %v4393 = vrot.slane %v4345, 3
    %v4394 = vrot.slane %v4346, 3
    %v4395 = vrot.slane %v4347, 3
    %v4396 = vrot.slane %v4348, 3
    %v4397 = vrot.slane %v4349, 3
    %v4406 = vsel %vm2435, %v4342, %v4358
    %v4407 = vsel %vm2435, %v4343, %v4359
    %v4408 = vsel %vm2435, %v4344, %v4360
    %v4409 = vsel %vm2435, %v4345, %v4361
    %v4410 = vsel %vm2435, %v4346, %v4362
    %v4411 = vsel %vm2435, %v4347, %v4363
    %v4412 = vsel %vm2435, %v4348, %v4364
    %v4413 = vsel %vm2435, %v4349, %v4365
    %v4414 = vsel %vm2452, %v4406, %v4374
    %v4415 = vsel %vm2452, %v4407, %v4375
    %v4416 = vsel %vm2452, %v4408, %v4376
    %v4417 = vsel %vm2452, %v4409, %v4377
    %v4418 = vsel %vm2452, %v4410, %v4378
    %v4419 = vsel %vm2452, %v4411, %v4379
    %v4420 = vsel %vm2452, %v4412, %v4380
    %v4421 = vsel %vm2452, %v4413, %v4381
    %v4422 = vsel %vm2469, %v4414, %v4390
    %v4423 = vsel %vm2469, %v4415, %v4391
    %v4424 = vsel %vm2469, %v4416, %v4392
    %v4425 = vsel %vm2469, %v4417, %v4393
    %v4426 = vsel %vm2469, %v4418, %v4394
    %v4427 = vsel %vm2469, %v4419, %v4395
    %v4428 = vsel %vm2469, %v4420, %v4396
    %v4429 = vsel %vm2469, %v4421, %v4397
    %4438 = vrot.lane.b32.xlu0 %v4422, 112
    %v4439 = vpop.permute.xlu0 %4438
    %4440 = vrot.lane.b32.xlu0 %v4423, 112
    %v4441 = vpop.permute.xlu0 %4440
    %4442 = vrot.lane.b32.xlu0 %v4424, 112
    %v4443 = vpop.permute.xlu0 %4442
    %4444 = vrot.lane.b32.xlu0 %v4425, 112
    %v4445 = vpop.permute.xlu0 %4444
    %4446 = vrot.lane.b32.xlu0 %v4426, 112
    %v4447 = vpop.permute.xlu0 %4446
    %4448 = vrot.lane.b32.xlu0 %v4427, 112
    %v4449 = vpop.permute.xlu0 %4448
    %4450 = vrot.lane.b32.xlu0 %v4428, 112
    %v4451 = vpop.permute.xlu0 %4450
    %4452 = vrot.lane.b32.xlu0 %v4429, 112
    %v4453 = vpop.permute.xlu0 %4452
    %v4462 = vmax.f32 %v4422, %v4439
    %v4463 = vmax.f32 %v4423, %v4441
    %v4464 = vmax.f32 %v4424, %v4443
    %v4465 = vmax.f32 %v4425, %v4445
    %v4466 = vmax.f32 %v4426, %v4447
    %v4467 = vmax.f32 %v4427, %v4449
    %v4468 = vmax.f32 %v4428, %v4451
    %v4469 = vmax.f32 %v4429, %v4453
    %4478 = vrot.lane.b32.xlu0 %v4462, 112
    %v4479 = vpop.permute.xlu0 %4478
    %4480 = vrot.lane.b32.xlu0 %v4463, 112
    %v4481 = vpop.permute.xlu0 %4480
    %4482 = vrot.lane.b32.xlu0 %v4464, 112
    %v4483 = vpop.permute.xlu0 %4482
    %4484 = vrot.lane.b32.xlu0 %v4465, 112
    %v4485 = vpop.permute.xlu0 %4484
    %4486 = vrot.lane.b32.xlu0 %v4466, 112
    %v4487 = vpop.permute.xlu0 %4486
    %4488 = vrot.lane.b32.xlu0 %v4467, 112
    %v4489 = vpop.permute.xlu0 %4488
    %4490 = vrot.lane.b32.xlu0 %v4468, 112
    %v4491 = vpop.permute.xlu0 %4490
    %4492 = vrot.lane.b32.xlu0 %v4469, 112
    %v4493 = vpop.permute.xlu0 %4492
    %4502 = vrot.lane.b32.xlu0 %v4462, 96
    %v4503 = vpop.permute.xlu0 %4502
    %4504 = vrot.lane.b32.xlu0 %v4463, 96
    %v4505 = vpop.permute.xlu0 %4504
    %4506 = vrot.lane.b32.xlu0 %v4464, 96
    %v4507 = vpop.permute.xlu0 %4506
    %4508 = vrot.lane.b32.xlu0 %v4465, 96
    %v4509 = vpop.permute.xlu0 %4508
    %4510 = vrot.lane.b32.xlu0 %v4466, 96
    %v4511 = vpop.permute.xlu0 %4510
    %4512 = vrot.lane.b32.xlu0 %v4467, 96
    %v4513 = vpop.permute.xlu0 %4512
    %4514 = vrot.lane.b32.xlu0 %v4468, 96
    %v4515 = vpop.permute.xlu0 %4514
    %4516 = vrot.lane.b32.xlu0 %v4469, 96
    %v4517 = vpop.permute.xlu0 %4516
    %4526 = vrot.lane.b32.xlu0 %v4462, 80
    %v4527 = vpop.permute.xlu0 %4526
    %4528 = vrot.lane.b32.xlu0 %v4463, 80
    %v4529 = vpop.permute.xlu0 %4528
    %4530 = vrot.lane.b32.xlu0 %v4464, 80
    %v4531 = vpop.permute.xlu0 %4530
    %4532 = vrot.lane.b32.xlu0 %v4465, 80
    %v4533 = vpop.permute.xlu0 %4532
    %4534 = vrot.lane.b32.xlu0 %v4466, 80
    %v4535 = vpop.permute.xlu0 %4534
    %4536 = vrot.lane.b32.xlu0 %v4467, 80
    %v4537 = vpop.permute.xlu0 %4536
    %4538 = vrot.lane.b32.xlu0 %v4468, 80
    %v4539 = vpop.permute.xlu0 %4538
    %4540 = vrot.lane.b32.xlu0 %v4469, 80
    %v4541 = vpop.permute.xlu0 %4540
    %vm4550 = vcmask 130048
    %v4551 = vsel %vm4550, %v4462, %v4479
    %v4552 = vsel %vm4550, %v4463, %v4481
    %v4553 = vsel %vm4550, %v4464, %v4483
    %v4554 = vsel %vm4550, %v4465, %v4485
    %v4555 = vsel %vm4550, %v4466, %v4487
    %v4556 = vsel %vm4550, %v4467, %v4489
    %v4557 = vsel %vm4550, %v4468, %v4491
    %v4558 = vsel %vm4550, %v4469, %v4493
    %vm4559 = vcmask 261120
    %v4560 = vsel %vm4559, %v4551, %v4503
    %v4561 = vsel %vm4559, %v4552, %v4505
    %v4562 = vsel %vm4559, %v4553, %v4507
    %v4563 = vsel %vm4559, %v4554, %v4509
    %v4564 = vsel %vm4559, %v4555, %v4511
    %v4565 = vsel %vm4559, %v4556, %v4513
    %v4566 = vsel %vm4559, %v4557, %v4515
    %v4567 = vsel %vm4559, %v4558, %v4517
    %v4568 = vsel %vm3454, %v4560, %v4527
    %v4569 = vsel %vm3454, %v4561, %v4529
    %v4570 = vsel %vm3454, %v4562, %v4531
    %v4571 = vsel %vm3454, %v4563, %v4533
    %v4572 = vsel %vm3454, %v4564, %v4535
    %v4573 = vsel %vm3454, %v4565, %v4537
    %v4574 = vsel %vm3454, %v4566, %v4539
    %v4575 = vsel %vm3454, %v4567, %v4541
    %v4576 = vpack.c.bf16 %v4568, %v4568
    %v4577 = vpack.c.bf16 %v4569, %v4569
    %v4578 = vpack.c.bf16 %v4570, %v4570
    %v4579 = vpack.c.bf16 %v4571, %v4571
    %v4580 = vpack.c.bf16 %v4572, %v4572
    %v4581 = vpack.c.bf16 %v4573, %v4573
    %v4582 = vpack.c.bf16 %v4574, %v4574
    %v4583 = vpack.c.bf16 %v4575, %v4575
    %v4584 = vld [vmem:[%s5] sm:$0xf]
    %v4585 = vld [vmem:[%s5 + $0x4] sm:$0xf]
    %v4586 = vld [vmem:[%s5 + $0x8] sm:$0xf]
    %v4587 = vld [vmem:[%s5 + $0xc] sm:$0xf]
    %v4588 = vld [vmem:[%s5 + $0x10] sm:$0xf]
    %v4589 = vld [vmem:[%s5 + $0x14] sm:$0xf]
    %v4590 = vld [vmem:[%s5 + $0x18] sm:$0xf]
    %v4591 = vld [vmem:[%s5 + $0x1c] sm:$0xf]
    %s4592 = scalar_lea.vmem %s5, 32
    %v4593 = vld [vmem:[%s4592] sm:$0xf]
    %v4594 = vld [vmem:[%s4592 + $0x4] sm:$0xf]
    %v4595 = vld [vmem:[%s4592 + $0x8] sm:$0xf]
    %v4596 = vld [vmem:[%s4592 + $0xc] sm:$0xf]
    %v4597 = vld [vmem:[%s4592 + $0x10] sm:$0xf]
    %v4598 = vld [vmem:[%s4592 + $0x14] sm:$0xf]
    %v4599 = vld [vmem:[%s4592 + $0x18] sm:$0xf]
    %v4600 = vld [vmem:[%s4592 + $0x1c] sm:$0xf]
    %v4609 = vunpack.c.l.b16 %v4576
    %v4610 = vunpack.c.l.b16 %v4577
    %v4611 = vunpack.c.l.b16 %v4578
    %v4612 = vunpack.c.l.b16 %v4579
    %v4613 = vunpack.c.l.b16 %v4580
    %v4614 = vunpack.c.l.b16 %v4581
    %v4615 = vunpack.c.l.b16 %v4582
    %v4616 = vunpack.c.l.b16 %v4583
    %v4617 = vrot.slane %v4609, 1
    %vm4618 = vcmask 1041409
    %v4619 = vsel %vm4618, %v4610, %v4617
    %v4620 = vrot.slane %v4611, 7
    %vm4621 = vcmask 1042434
    %v4622 = vsel %vm4621, %v4620, %v4619
    %v4623 = vrot.slane %v4612, 6
    %vm4624 = vcmask 1043459
    %v4625 = vsel %vm4624, %v4623, %v4622
    %v4626 = vrot.slane %v4613, 5
    %vm4627 = vcmask 1044484
    %v4628 = vsel %vm4627, %v4626, %v4625
    %v4629 = vrot.slane %v4614, 4
    %vm4630 = vcmask 1045509
    %v4631 = vsel %vm4630, %v4629, %v4628
    %v4632 = vrot.slane %v4615, 3
    %vm4633 = vcmask 1046534
    %v4634 = vsel %vm4633, %v4632, %v4631
    %v4635 = vrot.slane %v4616, 2
    %vm4636 = vcmask 1047559
    %v4637 = vsel %vm4636, %v4635, %v4634
    %v4638 = vpack.c.b16 %v4637, %v4637
    %v4647 = vunpack.c.l.b16 %v4593
    %v4648 = vunpack.c.l.b16 %v4594
    %v4649 = vunpack.c.l.b16 %v4595
    %v4650 = vunpack.c.l.b16 %v4596
    %v4651 = vunpack.c.l.b16 %v4597
    %v4652 = vunpack.c.l.b16 %v4598
    %v4653 = vunpack.c.l.b16 %v4599
    %v4654 = vunpack.c.l.b16 %v4600
    %v4655 = vpack.c.b16 %v4648, %v4647
    %v4656 = vpack.c.b16 %v4650, %v4649
    %v4657 = vpack.c.b16 %v4652, %v4651
    %v4658 = vpack.c.b16 %v4654, %v4653
    %vm4663 = vcmask 523264
    %v4665 = vsel %vm4663, %v4638, 0
    %4667 = vmatprep.subr.bf16.mxu0 0
    %4668 = vmatpush1.bf16.msra.mxu0 %v4655
    %4669 = vmatprep.subr.bf16.mxu0 0
    %4670 = vmatpush1.bf16.msra.mxu0 %v4656
    %4671 = vmatprep.subr.bf16.mxu0 0
    %4672 = vmatpush1.bf16.msra.mxu0 %v4657
    %4673 = vmatprep.subr.bf16.mxu0 0
    %4674 = vmatpush1.bf16.msra.mxu0 %v4658
    %4675 = vmatprep.subr.bf16.mxu0 0
    %4676 = vmatpush1.bf16.msra.mxu0 0
    %4677 = vmatprep.subr.bf16.mxu0 0
    %4678 = vmatpush1.bf16.msra.mxu0 0
    %4679 = vmatprep.subr.bf16.mxu0 0
    %4680 = vmatpush1.bf16.msra.mxu0 0
    %4681 = vmatprep.subr.bf16.mxu0 0
    %4682 = vmatpush1.bf16.msra.mxu0 0
    %4683 = vmatprep.subr.bf16.mxu0 0
    %4684 = vmatpush1.bf16.msra.mxu0 0
    %4685 = vmatprep.subr.bf16.mxu0 0
    %4686 = vmatpush1.bf16.msra.mxu0 0
    %4687 = vmatprep.subr.bf16.mxu0 0
    %4688 = vmatpush1.bf16.msra.mxu0 0
    %4689 = vmatprep.subr.bf16.mxu0 0
    %4690 = vmatpush1.bf16.msra.mxu0 0
    %4691 = vmatprep.subr.bf16.mxu0 0
    %4692 = vmatpush1.bf16.msra.mxu0 0
    %4693 = vmatprep.subr.bf16.mxu0 0
    %4694 = vmatpush1.bf16.msra.mxu0 0
    %4695 = vmatprep.subr.bf16.mxu0 0
    %4696 = vmatpush1.bf16.msra.mxu0 0
    %4697 = vmatprep.subr.bf16.mxu0 0
    %4698 = vmatpush1.bf16.msra.mxu0 0
    %4699 = vmatprep.mubr.bf16.mxu0 0
    %4700 = vmatmul.mubr.bf16.gmra.mrb[0].mxu0 %v4665
    %v4701 = vpop.f32.mrb[0].mxu0
    %v4702 = vadd.f32 0.0, %v4701
    %v4703 = vpop.f32.mrb[0].mxu0
    %v4704 = vpop.f32.mrb[0].mxu0
    %v4705 = vpop.f32.mrb[0].mxu0
    %4706 = vdwg.mxu0
    %v4707 = vrot.slane %v4610, 7
    %v4708 = vsel %vm4618, %v4707, %v4609
    %v4709 = vrot.slane %v4611, 6
    %v4710 = vsel %vm4621, %v4709, %v4708
    %v4711 = vrot.slane %v4612, 5
    %v4712 = vsel %vm4624, %v4711, %v4710
    %v4713 = vrot.slane %v4613, 4
    %v4714 = vsel %vm4627, %v4713, %v4712
    %v4715 = vrot.slane %v4614, 3
    %v4716 = vsel %vm4630, %v4715, %v4714
    %v4717 = vrot.slane %v4615, 2
    %v4718 = vsel %vm4633, %v4717, %v4716
    %v4719 = vrot.slane %v4616, 1
    %v4720 = vsel %vm4636, %v4719, %v4718
    %v4721 = vpack.c.b16 %v4720, %v4720
    %v4730 = vunpack.c.l.b16 %v4584
    %v4731 = vunpack.c.l.b16 %v4585
    %v4732 = vunpack.c.l.b16 %v4586
    %v4733 = vunpack.c.l.b16 %v4587
    %v4734 = vunpack.c.l.b16 %v4588
    %v4735 = vunpack.c.l.b16 %v4589
    %v4736 = vunpack.c.l.b16 %v4590
    %v4737 = vunpack.c.l.b16 %v4591
    %v4738 = vpack.c.b16 %v4731, %v4730
    %v4739 = vpack.c.b16 %v4733, %v4732
    %v4740 = vpack.c.b16 %v4735, %v4734
    %v4741 = vpack.c.b16 %v4737, %v4736
    %v4747 = vsel %vm4663, %v4721, 0
    %4749 = vmatprep.subr.bf16.mxu0 0
    %4750 = vmatpush1.bf16.msra.mxu0 %v4738
    %4751 = vmatprep.subr.bf16.mxu0 0
    %4752 = vmatpush1.bf16.msra.mxu0 %v4739
    %4753 = vmatprep.subr.bf16.mxu0 0
    %4754 = vmatpush1.bf16.msra.mxu0 %v4740
    %4755 = vmatprep.subr.bf16.mxu0 0
    %4756 = vmatpush1.bf16.msra.mxu0 %v4741
    %4757 = vmatprep.subr.bf16.mxu0 0
    %4758 = vmatpush1.bf16.msra.mxu0 0
    %4759 = vmatprep.subr.bf16.mxu0 0
    %4760 = vmatpush1.bf16.msra.mxu0 0
    %4761 = vmatprep.subr.bf16.mxu0 0
    %4762 = vmatpush1.bf16.msra.mxu0 0
    %4763 = vmatprep.subr.bf16.mxu0 0
    %4764 = vmatpush1.bf16.msra.mxu0 0
    %4765 = vmatprep.subr.bf16.mxu0 0
    %4766 = vmatpush1.bf16.msra.mxu0 0
    %4767 = vmatprep.subr.bf16.mxu0 0
    %4768 = vmatpush1.bf16.msra.mxu0 0
    %4769 = vmatprep.subr.bf16.mxu0 0
    %4770 = vmatpush1.bf16.msra.mxu0 0
    %4771 = vmatprep.subr.bf16.mxu0 0
    %4772 = vmatpush1.bf16.msra.mxu0 0
    %4773 = vmatprep.subr.bf16.mxu0 0
    %4774 = vmatpush1.bf16.msra.mxu0 0
    %4775 = vmatprep.subr.bf16.mxu0 0
    %4776 = vmatpush1.bf16.msra.mxu0 0
    %4777 = vmatprep.subr.bf16.mxu0 0
    %4778 = vmatpush1.bf16.msra.mxu0 0
    %4779 = vmatprep.subr.bf16.mxu0 0
    %4780 = vmatpush1.bf16.msra.mxu0 0
    %4781 = vmatprep.mubr.bf16.mxu0 0
    %4782 = vmatmul.mubr.bf16.gmra.mrb[0].mxu0 %v4747
    %v4783 = vpop.f32.mrb[0].mxu0
    %v4784 = vadd.f32 %v4702, %v4783
    %v4785 = vpop.f32.mrb[0].mxu0
    %v4786 = vpop.f32.mrb[0].mxu0
    %v4787 = vpop.f32.mrb[0].mxu0
    %4788 = vdwg.mxu0
    %s4789 = scalar_lea.vmem %s5, 64
    %v4790 = vld [vmem:[%s4789] sm:$0xf]
    %v4791 = vld [vmem:[%s4789 + $0x4] sm:$0xf]
    %v4792 = vld [vmem:[%s4789 + $0x8] sm:$0xf]
    %v4793 = vld [vmem:[%s4789 + $0xc] sm:$0xf]
    %v4794 = vld [vmem:[%s4789 + $0x10] sm:$0xf]
    %v4795 = vld [vmem:[%s4789 + $0x14] sm:$0xf]
    %v4796 = vld [vmem:[%s4789 + $0x18] sm:$0xf]
    %v4797 = vld [vmem:[%s4789 + $0x1c] sm:$0xf]
    %v4798 = vrot.slane %v4609, 2
    %v4799 = vrot.slane %v4610, 1
    %v4800 = vsel %vm4618, %v4799, %v4798
    %v4801 = vsel %vm4621, %v4611, %v4800
    %v4802 = vrot.slane %v4612, 7
    %v4803 = vsel %vm4624, %v4802, %v4801
    %v4804 = vrot.slane %v4613, 6
    %v4805 = vsel %vm4627, %v4804, %v4803
    %v4806 = vrot.slane %v4614, 5
    %v4807 = vsel %vm4630, %v4806, %v4805
    %v4808 = vrot.slane %v4615, 4
    %v4809 = vsel %vm4633, %v4808, %v4807
    %v4810 = vrot.slane %v4616, 3
    %v4811 = vsel %vm4636, %v4810, %v4809
    %v4812 = vpack.c.b16 %v4811, %v4811
    %v4821 = vunpack.c.l.b16 %v4790
    %v4822 = vunpack.c.l.b16 %v4791
    %v4823 = vunpack.c.l.b16 %v4792
    %v4824 = vunpack.c.l.b16 %v4793
    %v4825 = vunpack.c.l.b16 %v4794
    %v4826 = vunpack.c.l.b16 %v4795
    %v4827 = vunpack.c.l.b16 %v4796
    %v4828 = vunpack.c.l.b16 %v4797
    %v4829 = vpack.c.b16 %v4822, %v4821
    %v4830 = vpack.c.b16 %v4824, %v4823
    %v4831 = vpack.c.b16 %v4826, %v4825
    %v4832 = vpack.c.b16 %v4828, %v4827
    %v4838 = vsel %vm4663, %v4812, 0
    %4840 = vmatprep.subr.bf16.mxu0 0
    %4841 = vmatpush1.bf16.msra.mxu0 %v4829
    %4842 = vmatprep.subr.bf16.mxu0 0
    %4843 = vmatpush1.bf16.msra.mxu0 %v4830
    %4844 = vmatprep.subr.bf16.mxu0 0
    %4845 = vmatpush1.bf16.msra.mxu0 %v4831
    %4846 = vmatprep.subr.bf16.mxu0 0
    %4847 = vmatpush1.bf16.msra.mxu0 %v4832
    %4848 = vmatprep.subr.bf16.mxu0 0
    %4849 = vmatpush1.bf16.msra.mxu0 0
    %4850 = vmatprep.subr.bf16.mxu0 0
    %4851 = vmatpush1.bf16.msra.mxu0 0
    %4852 = vmatprep.subr.bf16.mxu0 0
    %4853 = vmatpush1.bf16.msra.mxu0 0
    %4854 = vmatprep.subr.bf16.mxu0 0
    %4855 = vmatpush1.bf16.msra.mxu0 0
    %4856 = vmatprep.subr.bf16.mxu0 0
    %4857 = vmatpush1.bf16.msra.mxu0 0
    %4858 = vmatprep.subr.bf16.mxu0 0
    %4859 = vmatpush1.bf16.msra.mxu0 0
    %4860 = vmatprep.subr.bf16.mxu0 0
    %4861 = vmatpush1.bf16.msra.mxu0 0
    %4862 = vmatprep.subr.bf16.mxu0 0
    %4863 = vmatpush1.bf16.msra.mxu0 0
    %4864 = vmatprep.subr.bf16.mxu0 0
    %4865 = vmatpush1.bf16.msra.mxu0 0
    %4866 = vmatprep.subr.bf16.mxu0 0
    %4867 = vmatpush1.bf16.msra.mxu0 0
    %4868 = vmatprep.subr.bf16.mxu0 0
    %4869 = vmatpush1.bf16.msra.mxu0 0
    %4870 = vmatprep.subr.bf16.mxu0 0
    %4871 = vmatpush1.bf16.msra.mxu0 0
    %4872 = vmatprep.mubr.bf16.mxu0 0
    %4873 = vmatmul.mubr.bf16.gmra.mrb[0].mxu0 %v4838
    %v4874 = vpop.f32.mrb[0].mxu0
    %v4875 = vadd.f32 0.0, %v4874
    %v4876 = vpop.f32.mrb[0].mxu0
    %v4877 = vpop.f32.mrb[0].mxu0
    %v4878 = vpop.f32.mrb[0].mxu0
    %4879 = vdwg.mxu0
    %v4880 = vadd.f32 %v4784, %v4875
    %s4881 = scalar_lea.vmem %s5, 96
    %v4882 = vld [vmem:[%s4881] sm:$0xf]
    %v4883 = vld [vmem:[%s4881 + $0x4] sm:$0xf]
    %v4884 = vld [vmem:[%s4881 + $0x8] sm:$0xf]
    %v4885 = vld [vmem:[%s4881 + $0xc] sm:$0xf]
    %v4886 = vld [vmem:[%s4881 + $0x10] sm:$0xf]
    %v4887 = vld [vmem:[%s4881 + $0x14] sm:$0xf]
    %v4888 = vld [vmem:[%s4881 + $0x18] sm:$0xf]
    %v4889 = vld [vmem:[%s4881 + $0x1c] sm:$0xf]
    %v4890 = vrot.slane %v4609, 3
    %v4891 = vrot.slane %v4610, 2
    %v4892 = vsel %vm4618, %v4891, %v4890
    %v4893 = vrot.slane %v4611, 1
    %v4894 = vsel %vm4621, %v4893, %v4892
    %v4895 = vsel %vm4624, %v4612, %v4894
    %v4896 = vrot.slane %v4613, 7
    %v4897 = vsel %vm4627, %v4896, %v4895
    %v4898 = vrot.slane %v4614, 6
    %v4899 = vsel %vm4630, %v4898, %v4897
    %v4900 = vrot.slane %v4615, 5
    %v4901 = vsel %vm4633, %v4900, %v4899
    %v4902 = vrot.slane %v4616, 4
    %v4903 = vsel %vm4636, %v4902, %v4901
    %v4904 = vpack.c.b16 %v4903, %v4903
    %v4913 = vunpack.c.l.b16 %v4882
    %v4914 = vunpack.c.l.b16 %v4883
    %v4915 = vunpack.c.l.b16 %v4884
    %v4916 = vunpack.c.l.b16 %v4885
    %v4917 = vunpack.c.l.b16 %v4886
    %v4918 = vunpack.c.l.b16 %v4887
    %v4919 = vunpack.c.l.b16 %v4888
    %v4920 = vunpack.c.l.b16 %v4889
    %v4921 = vpack.c.b16 %v4914, %v4913
    %v4922 = vpack.c.b16 %v4916, %v4915
    %v4923 = vpack.c.b16 %v4918, %v4917
    %v4924 = vpack.c.b16 %v4920, %v4919
    %v4930 = vsel %vm4663, %v4904, 0
    %4932 = vmatprep.subr.bf16.mxu0 0
    %4933 = vmatpush1.bf16.msra.mxu0 %v4921
    %4934 = vmatprep.subr.bf16.mxu0 0
    %4935 = vmatpush1.bf16.msra.mxu0 %v4922
    %4936 = vmatprep.subr.bf16.mxu0 0
    %4937 = vmatpush1.bf16.msra.mxu0 %v4923
    %4938 = vmatprep.subr.bf16.mxu0 0
    %4939 = vmatpush1.bf16.msra.mxu0 %v4924
    %4940 = vmatprep.subr.bf16.mxu0 0
    %4941 = vmatpush1.bf16.msra.mxu0 0
    %4942 = vmatprep.subr.bf16.mxu0 0
    %4943 = vmatpush1.bf16.msra.mxu0 0
    %4944 = vmatprep.subr.bf16.mxu0 0
    %4945 = vmatpush1.bf16.msra.mxu0 0
    %4946 = vmatprep.subr.bf16.mxu0 0
    %4947 = vmatpush1.bf16.msra.mxu0 0
    %4948 = vmatprep.subr.bf16.mxu0 0
    %4949 = vmatpush1.bf16.msra.mxu0 0
    %4950 = vmatprep.subr.bf16.mxu0 0
    %4951 = vmatpush1.bf16.msra.mxu0 0
    %4952 = vmatprep.subr.bf16.mxu0 0
    %4953 = vmatpush1.bf16.msra.mxu0 0
    %4954 = vmatprep.subr.bf16.mxu0 0
    %4955 = vmatpush1.bf16.msra.mxu0 0
    %4956 = vmatprep.subr.bf16.mxu0 0
    %4957 = vmatpush1.bf16.msra.mxu0 0
    %4958 = vmatprep.subr.bf16.mxu0 0
    %4959 = vmatpush1.bf16.msra.mxu0 0
    %4960 = vmatprep.subr.bf16.mxu0 0
    %4961 = vmatpush1.bf16.msra.mxu0 0
    %4962 = vmatprep.subr.bf16.mxu0 0
    %4963 = vmatpush1.bf16.msra.mxu0 0
    %4964 = vmatprep.mubr.bf16.mxu0 0
    %4965 = vmatmul.mubr.bf16.gmra.mrb[0].mxu0 %v4930
    %v4966 = vpop.f32.mrb[0].mxu0
    %v4967 = vadd.f32 0.0, %v4966
    %v4968 = vpop.f32.mrb[0].mxu0
    %v4969 = vpop.f32.mrb[0].mxu0
    %v4970 = vpop.f32.mrb[0].mxu0
    %4971 = vdwg.mxu0
    %v4972 = vadd.f32 %v4880, %v4967
    %v4973 = vld [vmem:[%s6] sm:$0x1]
    %v4975 = vlaneseq
    %v4976 = vshrl.u32 %v4975, 7
    %v4977 = vsub.s32 0, %v4976
    %v4978 = vrot.slane %v4973, %v4977
    %v4980 = vadd.f32 %v4972, %v4978
    %v4981 = vmax.f32 %v4980, 0.0
    %v4982 = vpack.c.bf16 %v4981, %v4981
    %v4983 = vld [vmem:[%s7] sm:$0xf]
    %v4984 = vld [vmem:[%s7 + $0x4] sm:$0xf]
    %v4985 = vld [vmem:[%s7 + $0x8] sm:$0xf]
    %v4986 = vld [vmem:[%s7 + $0xc] sm:$0xf]
    %v4987 = vld [vmem:[%s7 + $0x10] sm:$0xf]
    %v4988 = vld [vmem:[%s7 + $0x14] sm:$0xf]
    %v4989 = vld [vmem:[%s7 + $0x18] sm:$0xf]
    %v4990 = vld [vmem:[%s7 + $0x1c] sm:$0xf]
    %v4991 = vld [vmem:[%s7 + $0x20] sm:$0xf]
    %v4992 = vld [vmem:[%s7 + $0x24] sm:$0xf]
    %v4993 = vld [vmem:[%s7 + $0x28] sm:$0xf]
    %v4994 = vld [vmem:[%s7 + $0x2c] sm:$0xf]
    %v4995 = vld [vmem:[%s7 + $0x30] sm:$0xf]
    %v4996 = vld [vmem:[%s7 + $0x34] sm:$0xf]
    %v4997 = vld [vmem:[%s7 + $0x38] sm:$0xf]
    %v4998 = vld [vmem:[%s7 + $0x3c] sm:$0xf]
    %v4999 = vld [vmem:[%s8] sm:$0x1]
    %v5001 = vlaneseq
    %v5002 = vshrl.u32 %v5001, 7
    %v5003 = vsub.s32 0, %v5002
    %v5004 = vrot.slane %v4999, %v5003
    %v5022 = vunpack.c.l.b16 %v4983
    %v5023 = vunpack.c.l.b16 %v4984
    %v5024 = vunpack.c.l.b16 %v4985
    %v5025 = vunpack.c.l.b16 %v4986
    %v5026 = vunpack.c.l.b16 %v4987
    %v5027 = vunpack.c.l.b16 %v4988
    %v5028 = vunpack.c.l.b16 %v4989
    %v5029 = vunpack.c.l.b16 %v4990
    %v5030 = vunpack.c.l.b16 %v4991
    %v5031 = vunpack.c.l.b16 %v4992
    %v5032 = vunpack.c.l.b16 %v4993
    %v5033 = vunpack.c.l.b16 %v4994
    %v5034 = vunpack.c.l.b16 %v4995
    %v5035 = vunpack.c.l.b16 %v4996
    %v5036 = vunpack.c.l.b16 %v4997
    %v5037 = vunpack.c.l.b16 %v4998
    %v5038 = vpack.c.b16 %v5023, %v5022
    %v5039 = vpack.c.b16 %v5025, %v5024
    %v5040 = vpack.c.b16 %v5027, %v5026
    %v5041 = vpack.c.b16 %v5029, %v5028
    %v5042 = vpack.c.b16 %v5031, %v5030
    %v5043 = vpack.c.b16 %v5033, %v5032
    %v5044 = vpack.c.b16 %v5035, %v5034
    %v5045 = vpack.c.b16 %v5037, %v5036
    %5054 = vmatprep.subr.bf16.mxu0 0
    %5055 = vmatpush1.bf16.msra.mxu0 %v5038
    %5056 = vmatprep.subr.bf16.mxu0 0
    %5057 = vmatpush1.bf16.msra.mxu0 %v5039
    %5058 = vmatprep.subr.bf16.mxu0 0
    %5059 = vmatpush1.bf16.msra.mxu0 %v5040
    %5060 = vmatprep.subr.bf16.mxu0 0
    %5061 = vmatpush1.bf16.msra.mxu0 %v5041
    %5062 = vmatprep.subr.bf16.mxu0 0
    %5063 = vmatpush1.bf16.msra.mxu0 %v5042
    %5064 = vmatprep.subr.bf16.mxu0 0
    %5065 = vmatpush1.bf16.msra.mxu0 %v5043
    %5066 = vmatprep.subr.bf16.mxu0 0
    %5067 = vmatpush1.bf16.msra.mxu0 %v5044
    %5068 = vmatprep.subr.bf16.mxu0 0
    %5069 = vmatpush1.bf16.msra.mxu0 %v5045
    %5070 = vmatprep.subr.bf16.mxu0 0
    %5071 = vmatpush1.bf16.msra.mxu0 0
    %5072 = vmatprep.subr.bf16.mxu0 0
    %5073 = vmatpush1.bf16.msra.mxu0 0
    %5074 = vmatprep.subr.bf16.mxu0 0
    %5075 = vmatpush1.bf16.msra.mxu0 0
    %5076 = vmatprep.subr.bf16.mxu0 0
    %5077 = vmatpush1.bf16.msra.mxu0 0
    %5078 = vmatprep.subr.bf16.mxu0 0
    %5079 = vmatpush1.bf16.msra.mxu0 0
    %5080 = vmatprep.subr.bf16.mxu0 0
    %5081 = vmatpush1.bf16.msra.mxu0 0
    %5082 = vmatprep.subr.bf16.mxu0 0
    %5083 = vmatpush1.bf16.msra.mxu0 0
    %5084 = vmatprep.subr.bf16.mxu0 0
    %5085 = vmatpush1.bf16.msra.mxu0 0
    %5086 = vmatprep.mubr.bf16.mxu0 0
    %5087 = vmatmul.mubr.bf16.gmra.mrb[0].mxu0 %v4982
    %v5088 = vpop.f32.mrb[0].mxu0
    %v5089 = vadd.f32 %v5004, %v5088
    %v5090 = vpop.f32.mrb[0].mxu0
    %v5091 = vpop.f32.mrb[0].mxu0
    %v5092 = vpop.f32.mrb[0].mxu0
    %5093 = vdwg.mxu0
    %v5094 = vmax.f32 %v5089, 0.0
    %v5095 = vpack.c.bf16 %v5094, %v5094
    %v5096 = vld [vmem:[#allocation2] sm:$0xf]
    %v5097 = vld [vmem:[#allocation2 + $0x4] sm:$0xf]
    %v5098 = vld [vmem:[#allocation2 + $0x8] sm:$0xf]
    %v5099 = vld [vmem:[#allocation2 + $0xc] sm:$0xf]
    %v5100 = vld [vmem:[#allocation2 + $0x10] sm:$0xf]
    %v5101 = vld [vmem:[#allocation2 + $0x14] sm:$0xf]
    %v5102 = vld [vmem:[#allocation2 + $0x18] sm:$0xf]
    %v5103 = vld [vmem:[#allocation2 + $0x1c] sm:$0xf]
    %v5104 = vld [vmem:[#allocation2 + $0x20] sm:$0xf]
    %v5105 = vld [vmem:[#allocation2 + $0x24] sm:$0xf]
    %v5106 = vld [vmem:[#allocation2 + $0x28] sm:$0xf]
    %v5107 = vld [vmem:[#allocation2 + $0x2c] sm:$0xf]
    %v5108 = vld [vmem:[#allocation2 + $0x30] sm:$0xf]
    %v5109 = vld [vmem:[#allocation2 + $0x34] sm:$0xf]
    %v5110 = vld [vmem:[#allocation2 + $0x38] sm:$0xf]
    %v5111 = vld [vmem:[#allocation2 + $0x3c] sm:$0xf]
    %v5112 = vld [vmem:[%s10] sm:$0x1]
    %v5114 = vlaneseq
    %v5115 = vshrl.u32 %v5114, 7
    %v5116 = vsub.s32 0, %v5115
    %v5117 = vrot.slane %v5112, %v5116
    %v5135 = vunpack.c.l.b16 %v5096
    %v5136 = vunpack.c.l.b16 %v5097
    %v5137 = vunpack.c.l.b16 %v5098
    %v5138 = vunpack.c.l.b16 %v5099
    %v5139 = vunpack.c.l.b16 %v5100
    %v5140 = vunpack.c.l.b16 %v5101
    %v5141 = vunpack.c.l.b16 %v5102
    %v5142 = vunpack.c.l.b16 %v5103
    %v5143 = vunpack.c.l.b16 %v5104
    %v5144 = vunpack.c.l.b16 %v5105
    %v5145 = vunpack.c.l.b16 %v5106
    %v5146 = vunpack.c.l.b16 %v5107
    %v5147 = vunpack.c.l.b16 %v5108
    %v5148 = vunpack.c.l.b16 %v5109
    %v5149 = vunpack.c.l.b16 %v5110
    %v5150 = vunpack.c.l.b16 %v5111
    %v5151 = vpack.c.b16 %v5136, %v5135
    %v5152 = vpack.c.b16 %v5138, %v5137
    %v5153 = vpack.c.b16 %v5140, %v5139
    %v5154 = vpack.c.b16 %v5142, %v5141
    %v5155 = vpack.c.b16 %v5144, %v5143
    %v5156 = vpack.c.b16 %v5146, %v5145
    %v5157 = vpack.c.b16 %v5148, %v5147
    %v5158 = vpack.c.b16 %v5150, %v5149
    %5167 = vmatprep.subr.bf16.mxu0 0
    %5168 = vmatpush1.bf16.msra.mxu0 %v5151
    %5169 = vmatprep.subr.bf16.mxu0 0
    %5170 = vmatpush1.bf16.msra.mxu0 %v5152
    %5171 = vmatprep.subr.bf16.mxu0 0
    %5172 = vmatpush1.bf16.msra.mxu0 %v5153
    %5173 = vmatprep.subr.bf16.mxu0 0
    %5174 = vmatpush1.bf16.msra.mxu0 %v5154
    %5175 = vmatprep.subr.bf16.mxu0 0
    %5176 = vmatpush1.bf16.msra.mxu0 %v5155
    %5177 = vmatprep.subr.bf16.mxu0 0
    %5178 = vmatpush1.bf16.msra.mxu0 %v5156
    %5179 = vmatprep.subr.bf16.mxu0 0
    %5180 = vmatpush1.bf16.msra.mxu0 %v5157
    %5181 = vmatprep.subr.bf16.mxu0 0
    %5182 = vmatpush1.bf16.msra.mxu0 %v5158
    %5183 = vmatprep.subr.bf16.mxu0 0
    %5184 = vmatpush1.bf16.msra.mxu0 0
    %5185 = vmatprep.subr.bf16.mxu0 0
    %5186 = vmatpush1.bf16.msra.mxu0 0
    %5187 = vmatprep.subr.bf16.mxu0 0
    %5188 = vmatpush1.bf16.msra.mxu0 0
    %5189 = vmatprep.subr.bf16.mxu0 0
    %5190 = vmatpush1.bf16.msra.mxu0 0
    %5191 = vmatprep.subr.bf16.mxu0 0
    %5192 = vmatpush1.bf16.msra.mxu0 0
    %5193 = vmatprep.subr.bf16.mxu0 0
    %5194 = vmatpush1.bf16.msra.mxu0 0
    %5195 = vmatprep.subr.bf16.mxu0 0
    %5196 = vmatpush1.bf16.msra.mxu0 0
    %5197 = vmatprep.subr.bf16.mxu0 0
    %5198 = vmatpush1.bf16.msra.mxu0 0
    %5199 = vmatprep.mubr.bf16.mxu0 0
    %5200 = vmatmul.mubr.bf16.gmra.mrb[0].mxu0 %v5095
    %v5201 = vpop.f32.mrb[0].mxu0
    %v5202 = vadd.f32 %v5117, %v5201
    %v5203 = vpop.f32.mrb[0].mxu0
    %v5204 = vpop.f32.mrb[0].mxu0
    %v5205 = vpop.f32.mrb[0].mxu0
    %5206 = vdwg.mxu0
    %5207 = vst [vmem:[%s11] sm:$0xff] %v5202
    // Predicated region
    $region50: #{lenet_laplace_forward.1} parent=1 // pred_check
      _
    $region51: #{lenet_laplace_forward.1} parent=1 // pred_check_branch
      %5209 = sbr.rel (0) target = $region53
    $region52: #{lenet_laplace_forward.1} parent=1 // pred_region
      _
    $region53: #{lenet_laplace_forward.1} parent=1 // pred_fallthru
      _
    // Predicated region
    $region54: #{lenet_laplace_forward.1} parent=1 // pred_check
      _
    $region55: #{lenet_laplace_forward.1} parent=1 // pred_check_branch
      %5211 = sbr.rel (0) target = $region57
    $region56: #{lenet_laplace_forward.1} parent=1 // pred_region
      _
    $region57: #{lenet_laplace_forward.1} parent=1 // pred_fallthru
      _
    %5212 = vsyncpa [#allocation3], 1

</llo_original>
